<compile_context>
chip_gen: v5e
topology: v5e:2x2
jax: 0.10.0
libtpu: 0.0.40
codegen_flags: <defaults>
</compile_context>

<pallas_src>
import functools

import jax
import jax.numpy as jnp
from jax.experimental import pallas as pl
from jax.experimental.pallas import tpu as pltpu


# ---------------------------------------------------------------------------
# Fused kernel
# ---------------------------------------------------------------------------
def _affine_coupling_kernel(x_ref, border_ref, w1_ref, b1_ref, w2_ref, b2_ref,
                            w3_ref, b3_ref, sc_ref, out_ref,
                            x_sc, hext_sc, *, wp, hwp, hwp_pad, ext_pad):
    # Static shapes:
    #   x_ref     : (n_tile, C, hwp)        spatially zero-padded, flattened
    #   border_ref: (1, n_tile*hwp_pad)     1.0 on each sample's padded border
    #   w1_ref    : (9, F, Chalf)           conv1 weights, per-tap
    #   w2_ref    : (F, F)                  1x1 conv weights (out, in)
    #   w3_ref    : (9, C, F)               ZeroConv2d weights, per-tap
    #   out_ref   : (n_tile, C, hwp_pad)    in_a pass-through + out_b
    #   x_sc      : (C, ext_tot)            lane-extended/padded input scratch
    #   hext_sc   : (F, ext_tot)            lane-extended ones-padded h2
    n_tile, C, _ = x_ref.shape
    chalf = C // 2
    F = w2_ref.shape[0]
    tot = n_tile * hwp_pad

    # Tap lane offsets of a 3x3 conv on the flattened (H+2, W+2) grid.
    deltas = [(dy - 1) * wp + (dx - 1) for dy in range(3) for dx in range(3)]

    # ---- one-time zero of extension strips / dead lanes -------------------
    # Scratch persists across grid steps and the strips are never written
    # below.  Kept-output correctness does not depend on this init (strip
    # garbage only feeds padded-grid border / dead lanes, which are forced to
    # 1.0 or dropped by the wrapper slice), so it is also safe under
    # "parallel" megacore sharding where a core may never see step 0.
    @pl.when(pl.program_id(0) == 0)
    def _():
        x_sc[...] = jnp.zeros(x_sc.shape, x_sc.dtype)
        hext_sc[:, :ext_pad] = jnp.zeros((F, ext_pad), jnp.float32)
        hext_sc[:, ext_pad + tot:] = jnp.zeros((F, ext_pad), jnp.float32)

    # ---- stage the input samples into the extended / lane-padded layout ---
    for s in range(n_tile):
        base = ext_pad + s * hwp_pad
        x_sc[:, base:base + hwp] = x_ref[s].astype(jnp.float32)

    # ---- Conv3x3(padding=1) over in_a: 9 accumulated tap matmuls ----------
    h1 = jnp.zeros((F, tot), jnp.float32)
    for t_i, d in enumerate(deltas):
        h1 = h1 + jnp.dot(w1_ref[t_i],
                          x_sc[:chalf, ext_pad + d:ext_pad + d + tot],
                          preferred_element_type=jnp.float32)
    h1 = jnp.maximum(h1 + b1_ref[...], 0.0)                     # (F, tot)

    # ---- Conv1x1 + ReLU ----------------------------------------------------
    h2 = jnp.dot(w2_ref[...], h1, preferred_element_type=jnp.float32)
    h2 = jnp.maximum(h2 + b2_ref[...], 0.0)                     # (F, tot)

    # ---- ZeroConv2d: force 1.0 on the padded-grid border, 3x3 VALID conv as
    #      9 accumulated matmuls on the extended buffer, * exp(scale*3) ------
    h2p = jnp.where(border_ref[...] != 0.0, 1.0, h2)
    hext_sc[:, ext_pad:ext_pad + tot] = h2p                     # lane-dense
    z = jnp.zeros((C, tot), jnp.float32)
    for t_i, d in enumerate(deltas):
        z = z + jnp.dot(w3_ref[t_i],
                        hext_sc[:, ext_pad + d:ext_pad + d + tot],
                        preferred_element_type=jnp.float32)
    z = (z + b3_ref[...]) * jnp.exp(sc_ref[...] * 3.0)

    # ---- affine coupling: out_b = (in_b + t) * sigmoid(log_s + 2) ----------
    log_s, t_shift = z[:chalf, :], z[chalf:, :]
    s_gate = jax.nn.sigmoid(log_s + 2.0)
    for s in range(n_tile):
        base = ext_pad + s * hwp_pad
        lo, hi = s * hwp_pad, (s + 1) * hwp_pad
        in_a = x_sc[:chalf, base:base + hwp_pad]                # zero dead lanes
        in_b = x_sc[chalf:, base:base + hwp_pad]
        out_ref[s, :chalf, :] = in_a.astype(out_ref.dtype)
        out_ref[s, chalf:, :] = ((in_b + t_shift[:, lo:hi]) *
                                 s_gate[:, lo:hi]).astype(out_ref.dtype)


# ---------------------------------------------------------------------------
# Wrapper (NCHW in, NCHW out; params in PyTorch layout)
# ---------------------------------------------------------------------------
@jax.jit
def affine_coupling_forward(x_nchw, params):
    """AffineCoupling.forward (affine=True).
    params: w1 (F,Cin,3,3), b1 (F,), w2 (F,F,1,1), b2 (F,), w3 (C,F,3,3),
            b3 (C,), scale (1,C,1,1)  -- PyTorch shapes."""
    w1, b1, w2, b2, w3, b3, scale = params
    N, C, H, W = x_nchw.shape
    chalf = C // 2
    F = w1.shape[0]
    hp, wp = H + 2, W + 2
    hwp = hp * wp
    hwp_pad = ((hwp + 127) // 128) * 128          # lane-dense per-sample slot
    ext_pad = max(128, ((wp + 2 + 127) // 128) * 128)  # lane-aligned extension

    # Fold samples onto the lane axis, but keep >= 2 grid steps when possible
    # so both v7x TensorCores get work on the "parallel" axis.
    n_tile = 1
    for cand in (8, 4, 2):
        if N % cand == 0 and N // cand >= 2:
            n_tile = cand
            break
    grid_n = N // n_tile
    tot = n_tile * hwp_pad
    ext_tot = tot + 2 * ext_pad

    # The only wrapper-side pad: the spatial zero pad of the padding=1 conv.
    x_sp = jnp.pad(x_nchw, ((0, 0), (0, 0), (1, 1), (1, 1))).reshape(N, C, hwp)

    # 1.0 on the border of each sample's (H+2, W+2) grid and on the dead
    # padding lanes, 0.0 in the interior (ZeroConv2d pads with ones).
    m = jnp.pad(jnp.zeros((H, W), jnp.float32), 1, constant_values=1.0)
    m = jnp.pad(m.reshape(hwp), (0, hwp_pad - hwp), constant_values=1.0)
    border = jnp.tile(m, (n_tile,)).reshape(1, tot)

    # Per-tap weight repacks for the channels-first flat-spatial matmuls.
    w1_k = jnp.transpose(w1, (2, 3, 0, 1)).reshape(9, F, chalf)
    b1_k = b1.reshape(F, 1)
    w2_k = w2.reshape(F, F)                      # (out, in)
    b2_k = b2.reshape(F, 1)
    w3_k = jnp.transpose(w3, (2, 3, 0, 1)).reshape(9, C, F)
    b3_k = b3.reshape(C, 1)
    sc_k = scale.reshape(C, 1)

    kernel = functools.partial(_affine_coupling_kernel, wp=wp, hwp=hwp,
                               hwp_pad=hwp_pad, ext_pad=ext_pad)
    out = pl.pallas_call(
        kernel,
        out_shape=jax.ShapeDtypeStruct((grid_n, n_tile, C, hwp_pad),
                                       x_nchw.dtype),
        grid_spec=pltpu.PrefetchScalarGridSpec(
            num_scalar_prefetch=0,
            grid=(grid_n,),
            in_specs=[
                pl.BlockSpec((n_tile, C, hwp), lambda g: (g, 0, 0)),
                pl.BlockSpec((1, tot), lambda g: (0, 0)),
                pl.BlockSpec((9, F, chalf), lambda g: (0, 0, 0)),
                pl.BlockSpec((F, 1), lambda g: (0, 0)),
                pl.BlockSpec((F, F), lambda g: (0, 0)),
                pl.BlockSpec((F, 1), lambda g: (0, 0)),
                pl.BlockSpec((9, C, F), lambda g: (0, 0, 0)),
                pl.BlockSpec((C, 1), lambda g: (0, 0)),
                pl.BlockSpec((C, 1), lambda g: (0, 0)),
            ],
            out_specs=pl.BlockSpec((None, n_tile, C, hwp_pad),
                                   lambda g: (g, 0, 0, 0)),
            scratch_shapes=[
                pltpu.VMEM((C, ext_tot), jnp.float32),   # extended in_a/in_b
                pltpu.VMEM((F, ext_tot), jnp.float32),   # extended ones-padded h2
            ],
        ),
        compiler_params=pltpu.CompilerParams(
            dimension_semantics=("parallel",),
        ),
    )(x_sp, border, w1_k, b1_k, w2_k, b2_k, w3_k, b3_k, sc_k)

    # Drop the per-sample lane padding and the padded-grid border.
    out = out.reshape(N, C, hwp_pad)[:, :, :hwp].reshape(N, C, hp, wp)
    return out[:, :, 1:H + 1, 1:W + 1]


# ---------------------------------------------------------------------------
# Pure-JAX reference (correctness check)
# ---------------------------------------------------------------------------
def reference_forward(x_nchw, params):
    w1, b1, w2, b2, w3, b3, scale = params
    C = x_nchw.shape[1]
    chalf = C // 2
    in_a, in_b = x_nchw[:, :chalf], x_nchw[:, chalf:]

    def conv(v, w, b, padding):
        out = jax.lax.conv_general_dilated(
            v, w, window_strides=(1, 1), padding=padding,
            dimension_numbers=("NCHW", "OIHW", "NCHW"),
            precision=jax.lax.Precision.HIGHEST)
        return out + b.reshape(1, -1, 1, 1)

    h1 = jax.nn.relu(conv(in_a, w1, b1, [(1, 1), (1, 1)]))
    h2 = jax.nn.relu(conv(h1, w2, b2, "VALID"))
    h2p = jnp.pad(h2, ((0, 0), (0, 0), (1, 1), (1, 1)), constant_values=1.0)
    z = conv(h2p, w3, b3, "VALID") * jnp.exp(scale * 3.0)
    log_s, t = z[:, :chalf], z[:, chalf:]
    s = jax.nn.sigmoid(log_s + 2.0)
    out_b = (in_b + t) * s
    return jnp.concatenate([in_a, out_b], axis=1)


# ---------------------------------------------------------------------------
# Main
# ---------------------------------------------------------------------------
if __name__ == "__main__":
    FILTER = 32                              # filter_size (small for the demo)
    key = jax.random.PRNGKey(0)
    kx, k1, k2, k3, k4, k5, kx2 = jax.random.split(key, 7)

    N, C, H, W = 2, 4, 16, 16                # in_channel = 4
    chalf = C // 2

    # net[0]/net[2] init matches the PyTorch module (N(0, 0.05), zero bias).
    w1 = 0.05 * jax.random.normal(k1, (FILTER, chalf, 3, 3), jnp.float32)
    b1 = jnp.zeros((FILTER,), jnp.float32)
    w2 = 0.05 * jax.random.normal(k2, (FILTER, FILTER, 1, 1), jnp.float32)
    b2 = jnp.zeros((FILTER,), jnp.float32)
    # ZeroConv2d is zero-init in the module; use small random values so the
    # tail conv / exp(scale*3) / sigmoid path is exercised, then also check
    # the faithful zero-init configuration.
    w3 = 0.05 * jax.random.normal(k3, (C, FILTER, 3, 3), jnp.float32)
    b3 = 0.05 * jax.random.normal(k4, (C,), jnp.float32)
    scale = 0.05 * jax.random.normal(k5, (1, C, 1, 1), jnp.float32)
    params = (w1, b1, w2, b2, w3, b3, scale)

    # Case 1: demo shape (N=2 -> 1 sample/step, 2 parallel grid steps).
    x = jax.random.normal(kx, (N, C, H, W), jnp.float32)
    out = jax.block_until_ready(affine_coupling_forward(x, params))
    ref = reference_forward(x, params)
    assert out.shape == ref.shape
    assert jnp.allclose(out, ref, atol=1e-3, rtol=1e-3), \
        "forward mismatch (random ZeroConv2d params)"

    # Case 2: faithful zero-initialised ZeroConv2d configuration.
    params0 = (w1, b1, w2, b2, jnp.zeros_like(w3), jnp.zeros_like(b3),
               jnp.zeros_like(scale))
    out0 = jax.block_until_ready(affine_coupling_forward(x, params0))
    ref0 = reference_forward(x, params0)
    assert jnp.allclose(out0, ref0, atol=1e-3, rtol=1e-3), \
        "forward mismatch (zero init)"

    # Case 3: exercise the batch-folding path (N=4 -> 2 samples per step).
    x4 = jax.random.normal(kx2, (4, C, H, W), jnp.float32)
    out4 = jax.block_until_ready(affine_coupling_forward(x4, params))
    ref4 = reference_forward(x4, params)
    assert jnp.allclose(out4, ref4, atol=1e-3, rtol=1e-3), \
        "forward mismatch (batch folding)"

    print("KERNEL_OK")
</pallas_src>

<mosaic_0001>
module attributes {stable_mosaic.version = 11 : i64} {
  func.func @_affine_coupling_kernel(%arg0: i32, %arg1: memref<1x4x324xf32, #tpu.memory_space<vmem>>, %arg2: memref<1x384xf32, #tpu.memory_space<vmem>>, %arg3: memref<9x32x2xf32, #tpu.memory_space<vmem>>, %arg4: memref<32x1xf32, #tpu.memory_space<vmem>>, %arg5: memref<32x32xf32, #tpu.memory_space<vmem>>, %arg6: memref<32x1xf32, #tpu.memory_space<vmem>>, %arg7: memref<9x4x32xf32, #tpu.memory_space<vmem>>, %arg8: memref<4x1xf32, #tpu.memory_space<vmem>>, %arg9: memref<4x1xf32, #tpu.memory_space<vmem>>, %arg10: memref<1x1x4x384xf32, #tpu.memory_space<vmem>>, %arg11: memref<4x640xf32, #tpu.memory_space<vmem>>, %arg12: memref<32x640xf32, #tpu.memory_space<vmem>>) attributes {dimension_semantics = [#tpu.dimension_semantics<parallel>], iteration_bounds = array<i64: 2>, scalar_prefetch = 0 : i64, scratch_operands = 2 : i64, tpu.core_type = #tpu.core_type<tc>, window_params = [{transform_indices = @transform_0, window_bounds = array<i64: 1, 4, 324>}, {pipeline_mode = #tpu.pipeline_mode<synchronous>, transform_indices = @transform_1, window_bounds = array<i64: 1, 384>}, {pipeline_mode = #tpu.pipeline_mode<synchronous>, transform_indices = @transform_2, window_bounds = array<i64: 9, 32, 2>}, {pipeline_mode = #tpu.pipeline_mode<synchronous>, transform_indices = @transform_3, window_bounds = array<i64: 32, 1>}, {pipeline_mode = #tpu.pipeline_mode<synchronous>, transform_indices = @transform_4, window_bounds = array<i64: 32, 32>}, {pipeline_mode = #tpu.pipeline_mode<synchronous>, transform_indices = @transform_5, window_bounds = array<i64: 32, 1>}, {pipeline_mode = #tpu.pipeline_mode<synchronous>, transform_indices = @transform_6, window_bounds = array<i64: 9, 4, 32>}, {pipeline_mode = #tpu.pipeline_mode<synchronous>, transform_indices = @transform_7, window_bounds = array<i64: 4, 1>}, {pipeline_mode = #tpu.pipeline_mode<synchronous>, transform_indices = @transform_8, window_bounds = array<i64: 4, 1>}, {transform_indices = @transform_9, window_bounds = array<i64: 1, 1, 4, 384>}]} {
    %c0_i32 = arith.constant 0 : i32
    %0 = arith.cmpi eq, %arg0, %c0_i32 : i32
    %1 = arith.extui %0 : i1 to i32
    %c0_i32_0 = arith.constant 0 : i32
    %2 = arith.cmpi ne, %1, %c0_i32_0 : i32
    scf.if %2 {
      %cst_131 = arith.constant 0.000000e+00 : f32
      %146 = vector.broadcast %cst_131 : f32 to vector<4x640xf32>
      %c0_132 = arith.constant 0 : index
      %c0_133 = arith.constant 0 : index
      %147 = vector.load %arg11[%c0_132, %c0_133] : memref<4x640xf32, #tpu.memory_space<vmem>>, vector<4x640xf32>
      tpu.vector_store %arg11[%c0_132, %c0_133], %146 {strides = array<i32>} : memref<4x640xf32, #tpu.memory_space<vmem>>, vector<4x640xf32>,
      %cst_134 = arith.constant 0.000000e+00 : f32
      %148 = vector.broadcast %cst_134 : f32 to vector<32x128xf32>
      %c0_135 = arith.constant 0 : index
      %c0_136 = arith.constant 0 : index
      %149 = vector.load %arg12[%c0_135, %c0_136] : memref<32x640xf32, #tpu.memory_space<vmem>>, vector<32x128xf32>
      tpu.vector_store %arg12[%c0_135, %c0_136], %148 {strides = array<i32>} : memref<32x640xf32, #tpu.memory_space<vmem>>, vector<32x128xf32>,
      %cst_137 = arith.constant 0.000000e+00 : f32
      %150 = vector.broadcast %cst_137 : f32 to vector<32x128xf32>
      %c0_138 = arith.constant 0 : index
      %c512 = arith.constant 512 : index
      %151 = vector.load %arg12[%c0_138, %c512] : memref<32x640xf32, #tpu.memory_space<vmem>>, vector<32x128xf32>
      tpu.vector_store %arg12[%c0_138, %c512], %150 {strides = array<i32>} : memref<32x640xf32, #tpu.memory_space<vmem>>, vector<32x128xf32>,
    } else {
    }
    %c0 = arith.constant 0 : index
    %c0_1 = arith.constant 0 : index
    %c0_2 = arith.constant 0 : index
    %3 = vector.load %arg1[%c0, %c0_1, %c0_2] : memref<1x4x324xf32, #tpu.memory_space<vmem>>, vector<1x4x324xf32>
    %4 = vector.shape_cast %3 : vector<1x4x324xf32> to vector<4x324xf32>
    %c0_3 = arith.constant 0 : index
    %c128 = arith.constant 128 : index
    %5 = vector.load %arg11[%c0_3, %c128] : memref<4x640xf32, #tpu.memory_space<vmem>>, vector<4x324xf32>
    tpu.vector_store %arg11[%c0_3, %c128], %4 {strides = array<i32>} : memref<4x640xf32, #tpu.memory_space<vmem>>, vector<4x324xf32>,
    %cst = arith.constant 0.000000e+00 : f32
    %6 = vector.broadcast %cst : f32 to vector<32x384xf32>
    %c0_4 = arith.constant 0 : index
    %c0_5 = arith.constant 0 : index
    %c0_6 = arith.constant 0 : index
    %7 = vector.load %arg3[%c0_4, %c0_5, %c0_6] : memref<9x32x2xf32, #tpu.memory_space<vmem>>, vector<1x32x2xf32>
    %8 = vector.shape_cast %7 : vector<1x32x2xf32> to vector<32x2xf32>
    %c0_7 = arith.constant 0 : index
    %c109 = arith.constant 109 : index
    %9 = vector.load %arg11[%c0_7, %c109] : memref<4x640xf32, #tpu.memory_space<vmem>>, vector<2x384xf32>
    %cst_8 = arith.constant dense<0.000000e+00> : vector<32x384xf32>
    %10 = tpu.matmul %8, %9, %cst_8 {dimension_numbers = #tpu.dot_dimension_numbers<[1], [0], [0], [1], [0, 0, 1, 1], [], []>} : vector<32x2xf32>, vector<2x384xf32>, vector<32x384xf32> -> vector<32x384xf32>
    %11 = arith.addf %6, %10 : vector<32x384xf32>
    %c1 = arith.constant 1 : index
    %c0_9 = arith.constant 0 : index
    %c0_10 = arith.constant 0 : index
    %12 = vector.load %arg3[%c1, %c0_9, %c0_10] : memref<9x32x2xf32, #tpu.memory_space<vmem>>, vector<1x32x2xf32>
    %13 = vector.shape_cast %12 : vector<1x32x2xf32> to vector<32x2xf32>
    %c0_11 = arith.constant 0 : index
    %c110 = arith.constant 110 : index
    %14 = vector.load %arg11[%c0_11, %c110] : memref<4x640xf32, #tpu.memory_space<vmem>>, vector<2x384xf32>
    %cst_12 = arith.constant dense<0.000000e+00> : vector<32x384xf32>
    %15 = tpu.matmul %13, %14, %cst_12 {dimension_numbers = #tpu.dot_dimension_numbers<[1], [0], [0], [1], [0, 0, 1, 1], [], []>} : vector<32x2xf32>, vector<2x384xf32>, vector<32x384xf32> -> vector<32x384xf32>
    %16 = arith.addf %11, %15 : vector<32x384xf32>
    %c2 = arith.constant 2 : index
    %c0_13 = arith.constant 0 : index
    %c0_14 = arith.constant 0 : index
    %17 = vector.load %arg3[%c2, %c0_13, %c0_14] : memref<9x32x2xf32, #tpu.memory_space<vmem>>, vector<1x32x2xf32>
    %18 = vector.shape_cast %17 : vector<1x32x2xf32> to vector<32x2xf32>
    %c0_15 = arith.constant 0 : index
    %c111 = arith.constant 111 : index
    %19 = vector.load %arg11[%c0_15, %c111] : memref<4x640xf32, #tpu.memory_space<vmem>>, vector<2x384xf32>
    %cst_16 = arith.constant dense<0.000000e+00> : vector<32x384xf32>
    %20 = tpu.matmul %18, %19, %cst_16 {dimension_numbers = #tpu.dot_dimension_numbers<[1], [0], [0], [1], [0, 0, 1, 1], [], []>} : vector<32x2xf32>, vector<2x384xf32>, vector<32x384xf32> -> vector<32x384xf32>
    %21 = arith.addf %16, %20 : vector<32x384xf32>
    %c3 = arith.constant 3 : index
    %c0_17 = arith.constant 0 : index
    %c0_18 = arith.constant 0 : index
    %22 = vector.load %arg3[%c3, %c0_17, %c0_18] : memref<9x32x2xf32, #tpu.memory_space<vmem>>, vector<1x32x2xf32>
    %23 = vector.shape_cast %22 : vector<1x32x2xf32> to vector<32x2xf32>
    %c0_19 = arith.constant 0 : index
    %c127 = arith.constant 127 : index
    %24 = vector.load %arg11[%c0_19, %c127] : memref<4x640xf32, #tpu.memory_space<vmem>>, vector<2x384xf32>
    %cst_20 = arith.constant dense<0.000000e+00> : vector<32x384xf32>
    %25 = tpu.matmul %23, %24, %cst_20 {dimension_numbers = #tpu.dot_dimension_numbers<[1], [0], [0], [1], [0, 0, 1, 1], [], []>} : vector<32x2xf32>, vector<2x384xf32>, vector<32x384xf32> -> vector<32x384xf32>
    %26 = arith.addf %21, %25 : vector<32x384xf32>
    %c4 = arith.constant 4 : index
    %c0_21 = arith.constant 0 : index
    %c0_22 = arith.constant 0 : index
    %27 = vector.load %arg3[%c4, %c0_21, %c0_22] : memref<9x32x2xf32, #tpu.memory_space<vmem>>, vector<1x32x2xf32>
    %28 = vector.shape_cast %27 : vector<1x32x2xf32> to vector<32x2xf32>
    %c0_23 = arith.constant 0 : index
    %c128_24 = arith.constant 128 : index
    %29 = vector.load %arg11[%c0_23, %c128_24] : memref<4x640xf32, #tpu.memory_space<vmem>>, vector<2x384xf32>
    %cst_25 = arith.constant dense<0.000000e+00> : vector<32x384xf32>
    %30 = tpu.matmul %28, %29, %cst_25 {dimension_numbers = #tpu.dot_dimension_numbers<[1], [0], [0], [1], [0, 0, 1, 1], [], []>} : vector<32x2xf32>, vector<2x384xf32>, vector<32x384xf32> -> vector<32x384xf32>
    %31 = arith.addf %26, %30 : vector<32x384xf32>
    %c5 = arith.constant 5 : index
    %c0_26 = arith.constant 0 : index
    %c0_27 = arith.constant 0 : index
    %32 = vector.load %arg3[%c5, %c0_26, %c0_27] : memref<9x32x2xf32, #tpu.memory_space<vmem>>, vector<1x32x2xf32>
    %33 = vector.shape_cast %32 : vector<1x32x2xf32> to vector<32x2xf32>
    %c0_28 = arith.constant 0 : index
    %c129 = arith.constant 129 : index
    %34 = vector.load %arg11[%c0_28, %c129] : memref<4x640xf32, #tpu.memory_space<vmem>>, vector<2x384xf32>
    %cst_29 = arith.constant dense<0.000000e+00> : vector<32x384xf32>
    %35 = tpu.matmul %33, %34, %cst_29 {dimension_numbers = #tpu.dot_dimension_numbers<[1], [0], [0], [1], [0, 0, 1, 1], [], []>} : vector<32x2xf32>, vector<2x384xf32>, vector<32x384xf32> -> vector<32x384xf32>
    %36 = arith.addf %31, %35 : vector<32x384xf32>
    %c6 = arith.constant 6 : index
    %c0_30 = arith.constant 0 : index
    %c0_31 = arith.constant 0 : index
    %37 = vector.load %arg3[%c6, %c0_30, %c0_31] : memref<9x32x2xf32, #tpu.memory_space<vmem>>, vector<1x32x2xf32>
    %38 = vector.shape_cast %37 : vector<1x32x2xf32> to vector<32x2xf32>
    %c0_32 = arith.constant 0 : index
    %c145 = arith.constant 145 : index
    %39 = vector.load %arg11[%c0_32, %c145] : memref<4x640xf32, #tpu.memory_space<vmem>>, vector<2x384xf32>
    %cst_33 = arith.constant dense<0.000000e+00> : vector<32x384xf32>
    %40 = tpu.matmul %38, %39, %cst_33 {dimension_numbers = #tpu.dot_dimension_numbers<[1], [0], [0], [1], [0, 0, 1, 1], [], []>} : vector<32x2xf32>, vector<2x384xf32>, vector<32x384xf32> -> vector<32x384xf32>
    %41 = arith.addf %36, %40 : vector<32x384xf32>
    %c7 = arith.constant 7 : index
    %c0_34 = arith.constant 0 : index
    %c0_35 = arith.constant 0 : index
    %42 = vector.load %arg3[%c7, %c0_34, %c0_35] : memref<9x32x2xf32, #tpu.memory_space<vmem>>, vector<1x32x2xf32>
    %43 = vector.shape_cast %42 : vector<1x32x2xf32> to vector<32x2xf32>
    %c0_36 = arith.constant 0 : index
    %c146 = arith.constant 146 : index
    %44 = vector.load %arg11[%c0_36, %c146] : memref<4x640xf32, #tpu.memory_space<vmem>>, vector<2x384xf32>
    %cst_37 = arith.constant dense<0.000000e+00> : vector<32x384xf32>
    %45 = tpu.matmul %43, %44, %cst_37 {dimension_numbers = #tpu.dot_dimension_numbers<[1], [0], [0], [1], [0, 0, 1, 1], [], []>} : vector<32x2xf32>, vector<2x384xf32>, vector<32x384xf32> -> vector<32x384xf32>
    %46 = arith.addf %41, %45 : vector<32x384xf32>
    %c8 = arith.constant 8 : index
    %c0_38 = arith.constant 0 : index
    %c0_39 = arith.constant 0 : index
    %47 = vector.load %arg3[%c8, %c0_38, %c0_39] : memref<9x32x2xf32, #tpu.memory_space<vmem>>, vector<1x32x2xf32>
    %48 = vector.shape_cast %47 : vector<1x32x2xf32> to vector<32x2xf32>
    %c0_40 = arith.constant 0 : index
    %c147 = arith.constant 147 : index
    %49 = vector.load %arg11[%c0_40, %c147] : memref<4x640xf32, #tpu.memory_space<vmem>>, vector<2x384xf32>
    %cst_41 = arith.constant dense<0.000000e+00> : vector<32x384xf32>
    %50 = tpu.matmul %48, %49, %cst_41 {dimension_numbers = #tpu.dot_dimension_numbers<[1], [0], [0], [1], [0, 0, 1, 1], [], []>} : vector<32x2xf32>, vector<2x384xf32>, vector<32x384xf32> -> vector<32x384xf32>
    %51 = arith.addf %46, %50 : vector<32x384xf32>
    %c0_42 = arith.constant 0 : index
    %c0_43 = arith.constant 0 : index
    %52 = vector.load %arg4[%c0_42, %c0_43] : memref<32x1xf32, #tpu.memory_space<vmem>>, vector<32x1xf32>
    %53 = vector.broadcast %52 : vector<32x1xf32> to vector<32x384xf32>
    %54 = arith.addf %51, %53 : vector<32x384xf32>
    %cst_44 = arith.constant 0.000000e+00 : f32
    %55 = vector.broadcast %cst_44 : f32 to vector<32x384xf32>
    %56 = arith.maximumf %54, %55 : vector<32x384xf32>
    %c0_45 = arith.constant 0 : index
    %c0_46 = arith.constant 0 : index
    %57 = vector.load %arg5[%c0_45, %c0_46] : memref<32x32xf32, #tpu.memory_space<vmem>>, vector<32x32xf32>
    %cst_47 = arith.constant dense<0.000000e+00> : vector<32x384xf32>
    %58 = tpu.matmul %57, %56, %cst_47 {dimension_numbers = #tpu.dot_dimension_numbers<[1], [0], [0], [1], [0, 0, 1, 1], [], []>} : vector<32x32xf32>, vector<32x384xf32>, vector<32x384xf32> -> vector<32x384xf32>
    %c0_48 = arith.constant 0 : index
    %c0_49 = arith.constant 0 : index
    %59 = vector.load %arg6[%c0_48, %c0_49] : memref<32x1xf32, #tpu.memory_space<vmem>>, vector<32x1xf32>
    %60 = vector.broadcast %59 : vector<32x1xf32> to vector<32x384xf32>
    %61 = arith.addf %58, %60 : vector<32x384xf32>
    %cst_50 = arith.constant 0.000000e+00 : f32
    %62 = vector.broadcast %cst_50 : f32 to vector<32x384xf32>
    %63 = arith.maximumf %61, %62 : vector<32x384xf32>
    %c0_51 = arith.constant 0 : index
    %c0_52 = arith.constant 0 : index
    %64 = vector.load %arg2[%c0_51, %c0_52] : memref<1x384xf32, #tpu.memory_space<vmem>>, vector<1x384xf32>
    %cst_53 = arith.constant 0.000000e+00 : f32
    %65 = vector.broadcast %cst_53 : f32 to vector<1x384xf32>
    %66 = arith.cmpf one, %64, %65 : vector<1x384xf32>
    %cst_54 = arith.constant 1.000000e+00 : f32
    %67 = vector.shape_cast %66 : vector<1x384xi1> to vector<1x384xi1>
    %68 = vector.broadcast %67 : vector<1x384xi1> to vector<32x384xi1>
    %69 = vector.broadcast %cst_54 : f32 to vector<32x384xf32>
    %70 = arith.select %68, %69, %63 : vector<32x384xi1>, vector<32x384xf32>
    %c0_55 = arith.constant 0 : index
    %c128_56 = arith.constant 128 : index
    %71 = vector.load %arg12[%c0_55, %c128_56] : memref<32x640xf32, #tpu.memory_space<vmem>>, vector<32x384xf32>
    tpu.vector_store %arg12[%c0_55, %c128_56], %70 {strides = array<i32>} : memref<32x640xf32, #tpu.memory_space<vmem>>, vector<32x384xf32>,
    %cst_57 = arith.constant 0.000000e+00 : f32
    %72 = vector.broadcast %cst_57 : f32 to vector<4x384xf32>
    %c0_58 = arith.constant 0 : index
    %c0_59 = arith.constant 0 : index
    %c0_60 = arith.constant 0 : index
    %73 = vector.load %arg7[%c0_58, %c0_59, %c0_60] : memref<9x4x32xf32, #tpu.memory_space<vmem>>, vector<1x4x32xf32>
    %74 = vector.shape_cast %73 : vector<1x4x32xf32> to vector<4x32xf32>
    %c0_61 = arith.constant 0 : index
    %c109_62 = arith.constant 109 : index
    %75 = vector.load %arg12[%c0_61, %c109_62] : memref<32x640xf32, #tpu.memory_space<vmem>>, vector<32x384xf32>
    %cst_63 = arith.constant dense<0.000000e+00> : vector<4x384xf32>
    %76 = tpu.matmul %74, %75, %cst_63 {dimension_numbers = #tpu.dot_dimension_numbers<[1], [0], [0], [1], [0, 0, 1, 1], [], []>} : vector<4x32xf32>, vector<32x384xf32>, vector<4x384xf32> -> vector<4x384xf32>
    %77 = arith.addf %72, %76 : vector<4x384xf32>
    %c1_64 = arith.constant 1 : index
    %c0_65 = arith.constant 0 : index
    %c0_66 = arith.constant 0 : index
    %78 = vector.load %arg7[%c1_64, %c0_65, %c0_66] : memref<9x4x32xf32, #tpu.memory_space<vmem>>, vector<1x4x32xf32>
    %79 = vector.shape_cast %78 : vector<1x4x32xf32> to vector<4x32xf32>
    %c0_67 = arith.constant 0 : index
    %c110_68 = arith.constant 110 : index
    %80 = vector.load %arg12[%c0_67, %c110_68] : memref<32x640xf32, #tpu.memory_space<vmem>>, vector<32x384xf32>
    %cst_69 = arith.constant dense<0.000000e+00> : vector<4x384xf32>
    %81 = tpu.matmul %79, %80, %cst_69 {dimension_numbers = #tpu.dot_dimension_numbers<[1], [0], [0], [1], [0, 0, 1, 1], [], []>} : vector<4x32xf32>, vector<32x384xf32>, vector<4x384xf32> -> vector<4x384xf32>
    %82 = arith.addf %77, %81 : vector<4x384xf32>
    %c2_70 = arith.constant 2 : index
    %c0_71 = arith.constant 0 : index
    %c0_72 = arith.constant 0 : index
    %83 = vector.load %arg7[%c2_70, %c0_71, %c0_72] : memref<9x4x32xf32, #tpu.memory_space<vmem>>, vector<1x4x32xf32>
    %84 = vector.shape_cast %83 : vector<1x4x32xf32> to vector<4x32xf32>
    %c0_73 = arith.constant 0 : index
    %c111_74 = arith.constant 111 : index
    %85 = vector.load %arg12[%c0_73, %c111_74] : memref<32x640xf32, #tpu.memory_space<vmem>>, vector<32x384xf32>
    %cst_75 = arith.constant dense<0.000000e+00> : vector<4x384xf32>
    %86 = tpu.matmul %84, %85, %cst_75 {dimension_numbers = #tpu.dot_dimension_numbers<[1], [0], [0], [1], [0, 0, 1, 1], [], []>} : vector<4x32xf32>, vector<32x384xf32>, vector<4x384xf32> -> vector<4x384xf32>
    %87 = arith.addf %82, %86 : vector<4x384xf32>
    %c3_76 = arith.constant 3 : index
    %c0_77 = arith.constant 0 : index
    %c0_78 = arith.constant 0 : index
    %88 = vector.load %arg7[%c3_76, %c0_77, %c0_78] : memref<9x4x32xf32, #tpu.memory_space<vmem>>, vector<1x4x32xf32>
    %89 = vector.shape_cast %88 : vector<1x4x32xf32> to vector<4x32xf32>
    %c0_79 = arith.constant 0 : index
    %c127_80 = arith.constant 127 : index
    %90 = vector.load %arg12[%c0_79, %c127_80] : memref<32x640xf32, #tpu.memory_space<vmem>>, vector<32x384xf32>
    %cst_81 = arith.constant dense<0.000000e+00> : vector<4x384xf32>
    %91 = tpu.matmul %89, %90, %cst_81 {dimension_numbers = #tpu.dot_dimension_numbers<[1], [0], [0], [1], [0, 0, 1, 1], [], []>} : vector<4x32xf32>, vector<32x384xf32>, vector<4x384xf32> -> vector<4x384xf32>
    %92 = arith.addf %87, %91 : vector<4x384xf32>
    %c4_82 = arith.constant 4 : index
    %c0_83 = arith.constant 0 : index
    %c0_84 = arith.constant 0 : index
    %93 = vector.load %arg7[%c4_82, %c0_83, %c0_84] : memref<9x4x32xf32, #tpu.memory_space<vmem>>, vector<1x4x32xf32>
    %94 = vector.shape_cast %93 : vector<1x4x32xf32> to vector<4x32xf32>
    %c0_85 = arith.constant 0 : index
    %c128_86 = arith.constant 128 : index
    %95 = vector.load %arg12[%c0_85, %c128_86] : memref<32x640xf32, #tpu.memory_space<vmem>>, vector<32x384xf32>
    %cst_87 = arith.constant dense<0.000000e+00> : vector<4x384xf32>
    %96 = tpu.matmul %94, %95, %cst_87 {dimension_numbers = #tpu.dot_dimension_numbers<[1], [0], [0], [1], [0, 0, 1, 1], [], []>} : vector<4x32xf32>, vector<32x384xf32>, vector<4x384xf32> -> vector<4x384xf32>
    %97 = arith.addf %92, %96 : vector<4x384xf32>
    %c5_88 = arith.constant 5 : index
    %c0_89 = arith.constant 0 : index
    %c0_90 = arith.constant 0 : index
    %98 = vector.load %arg7[%c5_88, %c0_89, %c0_90] : memref<9x4x32xf32, #tpu.memory_space<vmem>>, vector<1x4x32xf32>
    %99 = vector.shape_cast %98 : vector<1x4x32xf32> to vector<4x32xf32>
    %c0_91 = arith.constant 0 : index
    %c129_92 = arith.constant 129 : index
    %100 = vector.load %arg12[%c0_91, %c129_92] : memref<32x640xf32, #tpu.memory_space<vmem>>, vector<32x384xf32>
    %cst_93 = arith.constant dense<0.000000e+00> : vector<4x384xf32>
    %101 = tpu.matmul %99, %100, %cst_93 {dimension_numbers = #tpu.dot_dimension_numbers<[1], [0], [0], [1], [0, 0, 1, 1], [], []>} : vector<4x32xf32>, vector<32x384xf32>, vector<4x384xf32> -> vector<4x384xf32>
    %102 = arith.addf %97, %101 : vector<4x384xf32>
    %c6_94 = arith.constant 6 : index
    %c0_95 = arith.constant 0 : index
    %c0_96 = arith.constant 0 : index
    %103 = vector.load %arg7[%c6_94, %c0_95, %c0_96] : memref<9x4x32xf32, #tpu.memory_space<vmem>>, vector<1x4x32xf32>
    %104 = vector.shape_cast %103 : vector<1x4x32xf32> to vector<4x32xf32>
    %c0_97 = arith.constant 0 : index
    %c145_98 = arith.constant 145 : index
    %105 = vector.load %arg12[%c0_97, %c145_98] : memref<32x640xf32, #tpu.memory_space<vmem>>, vector<32x384xf32>
    %cst_99 = arith.constant dense<0.000000e+00> : vector<4x384xf32>
    %106 = tpu.matmul %104, %105, %cst_99 {dimension_numbers = #tpu.dot_dimension_numbers<[1], [0], [0], [1], [0, 0, 1, 1], [], []>} : vector<4x32xf32>, vector<32x384xf32>, vector<4x384xf32> -> vector<4x384xf32>
    %107 = arith.addf %102, %106 : vector<4x384xf32>
    %c7_100 = arith.constant 7 : index
    %c0_101 = arith.constant 0 : index
    %c0_102 = arith.constant 0 : index
    %108 = vector.load %arg7[%c7_100, %c0_101, %c0_102] : memref<9x4x32xf32, #tpu.memory_space<vmem>>, vector<1x4x32xf32>
    %109 = vector.shape_cast %108 : vector<1x4x32xf32> to vector<4x32xf32>
    %c0_103 = arith.constant 0 : index
    %c146_104 = arith.constant 146 : index
    %110 = vector.load %arg12[%c0_103, %c146_104] : memref<32x640xf32, #tpu.memory_space<vmem>>, vector<32x384xf32>
    %cst_105 = arith.constant dense<0.000000e+00> : vector<4x384xf32>
    %111 = tpu.matmul %109, %110, %cst_105 {dimension_numbers = #tpu.dot_dimension_numbers<[1], [0], [0], [1], [0, 0, 1, 1], [], []>} : vector<4x32xf32>, vector<32x384xf32>, vector<4x384xf32> -> vector<4x384xf32>
    %112 = arith.addf %107, %111 : vector<4x384xf32>
    %c8_106 = arith.constant 8 : index
    %c0_107 = arith.constant 0 : index
    %c0_108 = arith.constant 0 : index
    %113 = vector.load %arg7[%c8_106, %c0_107, %c0_108] : memref<9x4x32xf32, #tpu.memory_space<vmem>>, vector<1x4x32xf32>
    %114 = vector.shape_cast %113 : vector<1x4x32xf32> to vector<4x32xf32>
    %c0_109 = arith.constant 0 : index
    %c147_110 = arith.constant 147 : index
    %115 = vector.load %arg12[%c0_109, %c147_110] : memref<32x640xf32, #tpu.memory_space<vmem>>, vector<32x384xf32>
    %cst_111 = arith.constant dense<0.000000e+00> : vector<4x384xf32>
    %116 = tpu.matmul %114, %115, %cst_111 {dimension_numbers = #tpu.dot_dimension_numbers<[1], [0], [0], [1], [0, 0, 1, 1], [], []>} : vector<4x32xf32>, vector<32x384xf32>, vector<4x384xf32> -> vector<4x384xf32>
    %117 = arith.addf %112, %116 : vector<4x384xf32>
    %c0_112 = arith.constant 0 : index
    %c0_113 = arith.constant 0 : index
    %118 = vector.load %arg8[%c0_112, %c0_113] : memref<4x1xf32, #tpu.memory_space<vmem>>, vector<4x1xf32>
    %119 = vector.broadcast %118 : vector<4x1xf32> to vector<4x384xf32>
    %120 = arith.addf %117, %119 : vector<4x384xf32>
    %c0_114 = arith.constant 0 : index
    %c0_115 = arith.constant 0 : index
    %121 = vector.load %arg9[%c0_114, %c0_115] : memref<4x1xf32, #tpu.memory_space<vmem>>, vector<4x1xf32>
    %cst_116 = arith.constant 3.000000e+00 : f32
    %122 = vector.broadcast %cst_116 : f32 to vector<4x1xf32>
    %123 = arith.mulf %121, %122 : vector<4x1xf32>
    %124 = math.exp %123 : vector<4x1xf32>
    %125 = vector.broadcast %124 : vector<4x1xf32> to vector<4x384xf32>
    %126 = arith.mulf %120, %125 : vector<4x384xf32>
    %127 = vector.extract_strided_slice %126 {offsets = [0, 0], sizes = [2, 384], strides = [1, 1]} : vector<4x384xf32> to vector<2x384xf32>
    %128 = vector.extract_strided_slice %126 {offsets = [2, 0], sizes = [2, 384], strides = [1, 1]} : vector<4x384xf32> to vector<2x384xf32>
    %cst_117 = arith.constant 2.000000e+00 : f32
    %129 = vector.broadcast %cst_117 : f32 to vector<2x384xf32>
    %130 = arith.addf %127, %129 : vector<2x384xf32>
    %131 = arith.negf %130 : vector<2x384xf32>
    %132 = math.exp %131 : vector<2x384xf32>
    %cst_118 = arith.constant 1.000000e+00 : f32
    %133 = vector.broadcast %cst_118 : f32 to vector<2x384xf32>
    %134 = arith.addf %133, %132 : vector<2x384xf32>
    %135 = arith.divf %133, %134 : vector<2x384xf32>
    %c0_119 = arith.constant 0 : index
    %c128_120 = arith.constant 128 : index
    %136 = vector.load %arg11[%c0_119, %c128_120] : memref<4x640xf32, #tpu.memory_space<vmem>>, vector<2x384xf32>
    %c2_121 = arith.constant 2 : index
    %c128_122 = arith.constant 128 : index
    %137 = vector.load %arg11[%c2_121, %c128_122] : memref<4x640xf32, #tpu.memory_space<vmem>>, vector<2x384xf32>
    %c0_123 = arith.constant 0 : index
    %c0_124 = arith.constant 0 : index
    %c0_125 = arith.constant 0 : index
    %c0_126 = arith.constant 0 : index
    %138 = vector.load %arg10[%c0_123, %c0_124, %c0_125, %c0_126] : memref<1x1x4x384xf32, #tpu.memory_space<vmem>>, vector<1x1x2x384xf32>
    %139 = vector.shape_cast %138 : vector<1x1x2x384xf32> to vector<2x384xf32>
    %140 = vector.shape_cast %136 : vector<2x384xf32> to vector<1x1x2x384xf32>
    tpu.vector_store %arg10[%c0_123, %c0_124, %c0_125, %c0_126], %140 {strides = array<i32>} : memref<1x1x4x384xf32, #tpu.memory_space<vmem>>, vector<1x1x2x384xf32>,
    %141 = arith.addf %137, %128 : vector<2x384xf32>
    %142 = arith.mulf %141, %135 : vector<2x384xf32>
    %c0_127 = arith.constant 0 : index
    %c0_128 = arith.constant 0 : index
    %c2_129 = arith.constant 2 : index
    %c0_130 = arith.constant 0 : index
    %143 = vector.load %arg10[%c0_127, %c0_128, %c2_129, %c0_130] : memref<1x1x4x384xf32, #tpu.memory_space<vmem>>, vector<1x1x2x384xf32>
    %144 = vector.shape_cast %143 : vector<1x1x2x384xf32> to vector<2x384xf32>
    %145 = vector.shape_cast %142 : vector<2x384xf32> to vector<1x1x2x384xf32>
    tpu.vector_store %arg10[%c0_127, %c0_128, %c2_129, %c0_130], %145 {strides = array<i32>} : memref<1x1x4x384xf32, #tpu.memory_space<vmem>>, vector<1x1x2x384xf32>,
    return
  }
  func.func @transform_0(%arg0: i32) -> (i32, i32, i32) {
    %c0_i32 = arith.constant 0 : i32
    %c0_i32_0 = arith.constant 0 : i32
    %c0_i32_1 = arith.constant 0 : i32
    return %arg0, %c0_i32, %c0_i32_0 : i32, i32, i32
  }
  func.func @transform_1(%arg0: i32) -> (i32, i32) {
    %c0_i32 = arith.constant 0 : i32
    %c0_i32_0 = arith.constant 0 : i32
    %c0_i32_1 = arith.constant 0 : i32
    return %c0_i32, %c0_i32_0 : i32, i32
  }
  func.func @transform_2(%arg0: i32) -> (i32, i32, i32) {
    %c0_i32 = arith.constant 0 : i32
    %c0_i32_0 = arith.constant 0 : i32
    %c0_i32_1 = arith.constant 0 : i32
    %c0_i32_2 = arith.constant 0 : i32
    return %c0_i32, %c0_i32_0, %c0_i32_1 : i32, i32, i32
  }
  func.func @transform_3(%arg0: i32) -> (i32, i32) {
    %c0_i32 = arith.constant 0 : i32
    %c0_i32_0 = arith.constant 0 : i32
    %c0_i32_1 = arith.constant 0 : i32
    return %c0_i32, %c0_i32_0 : i32, i32
  }
  func.func @transform_4(%arg0: i32) -> (i32, i32) {
    %c0_i32 = arith.constant 0 : i32
    %c0_i32_0 = arith.constant 0 : i32
    %c0_i32_1 = arith.constant 0 : i32
    return %c0_i32, %c0_i32_0 : i32, i32
  }
  func.func @transform_5(%arg0: i32) -> (i32, i32) {
    %c0_i32 = arith.constant 0 : i32
    %c0_i32_0 = arith.constant 0 : i32
    %c0_i32_1 = arith.constant 0 : i32
    return %c0_i32, %c0_i32_0 : i32, i32
  }
  func.func @transform_6(%arg0: i32) -> (i32, i32, i32) {
    %c0_i32 = arith.constant 0 : i32
    %c0_i32_0 = arith.constant 0 : i32
    %c0_i32_1 = arith.constant 0 : i32
    %c0_i32_2 = arith.constant 0 : i32
    return %c0_i32, %c0_i32_0, %c0_i32_1 : i32, i32, i32
  }
  func.func @transform_7(%arg0: i32) -> (i32, i32) {
    %c0_i32 = arith.constant 0 : i32
    %c0_i32_0 = arith.constant 0 : i32
    %c0_i32_1 = arith.constant 0 : i32
    return %c0_i32, %c0_i32_0 : i32, i32
  }
  func.func @transform_8(%arg0: i32) -> (i32, i32) {
    %c0_i32 = arith.constant 0 : i32
    %c0_i32_0 = arith.constant 0 : i32
    %c0_i32_1 = arith.constant 0 : i32
    return %c0_i32, %c0_i32_0 : i32, i32
  }
  func.func @transform_9(%arg0: i32) -> (i32, i32, i32, i32) {
    %c0_i32 = arith.constant 0 : i32
    %c0_i32_0 = arith.constant 0 : i32
    %c0_i32_1 = arith.constant 0 : i32
    %c0_i32_2 = arith.constant 0 : i32
    return %arg0, %c0_i32, %c0_i32_0, %c0_i32_1 : i32, i32, i32, i32
  }
}

</mosaic_0001>

<llo_original>
// kernel: tile.1
$region0: #{tile.1}
  #allocation0 [shape = 's32[1]{0}', space=sflag, size = 0x4, scoped, tag = 'scoped memory for tile.1']
  %s0 = inlined_call_operand.vmem [shape: f32[384], index: 0, kind: input, shape index: {}]
  %s1 = inlined_call_operand.vmem [shape: f32[1,384], index: 1, kind: output, shape index: {}]
  // Predicated region
  $region2: #{tile.1} parent=0 // pred_check
    _
  $region3: #{tile.1} parent=0 // pred_check_branch
    %3 = sbr.rel (0) target = $region5
  $region4: #{tile.1} parent=0 // pred_region
    _
  $region5: #{tile.1} parent=0 // pred_fallthru
    _
  %v4 = vld [vmem:[%s0] ss:$0 sm:$0xff]
  %5 = vst [vmem:[%s1] sm:$0x1] %v4
  %s6 = scalar_lea.vmem %s0, 1
  %v7 = vld [vmem:[%s6] ss:$0 sm:$0xff]
  %s8 = scalar_lea.vmem %s1, 1
  %9 = vst [vmem:[%s8] sm:$0x1] %v7
  %s10 = scalar_lea.vmem %s0, 2
  %v11 = vld [vmem:[%s10] ss:$0 sm:$0xff]
  %s12 = scalar_lea.vmem %s1, 2
  %13 = vst [vmem:[%s12] sm:$0x1] %v11

// kernel: affine_coupling_forward.1
$region0: #{affine_coupling_forward.1}
  #allocation0 [shape = 'u32[]', space=smem, size = 0x4, offset = 0x4, fixed_abs, tag = 'smem constant byte address 0x4 - core index']
  #allocation1 [shape = 'u32[72,128]{1,0:T(1,128)}', space=vmem, size = 0x9000, scoped, tag = 'internal scratch']
  #allocation2 [shape = 'f32[4,640]{1,0:T(4,128)}', space=vmem, size = 0x2800, scoped, tag = 'scratch operand']
  #allocation3 [shape = 'f32[32,640]{1,0:T(8,128)}', space=vmem, size = 0x14000, scoped, tag = 'scratch operand']
  %s0 = inlined_call_operand.vmem [shape: f32[2,4,324], index: 0, kind: input, shape index: {}]
  %s1 = inlined_call_operand.vmem [shape: f32[1,384], index: 1, kind: input, shape index: {}]
  %s2 = inlined_call_operand.vmem [shape: f32[9,32,2], index: 2, kind: input, shape index: {}]
  %s3 = inlined_call_operand.vmem [shape: f32[32,1], index: 3, kind: input, shape index: {}]
  %s4 = inlined_call_operand.vmem [shape: f32[32,32], index: 4, kind: input, shape index: {}]
  %s5 = inlined_call_operand.vmem [shape: f32[32,1], index: 5, kind: input, shape index: {}]
  %s6 = inlined_call_operand.vmem [shape: f32[9,4,32], index: 6, kind: input, shape index: {}]
  %s7 = inlined_call_operand.vmem [shape: f32[4,1], index: 7, kind: input, shape index: {}]
  %s8 = inlined_call_operand.vmem [shape: f32[4,1], index: 8, kind: input, shape index: {}]
  %s9 = inlined_call_operand.vmem [shape: f32[2,1,4,384], index: 9, kind: output, shape index: {}]
  %s10 = sld [smem:[#allocation0]]
  $region73: #{affine_coupling_forward.1} parent=0
    _
  %s12 = ssub.s32 1, %s10
  %s13 = scalar_select 0, %s12, %s10
  loop: start=0, step=1, limit=4
  $region2: #{affine_coupling_forward.1} parent=0 // loop_pre_header
    _
  $region3: #{affine_coupling_forward.1} parent=0 // loop_header
    %s15 = sphi 0, %s19
    %p16 = scmp.ge.s32.totalorder %s15, 4
    %s25 = sphi 0, %s27
    %s28 = sphi 0, %s25
    %s29 = sphi 0, %s28
    %s45 = sphi 0, %s29
    %s49 = sphi 0, %s49
    %s51 = sphi 0, %s49
    %s52 = sphi 0, %s51
    %s66 = sphi 0, %s52
    %s70 = sphi 0, %s70
    %s72 = sphi 0, %s70
    %s73 = sphi 0, %s72
    %s87 = sphi 0, %s73
    %s91 = sphi 0, %s91
    %s93 = sphi 0, %s91
    %s94 = sphi 0, %s93
    %s108 = sphi 0, %s94
    %s112 = sphi 0, %s112
    %s114 = sphi 0, %s112
    %s115 = sphi 0, %s114
    %s129 = sphi 0, %s115
    %s133 = sphi 0, %s133
    %s135 = sphi 0, %s133
    %s136 = sphi 0, %s135
    %s150 = sphi 0, %s136
    %s154 = sphi 0, %s154
    %s156 = sphi 0, %s154
    %s157 = sphi 0, %s156
    %s171 = sphi 0, %s157
    %s175 = sphi 0, %s175
    %s177 = sphi 0, %s175
    %s178 = sphi 0, %s177
    %s192 = sphi 0, %s178
    %s196 = sphi 0, %s196
    %s198 = sphi 0, %s196
    %s199 = sphi 0, %s198
    %s213 = sphi 0, %s199
    %s219 = sphi 0, %s221
    %s222 = sphi 0, %s219
    %s223 = sphi 0, %s222
    %s239 = sphi 0, %s223
  $region4: #{affine_coupling_forward.1} parent=0 // loop_header_branch
    %18 = sbr.rel (%p16) target = $region8
  $region5: #{affine_coupling_forward.1} parent=0 // loop_body
    %s20 = ssub.s32 %s15, 1
    %s21 = ssub.s32 %s15, 2
    %s22 = sadd.s32 %s15, 1
    %s23 = ssub.s32 %s15, %s22
    %p24 = scmp.eq.s32.totalorder %s23, 0
    %s26 = sadd.s32 %s25, 1
    %s27 = scalar_select %p24, %s25, %s26
    %p30 = pneg %p24
    %p31 = scmp.eq.s32.totalorder %s15, 1
    %p32 = por %p30, %p31
    %p33 = scmp.ne.s32.totalorder %s25, %s28
    %p34 = scmp.eq.s32.totalorder %s15, 0
    %p35 = por %p33, %p34
    %p36 = scmp.ne.s32.totalorder %s25, %s28
    %p37 = scmp.eq.s32.totalorder %s20, 1
    %p38 = por %p36, %p37
    %p39 = scmp.ne.s32.totalorder %s28, %s29
    %p40 = scmp.eq.s32.totalorder %s20, 0
    %p41 = por %p39, %p40
    %p42 = scmp.ne.s32.totalorder %s28, %s29
    %p43 = scmp.eq.s32.totalorder %s21, 1
    %p44 = por %p42, %p43
    %p46 = scmp.ne.s32.totalorder %s29, %s45
    %p47 = scmp.eq.s32.totalorder %s21, 0
    %p48 = por %p46, %p47
    %s50 = sadd.s32 %s49, 1
    %p53 = scmp.eq.s32.totalorder %s15, 1
    %p54 = scmp.ne.s32.totalorder %s49, %s51
    %p55 = scmp.eq.s32.totalorder %s15, 0
    %p56 = por %p54, %p55
    %p57 = scmp.ne.s32.totalorder %s49, %s51
    %p58 = scmp.eq.s32.totalorder %s20, 1
    %p59 = por %p57, %p58
    %p60 = scmp.ne.s32.totalorder %s51, %s52
    %p61 = scmp.eq.s32.totalorder %s20, 0
    %p62 = por %p60, %p61
    %p63 = scmp.ne.s32.totalorder %s51, %s52
    %p64 = scmp.eq.s32.totalorder %s21, 1
    %p65 = por %p63, %p64
    %p67 = scmp.ne.s32.totalorder %s52, %s66
    %p68 = scmp.eq.s32.totalorder %s21, 0
    %p69 = por %p67, %p68
    %s71 = sadd.s32 %s70, 1
    %p74 = scmp.eq.s32.totalorder %s15, 1
    %p75 = scmp.ne.s32.totalorder %s70, %s72
    %p76 = scmp.eq.s32.totalorder %s15, 0
    %p77 = por %p75, %p76
    %p78 = scmp.ne.s32.totalorder %s70, %s72
    %p79 = scmp.eq.s32.totalorder %s20, 1
    %p80 = por %p78, %p79
    %p81 = scmp.ne.s32.totalorder %s72, %s73
    %p82 = scmp.eq.s32.totalorder %s20, 0
    %p83 = por %p81, %p82
    %p84 = scmp.ne.s32.totalorder %s72, %s73
    %p85 = scmp.eq.s32.totalorder %s21, 1
    %p86 = por %p84, %p85
    %p88 = scmp.ne.s32.totalorder %s73, %s87
    %p89 = scmp.eq.s32.totalorder %s21, 0
    %p90 = por %p88, %p89
    %s92 = sadd.s32 %s91, 1
    %p95 = scmp.eq.s32.totalorder %s15, 1
    %p96 = scmp.ne.s32.totalorder %s91, %s93
    %p97 = scmp.eq.s32.totalorder %s15, 0
    %p98 = por %p96, %p97
    %p99 = scmp.ne.s32.totalorder %s91, %s93
    %p100 = scmp.eq.s32.totalorder %s20, 1
    %p101 = por %p99, %p100
    %p102 = scmp.ne.s32.totalorder %s93, %s94
    %p103 = scmp.eq.s32.totalorder %s20, 0
    %p104 = por %p102, %p103
    %p105 = scmp.ne.s32.totalorder %s93, %s94
    %p106 = scmp.eq.s32.totalorder %s21, 1
    %p107 = por %p105, %p106
    %p109 = scmp.ne.s32.totalorder %s94, %s108
    %p110 = scmp.eq.s32.totalorder %s21, 0
    %p111 = por %p109, %p110
    %s113 = sadd.s32 %s112, 1
    %p116 = scmp.eq.s32.totalorder %s15, 1
    %p117 = scmp.ne.s32.totalorder %s112, %s114
    %p118 = scmp.eq.s32.totalorder %s15, 0
    %p119 = por %p117, %p118
    %p120 = scmp.ne.s32.totalorder %s112, %s114
    %p121 = scmp.eq.s32.totalorder %s20, 1
    %p122 = por %p120, %p121
    %p123 = scmp.ne.s32.totalorder %s114, %s115
    %p124 = scmp.eq.s32.totalorder %s20, 0
    %p125 = por %p123, %p124
    %p126 = scmp.ne.s32.totalorder %s114, %s115
    %p127 = scmp.eq.s32.totalorder %s21, 1
    %p128 = por %p126, %p127
    %p130 = scmp.ne.s32.totalorder %s115, %s129
    %p131 = scmp.eq.s32.totalorder %s21, 0
    %p132 = por %p130, %p131
    %s134 = sadd.s32 %s133, 1
    %p137 = scmp.eq.s32.totalorder %s15, 1
    %p138 = scmp.ne.s32.totalorder %s133, %s135
    %p139 = scmp.eq.s32.totalorder %s15, 0
    %p140 = por %p138, %p139
    %p141 = scmp.ne.s32.totalorder %s133, %s135
    %p142 = scmp.eq.s32.totalorder %s20, 1
    %p143 = por %p141, %p142
    %p144 = scmp.ne.s32.totalorder %s135, %s136
    %p145 = scmp.eq.s32.totalorder %s20, 0
    %p146 = por %p144, %p145
    %p147 = scmp.ne.s32.totalorder %s135, %s136
    %p148 = scmp.eq.s32.totalorder %s21, 1
    %p149 = por %p147, %p148
    %p151 = scmp.ne.s32.totalorder %s136, %s150
    %p152 = scmp.eq.s32.totalorder %s21, 0
    %p153 = por %p151, %p152
    %s155 = sadd.s32 %s154, 1
    %p158 = scmp.eq.s32.totalorder %s15, 1
    %p159 = scmp.ne.s32.totalorder %s154, %s156
    %p160 = scmp.eq.s32.totalorder %s15, 0
    %p161 = por %p159, %p160
    %p162 = scmp.ne.s32.totalorder %s154, %s156
    %p163 = scmp.eq.s32.totalorder %s20, 1
    %p164 = por %p162, %p163
    %p165 = scmp.ne.s32.totalorder %s156, %s157
    %p166 = scmp.eq.s32.totalorder %s20, 0
    %p167 = por %p165, %p166
    %p168 = scmp.ne.s32.totalorder %s156, %s157
    %p169 = scmp.eq.s32.totalorder %s21, 1
    %p170 = por %p168, %p169
    %p172 = scmp.ne.s32.totalorder %s157, %s171
    %p173 = scmp.eq.s32.totalorder %s21, 0
    %p174 = por %p172, %p173
    %s176 = sadd.s32 %s175, 1
    %p179 = scmp.eq.s32.totalorder %s15, 1
    %p180 = scmp.ne.s32.totalorder %s175, %s177
    %p181 = scmp.eq.s32.totalorder %s15, 0
    %p182 = por %p180, %p181
    %p183 = scmp.ne.s32.totalorder %s175, %s177
    %p184 = scmp.eq.s32.totalorder %s20, 1
    %p185 = por %p183, %p184
    %p186 = scmp.ne.s32.totalorder %s177, %s178
    %p187 = scmp.eq.s32.totalorder %s20, 0
    %p188 = por %p186, %p187
    %p189 = scmp.ne.s32.totalorder %s177, %s178
    %p190 = scmp.eq.s32.totalorder %s21, 1
    %p191 = por %p189, %p190
    %p193 = scmp.ne.s32.totalorder %s178, %s192
    %p194 = scmp.eq.s32.totalorder %s21, 0
    %p195 = por %p193, %p194
    %s197 = sadd.s32 %s196, 1
    %p200 = scmp.eq.s32.totalorder %s15, 1
    %p201 = scmp.ne.s32.totalorder %s196, %s198
    %p202 = scmp.eq.s32.totalorder %s15, 0
    %p203 = por %p201, %p202
    %p204 = scmp.ne.s32.totalorder %s196, %s198
    %p205 = scmp.eq.s32.totalorder %s20, 1
    %p206 = por %p204, %p205
    %p207 = scmp.ne.s32.totalorder %s198, %s199
    %p208 = scmp.eq.s32.totalorder %s20, 0
    %p209 = por %p207, %p208
    %p210 = scmp.ne.s32.totalorder %s198, %s199
    %p211 = scmp.eq.s32.totalorder %s21, 1
    %p212 = por %p210, %p211
    %p214 = scmp.ne.s32.totalorder %s199, %s213
    %p215 = scmp.eq.s32.totalorder %s21, 0
    %p216 = por %p214, %p215
    %s217 = ssub.s32 %s15, %s22
    %p218 = scmp.eq.s32.totalorder %s217, 0
    %s220 = sadd.s32 %s219, 1
    %s221 = scalar_select %p218, %s219, %s220
    %p224 = pneg %p218
    %p225 = scmp.eq.s32.totalorder %s15, 1
    %p226 = por %p224, %p225
    %p227 = scmp.ne.s32.totalorder %s219, %s222
    %p228 = scmp.eq.s32.totalorder %s15, 0
    %p229 = por %p227, %p228
    %p230 = scmp.ne.s32.totalorder %s219, %s222
    %p231 = scmp.eq.s32.totalorder %s20, 1
    %p232 = por %p230, %p231
    %p233 = scmp.ne.s32.totalorder %s222, %s223
    %p234 = scmp.eq.s32.totalorder %s20, 0
    %p235 = por %p233, %p234
    %p236 = scmp.ne.s32.totalorder %s222, %s223
    %p237 = scmp.eq.s32.totalorder %s21, 1
    %p238 = por %p236, %p237
    %p240 = scmp.ne.s32.totalorder %s223, %s239
    %p241 = scmp.eq.s32.totalorder %s21, 0
    %p242 = por %p240, %p241
    %p243 = scmp.le.s32.totalorder 1, %s15
    %p244 = scmp.lt.s32.totalorder %s15, 3
    %p245 = pnand %p243, %p244
    %p246 = pneg %p245
    // Predicated region
    $region9: #{affine_coupling_forward.1} parent=5 // pred_check
      _
    $region10: #{affine_coupling_forward.1} parent=5 // pred_check_branch
      %248 = sbr.rel (%p245) target = $region12
    $region11: #{affine_coupling_forward.1} parent=5 // pred_region
      %s249 = ssub.s32 %s15, 1
      // Predicated region
      $region13: #{affine_coupling_forward.1} parent=11 // pred_check
        %p250 = pneg %p62
      $region14: #{affine_coupling_forward.1} parent=11 // pred_check_branch
        %252 = sbr.rel (%p250) target = $region16
      $region15: #{affine_coupling_forward.1} parent=11 // pred_region
        _
      $region16: #{affine_coupling_forward.1} parent=11 // pred_fallthru
        _
      // Predicated region
      $region17: #{affine_coupling_forward.1} parent=11 // pred_check
        %p253 = pneg %p83
      $region18: #{affine_coupling_forward.1} parent=11 // pred_check_branch
        %255 = sbr.rel (%p253) target = $region20
      $region19: #{affine_coupling_forward.1} parent=11 // pred_region
        _
      $region20: #{affine_coupling_forward.1} parent=11 // pred_fallthru
        _
      // Predicated region
      $region21: #{affine_coupling_forward.1} parent=11 // pred_check
        %p256 = pneg %p104
      $region22: #{affine_coupling_forward.1} parent=11 // pred_check_branch
        %258 = sbr.rel (%p256) target = $region24
      $region23: #{affine_coupling_forward.1} parent=11 // pred_region
        _
      $region24: #{affine_coupling_forward.1} parent=11 // pred_fallthru
        _
      // Predicated region
      $region25: #{affine_coupling_forward.1} parent=11 // pred_check
        %p259 = pneg %p125
      $region26: #{affine_coupling_forward.1} parent=11 // pred_check_branch
        %261 = sbr.rel (%p259) target = $region28
      $region27: #{affine_coupling_forward.1} parent=11 // pred_region
        _
      $region28: #{affine_coupling_forward.1} parent=11 // pred_fallthru
        _
      // Predicated region
      $region29: #{affine_coupling_forward.1} parent=11 // pred_check
        %p262 = pneg %p146
      $region30: #{affine_coupling_forward.1} parent=11 // pred_check_branch
        %264 = sbr.rel (%p262) target = $region32
      $region31: #{affine_coupling_forward.1} parent=11 // pred_region
        _
      $region32: #{affine_coupling_forward.1} parent=11 // pred_fallthru
        _
      // Predicated region
      $region33: #{affine_coupling_forward.1} parent=11 // pred_check
        %p265 = pneg %p167
      $region34: #{affine_coupling_forward.1} parent=11 // pred_check_branch
        %267 = sbr.rel (%p265) target = $region36
      $region35: #{affine_coupling_forward.1} parent=11 // pred_region
        _
      $region36: #{affine_coupling_forward.1} parent=11 // pred_fallthru
        _
      // Predicated region
      $region37: #{affine_coupling_forward.1} parent=11 // pred_check
        %p268 = pneg %p188
      $region38: #{affine_coupling_forward.1} parent=11 // pred_check_branch
        %270 = sbr.rel (%p268) target = $region40
      $region39: #{affine_coupling_forward.1} parent=11 // pred_region
        _
      $region40: #{affine_coupling_forward.1} parent=11 // pred_fallthru
        _
      // Predicated region
      $region41: #{affine_coupling_forward.1} parent=11 // pred_check
        %p271 = pneg %p209
      $region42: #{affine_coupling_forward.1} parent=11 // pred_check_branch
        %273 = sbr.rel (%p271) target = $region44
      $region43: #{affine_coupling_forward.1} parent=11 // pred_region
        _
      $region44: #{affine_coupling_forward.1} parent=11 // pred_fallthru
        _
    $region12: #{affine_coupling_forward.1} parent=5 // pred_fallthru
      _
    %p274 = scmp.lt.s32.totalorder %s15, 2
    // Predicated region
    $region45: #{affine_coupling_forward.1} parent=5 // pred_check
      %p275 = pneg %p274
    $region46: #{affine_coupling_forward.1} parent=5 // pred_check_branch
      %277 = sbr.rel (%p275) target = $region48
    $region47: #{affine_coupling_forward.1} parent=5 // pred_region
      // Predicated region
      $region49: #{affine_coupling_forward.1} parent=47 // pred_check
        %p278 = pneg %p35
      $region50: #{affine_coupling_forward.1} parent=47 // pred_check_branch
        %280 = sbr.rel (%p278) target = $region52
      $region51: #{affine_coupling_forward.1} parent=47 // pred_region
        %p281 = scmp.lt.s32.totalorder %s15, 1
        %s282 = scalar_select %p281, %s15, 1
        %s283 = smul.addr %s282, 3
        %s284 = smul.addr %s283, 4
        %s285 = scalar_lea.vmem %s0, %s284
      $region52: #{affine_coupling_forward.1} parent=47 // pred_fallthru
        _
    $region48: #{affine_coupling_forward.1} parent=5 // pred_fallthru
      _
    %p286 = scmp.le.s32.totalorder 1, %s15
    %p287 = scmp.lt.s32.totalorder %s15, 3
    %p288 = pnand %p286, %p287
    %p289 = pneg %p288
    // Predicated region
    $region53: #{affine_coupling_forward.1} parent=5 // pred_check
      _
    $region54: #{affine_coupling_forward.1} parent=5 // pred_check_branch
      %291 = sbr.rel (%p288) target = $region56
    $region55: #{affine_coupling_forward.1} parent=5 // pred_region
      %s292 = ssub.s32 %s15, 1
      %p293 = scmp.lt.s32.totalorder %s20, 1
      %s294 = scalar_select %p293, %s20, 1
      %s295 = smul.addr %s294, 3
      %s296 = smul.addr %s295, 4
      %s297 = scalar_lea.vmem %s0, %s296
      %p298 = pneg %p41
      %p299 = pneg %p38
      %p300 = pneg %p62
      %p301 = pneg %p59
      %p302 = pneg %p83
      %p303 = pneg %p80
      %p304 = pneg %p104
      %p305 = pneg %p101
      %p306 = pneg %p125
      %p307 = pneg %p122
      %p308 = pneg %p146
      %p309 = pneg %p143
      %p310 = pneg %p167
      %p311 = pneg %p164
      %p312 = pneg %p188
      %p313 = pneg %p185
      %p314 = pneg %p209
      %p315 = pneg %p206
      %p316 = pneg %p235
      %p317 = pneg %p232
      %p318 = scmp.lt.s32.totalorder %s20, 1
      %s319 = scalar_select %p318, %s20, 1
      %s320 = smul.addr %s319, 3
      %s321 = smul.addr %s320, 4
      %s322 = scalar_lea.vmem %s9, %s321
      %p323 = scmp.lt.s32.totalorder %s20, 1
      %s324 = scalar_select %p323, %s20, 1
      %s325 = smul.addr %s324, 3
      %s326 = smul.addr %s325, 4
      %s327 = scalar_lea.vmem %s0, %s326
      %p328 = scmp.lt.s32.totalorder %s20, 1
      %s329 = scalar_select %p328, %s20, 1
      %s330 = smul.addr %s329, 3
      %s331 = smul.addr %s330, 4
      %s332 = scalar_lea.vmem %s9, %s331
      %p333 = scmp.eq.s32.totalorder %s20, 0
      // Predicated region
      $region57: #{affine_coupling_forward.1} parent=55 // pred_check
        %p334 = pneg %p333
      $region58: #{affine_coupling_forward.1} parent=55 // pred_check_branch
        %336 = sbr.rel (%p334) target = $region60
      $region59: #{affine_coupling_forward.1} parent=55 // pred_region
        %337 = vst [vmem:[#allocation2] sm:$0xff] 0.0
        %338 = vst [vmem:[#allocation2 + $0x8] sm:$0xff] 0.0
        %339 = vst [vmem:[#allocation2 + $0x10] sm:$0xf] 0.0
        %340 = vst [vmem:[#allocation3] sm:$0xff] 0.0
        %341 = vst [vmem:[#allocation3 + $0x28] sm:$0xff] 0.0
        %342 = vst [vmem:[#allocation3 + $0x50] sm:$0xff] 0.0
        %343 = vst [vmem:[#allocation3 + $0x78] sm:$0xff] 0.0
        %344 = vst [vmem:[#allocation3 + $0x20] sm:$0xff] 0.0
        %345 = vst [vmem:[#allocation3 + $0x48] sm:$0xff] 0.0
        %346 = vst [vmem:[#allocation3 + $0x70] sm:$0xff] 0.0
        %347 = vst [vmem:[#allocation3 + $0x98] sm:$0xff] 0.0
      $region60: #{affine_coupling_forward.1} parent=55 // pred_fallthru
        _
      %v348 = vld [vmem:[%s327] sm:$0xff]
      %v349 = vld [vmem:[%s327 + $0x8] sm:$0xf]
      %350 = vst [vmem:[#allocation2 + $0x4] sm:$0xff] %v348
      %vm351 = vcmask 551936
      %352 = vst.msk [vmem:[#allocation2 + $0xc] sm:$0xf] %vm351, %v349
      %v353 = vld [vmem:[%s2] sm:$0xff]
      %v354 = vld [vmem:[%s2 + $0x8] sm:$0xff]
      %v355 = vld [vmem:[%s2 + $0x10] sm:$0xff]
      %v356 = vld [vmem:[%s2 + $0x18] sm:$0xff]
      %v357 = vld [vmem:[#allocation2] sm:$0x33]
      %v358 = vld [vmem:[#allocation2 + $0x8] sm:$0x33]
      %s359 = scalar_lea.vmem %s2, 32
      %v360 = vld [vmem:[%s359] sm:$0xff]
      %v361 = vld [vmem:[%s359 + $0x8] sm:$0xff]
      %v362 = vld [vmem:[%s359 + $0x10] sm:$0xff]
      %v363 = vld [vmem:[%s359 + $0x18] sm:$0xff]
      %366 = vst [vmem:[#allocation1] ss:$2 sm:$0xff] %v357
      %s367 = scalar_lea.vmem [#allocation1], 16
      %368 = vst [vmem:[%s367] ss:$2 sm:$0xff] %v358
      %v369 = vld.sshfl [vmem:[#allocation1] sm:$0xff pattern:$0x75316420]
      %v370 = vld.sshfl [vmem:[#allocation1 + $0x8] sm:$0xff pattern:$0x75316420]
      %v371 = vld.sshfl [vmem:[#allocation1 + $0x10] sm:$0xff pattern:$0x75316420]
      %v372 = vld.sshfl [vmem:[#allocation1 + $0x18] sm:$0xff pattern:$0x75316420]
      %373 = vrot.lane.b32.xlu0 %v369, 18
      %v374 = vpop.permute.xlu0 %373
      %375 = vrot.lane.b32.xlu0 %v370, 18
      %v376 = vpop.permute.xlu0 %375
      %377 = vrot.lane.b32.xlu0 %v371, 18
      %v378 = vpop.permute.xlu0 %377
      %379 = vrot.lane.b32.xlu0 %v372, 18
      %v380 = vpop.permute.xlu0 %379
      %vm381 = vcmask 146432
      %v382 = vsel %vm381, %v374, %v376
      %v383 = vsel %vm381, %v376, %v378
      %v384 = vsel %vm381, %v378, %v380
      %vm385 = vcmask 15360
      %v387 = vsel %vm385, %v360, 0
      %v390 = vsel %vm385, %v361, 0
      %v393 = vsel %vm385, %v362, 0
      %v396 = vsel %vm385, %v363, 0
      %vm398 = vcmask 1041408
      %v399 = vsel %vm398, %v382, 0
      %v401 = vsel %vm398, %v383, 0
      %v403 = vsel %vm398, %v384, 0
      %405 = vmatpush.msra.mxu0 0.0
      %406 = vmatpush.msra.mxu0 0.0
      %407 = vmatpush.msra.mxu0 0.0
      %408 = vmatpush.msra.mxu0 0.0
      %409 = vmatpush.msra.mxu0 0.0
      %410 = vmatpush.msra.mxu0 0.0
      %411 = vmatpush.msra.mxu0 0.0
      %412 = vmatpush.msra.mxu0 0.0
      %413 = vmatpush.msra.mxu0 0.0
      %414 = vmatpush.msra.mxu0 0.0
      %415 = vmatpush.msra.mxu0 0.0
      %416 = vmatpush.msra.mxu0 0.0
      %417 = vmatpush.msra.mxu0 0.0
      %418 = vmatpush.msra.mxu0 0.0
      %419 = vmatpush.msra.mxu0 0.0
      %420 = vmatpush.msra.mxu0 %v399
      %421 = vmatmul.f32.gmra.mxu0 %v387
      %v422 = vpop.f32.mrf.mxu0
      %v423 = vadd.f32 0.0, %v422
      %424 = vmatmul.f32.gmra.mxu0 %v390
      %v425 = vpop.f32.mrf.mxu0
      %v426 = vadd.f32 0.0, %v425
      %427 = vmatmul.f32.gmra.mxu0 %v393
      %v428 = vpop.f32.mrf.mxu0
      %v429 = vadd.f32 0.0, %v428
      %430 = vmatmul.f32.gmra.mxu0 %v396
      %v431 = vpop.f32.mrf.mxu0
      %v432 = vadd.f32 0.0, %v431
      %433 = vdwg.mxu0
      %434 = vmatpush.msra.mxu0 0.0
      %435 = vmatpush.msra.mxu0 0.0
      %436 = vmatpush.msra.mxu0 0.0
      %437 = vmatpush.msra.mxu0 0.0
      %438 = vmatpush.msra.mxu0 0.0
      %439 = vmatpush.msra.mxu0 0.0
      %440 = vmatpush.msra.mxu0 0.0
      %441 = vmatpush.msra.mxu0 0.0
      %442 = vmatpush.msra.mxu0 0.0
      %443 = vmatpush.msra.mxu0 0.0
      %444 = vmatpush.msra.mxu0 0.0
      %445 = vmatpush.msra.mxu0 0.0
      %446 = vmatpush.msra.mxu0 0.0
      %447 = vmatpush.msra.mxu0 0.0
      %448 = vmatpush.msra.mxu0 0.0
      %449 = vmatpush.msra.mxu0 %v401
      %450 = vmatmul.f32.gmra.mxu0 %v387
      %v451 = vpop.f32.mrf.mxu0
      %v452 = vadd.f32 0.0, %v451
      %453 = vmatmul.f32.gmra.mxu0 %v390
      %v454 = vpop.f32.mrf.mxu0
      %v455 = vadd.f32 0.0, %v454
      %456 = vmatmul.f32.gmra.mxu0 %v393
      %v457 = vpop.f32.mrf.mxu0
      %v458 = vadd.f32 0.0, %v457
      %459 = vmatmul.f32.gmra.mxu0 %v396
      %v460 = vpop.f32.mrf.mxu0
      %v461 = vadd.f32 0.0, %v460
      %462 = vdwg.mxu0
      %463 = vmatpush.msra.mxu0 0.0
      %464 = vmatpush.msra.mxu0 0.0
      %465 = vmatpush.msra.mxu0 0.0
      %466 = vmatpush.msra.mxu0 0.0
      %467 = vmatpush.msra.mxu0 0.0
      %468 = vmatpush.msra.mxu0 0.0
      %469 = vmatpush.msra.mxu0 0.0
      %470 = vmatpush.msra.mxu0 0.0
      %471 = vmatpush.msra.mxu0 0.0
      %472 = vmatpush.msra.mxu0 0.0
      %473 = vmatpush.msra.mxu0 0.0
      %474 = vmatpush.msra.mxu0 0.0
      %475 = vmatpush.msra.mxu0 0.0
      %476 = vmatpush.msra.mxu0 0.0
      %477 = vmatpush.msra.mxu0 0.0
      %478 = vmatpush.msra.mxu0 %v403
      %479 = vmatmul.f32.gmra.mxu0 %v387
      %v480 = vpop.f32.mrf.mxu0
      %v481 = vadd.f32 0.0, %v480
      %482 = vmatmul.f32.gmra.mxu0 %v390
      %v483 = vpop.f32.mrf.mxu0
      %v484 = vadd.f32 0.0, %v483
      %485 = vmatmul.f32.gmra.mxu0 %v393
      %v486 = vpop.f32.mrf.mxu0
      %v487 = vadd.f32 0.0, %v486
      %488 = vmatmul.f32.gmra.mxu0 %v396
      %v489 = vpop.f32.mrf.mxu0
      %v490 = vadd.f32 0.0, %v489
      %491 = vdwg.mxu0
      %492 = vst [vmem:[#allocation1] ss:$2 sm:$0xff] %v357
      %s493 = scalar_lea.vmem [#allocation1], 16
      %494 = vst [vmem:[%s493] ss:$2 sm:$0xff] %v358
      %v495 = vld.sshfl [vmem:[#allocation1] sm:$0xff pattern:$0x75316420]
      %v496 = vld.sshfl [vmem:[#allocation1 + $0x8] sm:$0xff pattern:$0x75316420]
      %v497 = vld.sshfl [vmem:[#allocation1 + $0x10] sm:$0xff pattern:$0x75316420]
      %v498 = vld.sshfl [vmem:[#allocation1 + $0x18] sm:$0xff pattern:$0x75316420]
      %499 = vrot.lane.b32.xlu0 %v495, 19
      %v500 = vpop.permute.xlu0 %499
      %501 = vrot.lane.b32.xlu0 %v496, 19
      %v502 = vpop.permute.xlu0 %501
      %503 = vrot.lane.b32.xlu0 %v497, 19
      %v504 = vpop.permute.xlu0 %503
      %505 = vrot.lane.b32.xlu0 %v498, 19
      %v506 = vpop.permute.xlu0 %505
      %vm507 = vcmask 154624
      %v508 = vsel %vm507, %v500, %v502
      %v509 = vsel %vm507, %v502, %v504
      %v510 = vsel %vm507, %v504, %v506
      %v512 = vsel %vm385, %v353, 0
      %v515 = vsel %vm385, %v354, 0
      %v518 = vsel %vm385, %v355, 0
      %v521 = vsel %vm385, %v356, 0
      %v523 = vsel %vm398, %v508, 0
      %v525 = vsel %vm398, %v509, 0
      %v527 = vsel %vm398, %v510, 0
      %529 = vmatpush.msra.mxu0 0.0
      %530 = vmatpush.msra.mxu0 0.0
      %531 = vmatpush.msra.mxu0 0.0
      %532 = vmatpush.msra.mxu0 0.0
      %533 = vmatpush.msra.mxu0 0.0
      %534 = vmatpush.msra.mxu0 0.0
      %535 = vmatpush.msra.mxu0 0.0
      %536 = vmatpush.msra.mxu0 0.0
      %537 = vmatpush.msra.mxu0 0.0
      %538 = vmatpush.msra.mxu0 0.0
      %539 = vmatpush.msra.mxu0 0.0
      %540 = vmatpush.msra.mxu0 0.0
      %541 = vmatpush.msra.mxu0 0.0
      %542 = vmatpush.msra.mxu0 0.0
      %543 = vmatpush.msra.mxu0 0.0
      %544 = vmatpush.msra.mxu0 %v523
      %545 = vmatmul.f32.gmra.mxu0 %v512
      %v546 = vpop.f32.mrf.mxu0
      %v547 = vadd.f32 %v423, %v546
      %548 = vmatmul.f32.gmra.mxu0 %v515
      %v549 = vpop.f32.mrf.mxu0
      %v550 = vadd.f32 %v426, %v549
      %551 = vmatmul.f32.gmra.mxu0 %v518
      %v552 = vpop.f32.mrf.mxu0
      %v553 = vadd.f32 %v429, %v552
      %554 = vmatmul.f32.gmra.mxu0 %v521
      %v555 = vpop.f32.mrf.mxu0
      %v556 = vadd.f32 %v432, %v555
      %557 = vdwg.mxu0
      %558 = vmatpush.msra.mxu0 0.0
      %559 = vmatpush.msra.mxu0 0.0
      %560 = vmatpush.msra.mxu0 0.0
      %561 = vmatpush.msra.mxu0 0.0
      %562 = vmatpush.msra.mxu0 0.0
      %563 = vmatpush.msra.mxu0 0.0
      %564 = vmatpush.msra.mxu0 0.0
      %565 = vmatpush.msra.mxu0 0.0
      %566 = vmatpush.msra.mxu0 0.0
      %567 = vmatpush.msra.mxu0 0.0
      %568 = vmatpush.msra.mxu0 0.0
      %569 = vmatpush.msra.mxu0 0.0
      %570 = vmatpush.msra.mxu0 0.0
      %571 = vmatpush.msra.mxu0 0.0
      %572 = vmatpush.msra.mxu0 0.0
      %573 = vmatpush.msra.mxu0 %v525
      %574 = vmatmul.f32.gmra.mxu0 %v512
      %v575 = vpop.f32.mrf.mxu0
      %v576 = vadd.f32 %v452, %v575
      %577 = vmatmul.f32.gmra.mxu0 %v515
      %v578 = vpop.f32.mrf.mxu0
      %v579 = vadd.f32 %v455, %v578
      %580 = vmatmul.f32.gmra.mxu0 %v518
      %v581 = vpop.f32.mrf.mxu0
      %v582 = vadd.f32 %v458, %v581
      %583 = vmatmul.f32.gmra.mxu0 %v521
      %v584 = vpop.f32.mrf.mxu0
      %v585 = vadd.f32 %v461, %v584
      %586 = vdwg.mxu0
      %587 = vmatpush.msra.mxu0 0.0
      %588 = vmatpush.msra.mxu0 0.0
      %589 = vmatpush.msra.mxu0 0.0
      %590 = vmatpush.msra.mxu0 0.0
      %591 = vmatpush.msra.mxu0 0.0
      %592 = vmatpush.msra.mxu0 0.0
      %593 = vmatpush.msra.mxu0 0.0
      %594 = vmatpush.msra.mxu0 0.0
      %595 = vmatpush.msra.mxu0 0.0
      %596 = vmatpush.msra.mxu0 0.0
      %597 = vmatpush.msra.mxu0 0.0
      %598 = vmatpush.msra.mxu0 0.0
      %599 = vmatpush.msra.mxu0 0.0
      %600 = vmatpush.msra.mxu0 0.0
      %601 = vmatpush.msra.mxu0 0.0
      %602 = vmatpush.msra.mxu0 %v527
      %603 = vmatmul.f32.gmra.mxu0 %v512
      %v604 = vpop.f32.mrf.mxu0
      %v605 = vadd.f32 %v481, %v604
      %606 = vmatmul.f32.gmra.mxu0 %v515
      %v607 = vpop.f32.mrf.mxu0
      %v608 = vadd.f32 %v484, %v607
      %609 = vmatmul.f32.gmra.mxu0 %v518
      %v610 = vpop.f32.mrf.mxu0
      %v611 = vadd.f32 %v487, %v610
      %612 = vmatmul.f32.gmra.mxu0 %v521
      %v613 = vpop.f32.mrf.mxu0
      %v614 = vadd.f32 %v490, %v613
      %615 = vdwg.mxu0
      %s616 = scalar_lea.vmem %s2, 64
      %v617 = vld [vmem:[%s616] sm:$0xff]
      %v618 = vld [vmem:[%s616 + $0x8] sm:$0xff]
      %v619 = vld [vmem:[%s616 + $0x10] sm:$0xff]
      %v620 = vld [vmem:[%s616 + $0x18] sm:$0xff]
      %v621 = vld [vmem:[#allocation2] sm:$0x33]
      %v622 = vld [vmem:[#allocation2 + $0x8] sm:$0x33]
      %625 = vst [vmem:[#allocation1] ss:$2 sm:$0xff] %v621
      %s626 = scalar_lea.vmem [#allocation1], 16
      %627 = vst [vmem:[%s626] ss:$2 sm:$0xff] %v622
      %v628 = vld.sshfl [vmem:[#allocation1] sm:$0xff pattern:$0x75316420]
      %v629 = vld.sshfl [vmem:[#allocation1 + $0x8] sm:$0xff pattern:$0x75316420]
      %v630 = vld.sshfl [vmem:[#allocation1 + $0x10] sm:$0xff pattern:$0x75316420]
      %v631 = vld.sshfl [vmem:[#allocation1 + $0x18] sm:$0xff pattern:$0x75316420]
      %632 = vrot.lane.b32.xlu0 %v628, 17
      %v633 = vpop.permute.xlu0 %632
      %634 = vrot.lane.b32.xlu0 %v629, 17
      %v635 = vpop.permute.xlu0 %634
      %636 = vrot.lane.b32.xlu0 %v630, 17
      %v637 = vpop.permute.xlu0 %636
      %638 = vrot.lane.b32.xlu0 %v631, 17
      %v639 = vpop.permute.xlu0 %638
      %vm640 = vcmask 138240
      %v641 = vsel %vm640, %v633, %v635
      %v642 = vsel %vm640, %v635, %v637
      %v643 = vsel %vm640, %v637, %v639
      %v645 = vsel %vm385, %v617, 0
      %v648 = vsel %vm385, %v618, 0
      %v651 = vsel %vm385, %v619, 0
      %v654 = vsel %vm385, %v620, 0
      %v656 = vsel %vm398, %v641, 0
      %v658 = vsel %vm398, %v642, 0
      %v660 = vsel %vm398, %v643, 0
      %662 = vmatpush.msra.mxu0 0.0
      %663 = vmatpush.msra.mxu0 0.0
      %664 = vmatpush.msra.mxu0 0.0
      %665 = vmatpush.msra.mxu0 0.0
      %666 = vmatpush.msra.mxu0 0.0
      %667 = vmatpush.msra.mxu0 0.0
      %668 = vmatpush.msra.mxu0 0.0
      %669 = vmatpush.msra.mxu0 0.0
      %670 = vmatpush.msra.mxu0 0.0
      %671 = vmatpush.msra.mxu0 0.0
      %672 = vmatpush.msra.mxu0 0.0
      %673 = vmatpush.msra.mxu0 0.0
      %674 = vmatpush.msra.mxu0 0.0
      %675 = vmatpush.msra.mxu0 0.0
      %676 = vmatpush.msra.mxu0 0.0
      %677 = vmatpush.msra.mxu0 %v656
      %678 = vmatmul.f32.gmra.mxu0 %v645
      %v679 = vpop.f32.mrf.mxu0
      %v680 = vadd.f32 0.0, %v679
      %681 = vmatmul.f32.gmra.mxu0 %v648
      %v682 = vpop.f32.mrf.mxu0
      %v683 = vadd.f32 0.0, %v682
      %684 = vmatmul.f32.gmra.mxu0 %v651
      %v685 = vpop.f32.mrf.mxu0
      %v686 = vadd.f32 0.0, %v685
      %687 = vmatmul.f32.gmra.mxu0 %v654
      %v688 = vpop.f32.mrf.mxu0
      %v689 = vadd.f32 0.0, %v688
      %690 = vdwg.mxu0
      %691 = vmatpush.msra.mxu0 0.0
      %692 = vmatpush.msra.mxu0 0.0
      %693 = vmatpush.msra.mxu0 0.0
      %694 = vmatpush.msra.mxu0 0.0
      %695 = vmatpush.msra.mxu0 0.0
      %696 = vmatpush.msra.mxu0 0.0
      %697 = vmatpush.msra.mxu0 0.0
      %698 = vmatpush.msra.mxu0 0.0
      %699 = vmatpush.msra.mxu0 0.0
      %700 = vmatpush.msra.mxu0 0.0
      %701 = vmatpush.msra.mxu0 0.0
      %702 = vmatpush.msra.mxu0 0.0
      %703 = vmatpush.msra.mxu0 0.0
      %704 = vmatpush.msra.mxu0 0.0
      %705 = vmatpush.msra.mxu0 0.0
      %706 = vmatpush.msra.mxu0 %v658
      %707 = vmatmul.f32.gmra.mxu0 %v645
      %v708 = vpop.f32.mrf.mxu0
      %v709 = vadd.f32 0.0, %v708
      %710 = vmatmul.f32.gmra.mxu0 %v648
      %v711 = vpop.f32.mrf.mxu0
      %v712 = vadd.f32 0.0, %v711
      %713 = vmatmul.f32.gmra.mxu0 %v651
      %v714 = vpop.f32.mrf.mxu0
      %v715 = vadd.f32 0.0, %v714
      %716 = vmatmul.f32.gmra.mxu0 %v654
      %v717 = vpop.f32.mrf.mxu0
      %v718 = vadd.f32 0.0, %v717
      %719 = vdwg.mxu0
      %720 = vmatpush.msra.mxu0 0.0
      %721 = vmatpush.msra.mxu0 0.0
      %722 = vmatpush.msra.mxu0 0.0
      %723 = vmatpush.msra.mxu0 0.0
      %724 = vmatpush.msra.mxu0 0.0
      %725 = vmatpush.msra.mxu0 0.0
      %726 = vmatpush.msra.mxu0 0.0
      %727 = vmatpush.msra.mxu0 0.0
      %728 = vmatpush.msra.mxu0 0.0
      %729 = vmatpush.msra.mxu0 0.0
      %730 = vmatpush.msra.mxu0 0.0
      %731 = vmatpush.msra.mxu0 0.0
      %732 = vmatpush.msra.mxu0 0.0
      %733 = vmatpush.msra.mxu0 0.0
      %734 = vmatpush.msra.mxu0 0.0
      %735 = vmatpush.msra.mxu0 %v660
      %736 = vmatmul.f32.gmra.mxu0 %v645
      %v737 = vpop.f32.mrf.mxu0
      %v738 = vadd.f32 0.0, %v737
      %739 = vmatmul.f32.gmra.mxu0 %v648
      %v740 = vpop.f32.mrf.mxu0
      %v741 = vadd.f32 0.0, %v740
      %742 = vmatmul.f32.gmra.mxu0 %v651
      %v743 = vpop.f32.mrf.mxu0
      %v744 = vadd.f32 0.0, %v743
      %745 = vmatmul.f32.gmra.mxu0 %v654
      %v746 = vpop.f32.mrf.mxu0
      %v747 = vadd.f32 0.0, %v746
      %748 = vdwg.mxu0
      %v749 = vadd.f32 %v547, %v680
      %v750 = vadd.f32 %v576, %v709
      %v751 = vadd.f32 %v605, %v738
      %v752 = vadd.f32 %v550, %v683
      %v753 = vadd.f32 %v579, %v712
      %v754 = vadd.f32 %v608, %v741
      %v755 = vadd.f32 %v553, %v686
      %v756 = vadd.f32 %v582, %v715
      %v757 = vadd.f32 %v611, %v744
      %v758 = vadd.f32 %v556, %v689
      %v759 = vadd.f32 %v585, %v718
      %v760 = vadd.f32 %v614, %v747
      %s761 = scalar_lea.vmem %s2, 96
      %v762 = vld [vmem:[%s761] sm:$0xff]
      %v763 = vld [vmem:[%s761 + $0x8] sm:$0xff]
      %v764 = vld [vmem:[%s761 + $0x10] sm:$0xff]
      %v765 = vld [vmem:[%s761 + $0x18] sm:$0xff]
      %v766 = vld [vmem:[#allocation2] sm:$0x33]
      %v767 = vld [vmem:[#allocation2 + $0x8] sm:$0x33]
      %770 = vst [vmem:[#allocation1] ss:$2 sm:$0xff] %v766
      %s771 = scalar_lea.vmem [#allocation1], 16
      %772 = vst [vmem:[%s771] ss:$2 sm:$0xff] %v767
      %v773 = vld.sshfl [vmem:[#allocation1] sm:$0xff pattern:$0x75316420]
      %v774 = vld.sshfl [vmem:[#allocation1 + $0x8] sm:$0xff pattern:$0x75316420]
      %v775 = vld.sshfl [vmem:[#allocation1 + $0x10] sm:$0xff pattern:$0x75316420]
      %v776 = vld.sshfl [vmem:[#allocation1 + $0x18] sm:$0xff pattern:$0x75316420]
      %777 = vrot.lane.b32.xlu0 %v773, 1
      %v778 = vpop.permute.xlu0 %777
      %779 = vrot.lane.b32.xlu0 %v774, 1
      %v780 = vpop.permute.xlu0 %779
      %781 = vrot.lane.b32.xlu0 %v775, 1
      %v782 = vpop.permute.xlu0 %781
      %783 = vrot.lane.b32.xlu0 %v776, 1
      %v784 = vpop.permute.xlu0 %783
      %vm785 = vcmask 7168
      %v786 = vsel %vm785, %v778, %v780
      %v787 = vsel %vm785, %v780, %v782
      %v788 = vsel %vm785, %v782, %v784
      %v790 = vsel %vm385, %v762, 0
      %v793 = vsel %vm385, %v763, 0
      %v796 = vsel %vm385, %v764, 0
      %v799 = vsel %vm385, %v765, 0
      %v801 = vsel %vm398, %v786, 0
      %v803 = vsel %vm398, %v787, 0
      %v805 = vsel %vm398, %v788, 0
      %807 = vmatpush.msra.mxu0 0.0
      %808 = vmatpush.msra.mxu0 0.0
      %809 = vmatpush.msra.mxu0 0.0
      %810 = vmatpush.msra.mxu0 0.0
      %811 = vmatpush.msra.mxu0 0.0
      %812 = vmatpush.msra.mxu0 0.0
      %813 = vmatpush.msra.mxu0 0.0
      %814 = vmatpush.msra.mxu0 0.0
      %815 = vmatpush.msra.mxu0 0.0
      %816 = vmatpush.msra.mxu0 0.0
      %817 = vmatpush.msra.mxu0 0.0
      %818 = vmatpush.msra.mxu0 0.0
      %819 = vmatpush.msra.mxu0 0.0
      %820 = vmatpush.msra.mxu0 0.0
      %821 = vmatpush.msra.mxu0 0.0
      %822 = vmatpush.msra.mxu0 %v801
      %823 = vmatmul.f32.gmra.mxu0 %v790
      %v824 = vpop.f32.mrf.mxu0
      %v825 = vadd.f32 0.0, %v824
      %826 = vmatmul.f32.gmra.mxu0 %v793
      %v827 = vpop.f32.mrf.mxu0
      %v828 = vadd.f32 0.0, %v827
      %829 = vmatmul.f32.gmra.mxu0 %v796
      %v830 = vpop.f32.mrf.mxu0
      %v831 = vadd.f32 0.0, %v830
      %832 = vmatmul.f32.gmra.mxu0 %v799
      %v833 = vpop.f32.mrf.mxu0
      %v834 = vadd.f32 0.0, %v833
      %835 = vdwg.mxu0
      %836 = vmatpush.msra.mxu0 0.0
      %837 = vmatpush.msra.mxu0 0.0
      %838 = vmatpush.msra.mxu0 0.0
      %839 = vmatpush.msra.mxu0 0.0
      %840 = vmatpush.msra.mxu0 0.0
      %841 = vmatpush.msra.mxu0 0.0
      %842 = vmatpush.msra.mxu0 0.0
      %843 = vmatpush.msra.mxu0 0.0
      %844 = vmatpush.msra.mxu0 0.0
      %845 = vmatpush.msra.mxu0 0.0
      %846 = vmatpush.msra.mxu0 0.0
      %847 = vmatpush.msra.mxu0 0.0
      %848 = vmatpush.msra.mxu0 0.0
      %849 = vmatpush.msra.mxu0 0.0
      %850 = vmatpush.msra.mxu0 0.0
      %851 = vmatpush.msra.mxu0 %v803
      %852 = vmatmul.f32.gmra.mxu0 %v790
      %v853 = vpop.f32.mrf.mxu0
      %v854 = vadd.f32 0.0, %v853
      %855 = vmatmul.f32.gmra.mxu0 %v793
      %v856 = vpop.f32.mrf.mxu0
      %v857 = vadd.f32 0.0, %v856
      %858 = vmatmul.f32.gmra.mxu0 %v796
      %v859 = vpop.f32.mrf.mxu0
      %v860 = vadd.f32 0.0, %v859
      %861 = vmatmul.f32.gmra.mxu0 %v799
      %v862 = vpop.f32.mrf.mxu0
      %v863 = vadd.f32 0.0, %v862
      %864 = vdwg.mxu0
      %865 = vmatpush.msra.mxu0 0.0
      %866 = vmatpush.msra.mxu0 0.0
      %867 = vmatpush.msra.mxu0 0.0
      %868 = vmatpush.msra.mxu0 0.0
      %869 = vmatpush.msra.mxu0 0.0
      %870 = vmatpush.msra.mxu0 0.0
      %871 = vmatpush.msra.mxu0 0.0
      %872 = vmatpush.msra.mxu0 0.0
      %873 = vmatpush.msra.mxu0 0.0
      %874 = vmatpush.msra.mxu0 0.0
      %875 = vmatpush.msra.mxu0 0.0
      %876 = vmatpush.msra.mxu0 0.0
      %877 = vmatpush.msra.mxu0 0.0
      %878 = vmatpush.msra.mxu0 0.0
      %879 = vmatpush.msra.mxu0 0.0
      %880 = vmatpush.msra.mxu0 %v805
      %881 = vmatmul.f32.gmra.mxu0 %v790
      %v882 = vpop.f32.mrf.mxu0
      %v883 = vadd.f32 0.0, %v882
      %884 = vmatmul.f32.gmra.mxu0 %v793
      %v885 = vpop.f32.mrf.mxu0
      %v886 = vadd.f32 0.0, %v885
      %887 = vmatmul.f32.gmra.mxu0 %v796
      %v888 = vpop.f32.mrf.mxu0
      %v889 = vadd.f32 0.0, %v888
      %890 = vmatmul.f32.gmra.mxu0 %v799
      %v891 = vpop.f32.mrf.mxu0
      %v892 = vadd.f32 0.0, %v891
      %893 = vdwg.mxu0
      %v894 = vadd.f32 %v749, %v825
      %v895 = vadd.f32 %v750, %v854
      %v896 = vadd.f32 %v751, %v883
      %v897 = vadd.f32 %v752, %v828
      %v898 = vadd.f32 %v753, %v857
      %v899 = vadd.f32 %v754, %v886
      %v900 = vadd.f32 %v755, %v831
      %v901 = vadd.f32 %v756, %v860
      %v902 = vadd.f32 %v757, %v889
      %v903 = vadd.f32 %v758, %v834
      %v904 = vadd.f32 %v759, %v863
      %v905 = vadd.f32 %v760, %v892
      %s906 = scalar_lea.vmem %s2, 128
      %v907 = vld [vmem:[%s906] sm:$0xff]
      %v908 = vld [vmem:[%s906 + $0x8] sm:$0xff]
      %v909 = vld [vmem:[%s906 + $0x10] sm:$0xff]
      %v910 = vld [vmem:[%s906 + $0x18] sm:$0xff]
      %v911 = vld [vmem:[#allocation2 + $0x4] sm:$0x33]
      %v912 = vld [vmem:[#allocation2 + $0xc] sm:$0x3]
      %915 = vst [vmem:[#allocation1] ss:$2 sm:$0xff] %v911
      %s916 = scalar_lea.vmem [#allocation1], 16
      %917 = vst [vmem:[%s916] ss:$2 sm:$0xff] %v912
      %v918 = vld.sshfl [vmem:[#allocation1] sm:$0xff pattern:$0x75316420]
      %v919 = vld.sshfl [vmem:[#allocation1 + $0x8] sm:$0xff pattern:$0x75316420]
      %v920 = vld.sshfl [vmem:[#allocation1 + $0x10] sm:$0xff pattern:$0x75316420]
      %v922 = vsel %vm385, %v907, 0
      %v925 = vsel %vm385, %v908, 0
      %v928 = vsel %vm385, %v909, 0
      %v931 = vsel %vm385, %v910, 0
      %v933 = vsel %vm398, %v918, 0
      %v935 = vsel %vm398, %v919, 0
      %v937 = vsel %vm398, %v920, 0
      %939 = vmatpush.msra.mxu0 0.0
      %940 = vmatpush.msra.mxu0 0.0
      %941 = vmatpush.msra.mxu0 0.0
      %942 = vmatpush.msra.mxu0 0.0
      %943 = vmatpush.msra.mxu0 0.0
      %944 = vmatpush.msra.mxu0 0.0
      %945 = vmatpush.msra.mxu0 0.0
      %946 = vmatpush.msra.mxu0 0.0
      %947 = vmatpush.msra.mxu0 0.0
      %948 = vmatpush.msra.mxu0 0.0
      %949 = vmatpush.msra.mxu0 0.0
      %950 = vmatpush.msra.mxu0 0.0
      %951 = vmatpush.msra.mxu0 0.0
      %952 = vmatpush.msra.mxu0 0.0
      %953 = vmatpush.msra.mxu0 0.0
      %954 = vmatpush.msra.mxu0 %v933
      %955 = vmatmul.f32.gmra.mxu0 %v922
      %v956 = vpop.f32.mrf.mxu0
      %v957 = vadd.f32 0.0, %v956
      %958 = vmatmul.f32.gmra.mxu0 %v925
      %v959 = vpop.f32.mrf.mxu0
      %v960 = vadd.f32 0.0, %v959
      %961 = vmatmul.f32.gmra.mxu0 %v928
      %v962 = vpop.f32.mrf.mxu0
      %v963 = vadd.f32 0.0, %v962
      %964 = vmatmul.f32.gmra.mxu0 %v931
      %v965 = vpop.f32.mrf.mxu0
      %v966 = vadd.f32 0.0, %v965
      %967 = vdwg.mxu0
      %968 = vmatpush.msra.mxu0 0.0
      %969 = vmatpush.msra.mxu0 0.0
      %970 = vmatpush.msra.mxu0 0.0
      %971 = vmatpush.msra.mxu0 0.0
      %972 = vmatpush.msra.mxu0 0.0
      %973 = vmatpush.msra.mxu0 0.0
      %974 = vmatpush.msra.mxu0 0.0
      %975 = vmatpush.msra.mxu0 0.0
      %976 = vmatpush.msra.mxu0 0.0
      %977 = vmatpush.msra.mxu0 0.0
      %978 = vmatpush.msra.mxu0 0.0
      %979 = vmatpush.msra.mxu0 0.0
      %980 = vmatpush.msra.mxu0 0.0
      %981 = vmatpush.msra.mxu0 0.0
      %982 = vmatpush.msra.mxu0 0.0
      %983 = vmatpush.msra.mxu0 %v935
      %984 = vmatmul.f32.gmra.mxu0 %v922
      %v985 = vpop.f32.mrf.mxu0
      %v986 = vadd.f32 0.0, %v985
      %987 = vmatmul.f32.gmra.mxu0 %v925
      %v988 = vpop.f32.mrf.mxu0
      %v989 = vadd.f32 0.0, %v988
      %990 = vmatmul.f32.gmra.mxu0 %v928
      %v991 = vpop.f32.mrf.mxu0
      %v992 = vadd.f32 0.0, %v991
      %993 = vmatmul.f32.gmra.mxu0 %v931
      %v994 = vpop.f32.mrf.mxu0
      %v995 = vadd.f32 0.0, %v994
      %996 = vdwg.mxu0
      %997 = vmatpush.msra.mxu0 0.0
      %998 = vmatpush.msra.mxu0 0.0
      %999 = vmatpush.msra.mxu0 0.0
      %1000 = vmatpush.msra.mxu0 0.0
      %1001 = vmatpush.msra.mxu0 0.0
      %1002 = vmatpush.msra.mxu0 0.0
      %1003 = vmatpush.msra.mxu0 0.0
      %1004 = vmatpush.msra.mxu0 0.0
      %1005 = vmatpush.msra.mxu0 0.0
      %1006 = vmatpush.msra.mxu0 0.0
      %1007 = vmatpush.msra.mxu0 0.0
      %1008 = vmatpush.msra.mxu0 0.0
      %1009 = vmatpush.msra.mxu0 0.0
      %1010 = vmatpush.msra.mxu0 0.0
      %1011 = vmatpush.msra.mxu0 0.0
      %1012 = vmatpush.msra.mxu0 %v937
      %1013 = vmatmul.f32.gmra.mxu0 %v922
      %v1014 = vpop.f32.mrf.mxu0
      %v1015 = vadd.f32 0.0, %v1014
      %1016 = vmatmul.f32.gmra.mxu0 %v925
      %v1017 = vpop.f32.mrf.mxu0
      %v1018 = vadd.f32 0.0, %v1017
      %1019 = vmatmul.f32.gmra.mxu0 %v928
      %v1020 = vpop.f32.mrf.mxu0
      %v1021 = vadd.f32 0.0, %v1020
      %1022 = vmatmul.f32.gmra.mxu0 %v931
      %v1023 = vpop.f32.mrf.mxu0
      %v1024 = vadd.f32 0.0, %v1023
      %1025 = vdwg.mxu0
      %v1026 = vadd.f32 %v894, %v957
      %v1027 = vadd.f32 %v895, %v986
      %v1028 = vadd.f32 %v896, %v1015
      %v1029 = vadd.f32 %v897, %v960
      %v1030 = vadd.f32 %v898, %v989
      %v1031 = vadd.f32 %v899, %v1018
      %v1032 = vadd.f32 %v900, %v963
      %v1033 = vadd.f32 %v901, %v992
      %v1034 = vadd.f32 %v902, %v1021
      %v1035 = vadd.f32 %v903, %v966
      %v1036 = vadd.f32 %v904, %v995
      %v1037 = vadd.f32 %v905, %v1024
      %s1038 = scalar_lea.vmem %s2, 160
      %v1039 = vld [vmem:[%s1038] sm:$0xff]
      %v1040 = vld [vmem:[%s1038 + $0x8] sm:$0xff]
      %v1041 = vld [vmem:[%s1038 + $0x10] sm:$0xff]
      %v1042 = vld [vmem:[%s1038 + $0x18] sm:$0xff]
      %v1043 = vld [vmem:[#allocation2 + $0x4] sm:$0x33]
      %v1044 = vld [vmem:[#allocation2 + $0xc] sm:$0x33]
      %1047 = vst [vmem:[#allocation1] ss:$2 sm:$0xff] %v1043
      %s1048 = scalar_lea.vmem [#allocation1], 16
      %1049 = vst [vmem:[%s1048] ss:$2 sm:$0xff] %v1044
      %v1050 = vld.sshfl [vmem:[#allocation1] sm:$0xff pattern:$0x75316420]
      %v1051 = vld.sshfl [vmem:[#allocation1 + $0x8] sm:$0xff pattern:$0x75316420]
      %v1052 = vld.sshfl [vmem:[#allocation1 + $0x10] sm:$0xff pattern:$0x75316420]
      %v1053 = vld.sshfl [vmem:[#allocation1 + $0x18] sm:$0xff pattern:$0x75316420]
      %1054 = vrot.lane.b32.xlu0 %v1050, 127
      %v1055 = vpop.permute.xlu0 %1054
      %1056 = vrot.lane.b32.xlu0 %v1051, 127
      %v1057 = vpop.permute.xlu0 %1056
      %1058 = vrot.lane.b32.xlu0 %v1052, 127
      %v1059 = vpop.permute.xlu0 %1058
      %1060 = vrot.lane.b32.xlu0 %v1053, 127
      %v1061 = vpop.permute.xlu0 %1060
      %vm1062 = vcmask 1039360
      %v1063 = vsel %vm1062, %v1055, %v1057
      %v1064 = vsel %vm1062, %v1057, %v1059
      %v1065 = vsel %vm1062, %v1059, %v1061
      %v1067 = vsel %vm385, %v1039, 0
      %v1070 = vsel %vm385, %v1040, 0
      %v1073 = vsel %vm385, %v1041, 0
      %v1076 = vsel %vm385, %v1042, 0
      %v1078 = vsel %vm398, %v1063, 0
      %v1080 = vsel %vm398, %v1064, 0
      %v1082 = vsel %vm398, %v1065, 0
      %1084 = vmatpush.msra.mxu0 0.0
      %1085 = vmatpush.msra.mxu0 0.0
      %1086 = vmatpush.msra.mxu0 0.0
      %1087 = vmatpush.msra.mxu0 0.0
      %1088 = vmatpush.msra.mxu0 0.0
      %1089 = vmatpush.msra.mxu0 0.0
      %1090 = vmatpush.msra.mxu0 0.0
      %1091 = vmatpush.msra.mxu0 0.0
      %1092 = vmatpush.msra.mxu0 0.0
      %1093 = vmatpush.msra.mxu0 0.0
      %1094 = vmatpush.msra.mxu0 0.0
      %1095 = vmatpush.msra.mxu0 0.0
      %1096 = vmatpush.msra.mxu0 0.0
      %1097 = vmatpush.msra.mxu0 0.0
      %1098 = vmatpush.msra.mxu0 0.0
      %1099 = vmatpush.msra.mxu0 %v1078
      %1100 = vmatmul.f32.gmra.mxu0 %v1067
      %v1101 = vpop.f32.mrf.mxu0
      %v1102 = vadd.f32 0.0, %v1101
      %1103 = vmatmul.f32.gmra.mxu0 %v1070
      %v1104 = vpop.f32.mrf.mxu0
      %v1105 = vadd.f32 0.0, %v1104
      %1106 = vmatmul.f32.gmra.mxu0 %v1073
      %v1107 = vpop.f32.mrf.mxu0
      %v1108 = vadd.f32 0.0, %v1107
      %1109 = vmatmul.f32.gmra.mxu0 %v1076
      %v1110 = vpop.f32.mrf.mxu0
      %v1111 = vadd.f32 0.0, %v1110
      %1112 = vdwg.mxu0
      %1113 = vmatpush.msra.mxu0 0.0
      %1114 = vmatpush.msra.mxu0 0.0
      %1115 = vmatpush.msra.mxu0 0.0
      %1116 = vmatpush.msra.mxu0 0.0
      %1117 = vmatpush.msra.mxu0 0.0
      %1118 = vmatpush.msra.mxu0 0.0
      %1119 = vmatpush.msra.mxu0 0.0
      %1120 = vmatpush.msra.mxu0 0.0
      %1121 = vmatpush.msra.mxu0 0.0
      %1122 = vmatpush.msra.mxu0 0.0
      %1123 = vmatpush.msra.mxu0 0.0
      %1124 = vmatpush.msra.mxu0 0.0
      %1125 = vmatpush.msra.mxu0 0.0
      %1126 = vmatpush.msra.mxu0 0.0
      %1127 = vmatpush.msra.mxu0 0.0
      %1128 = vmatpush.msra.mxu0 %v1080
      %1129 = vmatmul.f32.gmra.mxu0 %v1067
      %v1130 = vpop.f32.mrf.mxu0
      %v1131 = vadd.f32 0.0, %v1130
      %1132 = vmatmul.f32.gmra.mxu0 %v1070
      %v1133 = vpop.f32.mrf.mxu0
      %v1134 = vadd.f32 0.0, %v1133
      %1135 = vmatmul.f32.gmra.mxu0 %v1073
      %v1136 = vpop.f32.mrf.mxu0
      %v1137 = vadd.f32 0.0, %v1136
      %1138 = vmatmul.f32.gmra.mxu0 %v1076
      %v1139 = vpop.f32.mrf.mxu0
      %v1140 = vadd.f32 0.0, %v1139
      %1141 = vdwg.mxu0
      %1142 = vmatpush.msra.mxu0 0.0
      %1143 = vmatpush.msra.mxu0 0.0
      %1144 = vmatpush.msra.mxu0 0.0
      %1145 = vmatpush.msra.mxu0 0.0
      %1146 = vmatpush.msra.mxu0 0.0
      %1147 = vmatpush.msra.mxu0 0.0
      %1148 = vmatpush.msra.mxu0 0.0
      %1149 = vmatpush.msra.mxu0 0.0
      %1150 = vmatpush.msra.mxu0 0.0
      %1151 = vmatpush.msra.mxu0 0.0
      %1152 = vmatpush.msra.mxu0 0.0
      %1153 = vmatpush.msra.mxu0 0.0
      %1154 = vmatpush.msra.mxu0 0.0
      %1155 = vmatpush.msra.mxu0 0.0
      %1156 = vmatpush.msra.mxu0 0.0
      %1157 = vmatpush.msra.mxu0 %v1082
      %1158 = vmatmul.f32.gmra.mxu0 %v1067
      %v1159 = vpop.f32.mrf.mxu0
      %v1160 = vadd.f32 0.0, %v1159
      %1161 = vmatmul.f32.gmra.mxu0 %v1070
      %v1162 = vpop.f32.mrf.mxu0
      %v1163 = vadd.f32 0.0, %v1162
      %1164 = vmatmul.f32.gmra.mxu0 %v1073
      %v1165 = vpop.f32.mrf.mxu0
      %v1166 = vadd.f32 0.0, %v1165
      %1167 = vmatmul.f32.gmra.mxu0 %v1076
      %v1168 = vpop.f32.mrf.mxu0
      %v1169 = vadd.f32 0.0, %v1168
      %1170 = vdwg.mxu0
      %v1171 = vadd.f32 %v1026, %v1102
      %v1172 = vadd.f32 %v1027, %v1131
      %v1173 = vadd.f32 %v1028, %v1160
      %v1174 = vadd.f32 %v1029, %v1105
      %v1175 = vadd.f32 %v1030, %v1134
      %v1176 = vadd.f32 %v1031, %v1163
      %v1177 = vadd.f32 %v1032, %v1108
      %v1178 = vadd.f32 %v1033, %v1137
      %v1179 = vadd.f32 %v1034, %v1166
      %v1180 = vadd.f32 %v1035, %v1111
      %v1181 = vadd.f32 %v1036, %v1140
      %v1182 = vadd.f32 %v1037, %v1169
      %s1183 = scalar_lea.vmem %s2, 192
      %v1184 = vld [vmem:[%s1183] sm:$0xff]
      %v1185 = vld [vmem:[%s1183 + $0x8] sm:$0xff]
      %v1186 = vld [vmem:[%s1183 + $0x10] sm:$0xff]
      %v1187 = vld [vmem:[%s1183 + $0x18] sm:$0xff]
      %v1188 = vld [vmem:[#allocation2 + $0x4] sm:$0x33]
      %v1189 = vld [vmem:[#allocation2 + $0xc] sm:$0x33]
      %1192 = vst [vmem:[#allocation1] ss:$2 sm:$0xff] %v1188
      %s1193 = scalar_lea.vmem [#allocation1], 16
      %1194 = vst [vmem:[%s1193] ss:$2 sm:$0xff] %v1189
      %v1195 = vld.sshfl [vmem:[#allocation1] sm:$0xff pattern:$0x75316420]
      %v1196 = vld.sshfl [vmem:[#allocation1 + $0x8] sm:$0xff pattern:$0x75316420]
      %v1197 = vld.sshfl [vmem:[#allocation1 + $0x10] sm:$0xff pattern:$0x75316420]
      %v1198 = vld.sshfl [vmem:[#allocation1 + $0x18] sm:$0xff pattern:$0x75316420]
      %1199 = vrot.lane.b32.xlu0 %v1195, 111
      %v1200 = vpop.permute.xlu0 %1199
      %1201 = vrot.lane.b32.xlu0 %v1196, 111
      %v1202 = vpop.permute.xlu0 %1201
      %1203 = vrot.lane.b32.xlu0 %v1197, 111
      %v1204 = vpop.permute.xlu0 %1203
      %1205 = vrot.lane.b32.xlu0 %v1198, 111
      %v1206 = vpop.permute.xlu0 %1205
      %vm1207 = vcmask 908288
      %v1208 = vsel %vm1207, %v1200, %v1202
      %v1209 = vsel %vm1207, %v1202, %v1204
      %v1210 = vsel %vm1207, %v1204, %v1206
      %v1212 = vsel %vm385, %v1184, 0
      %v1215 = vsel %vm385, %v1185, 0
      %v1218 = vsel %vm385, %v1186, 0
      %v1221 = vsel %vm385, %v1187, 0
      %v1223 = vsel %vm398, %v1208, 0
      %v1225 = vsel %vm398, %v1209, 0
      %v1227 = vsel %vm398, %v1210, 0
      %1229 = vmatpush.msra.mxu0 0.0
      %1230 = vmatpush.msra.mxu0 0.0
      %1231 = vmatpush.msra.mxu0 0.0
      %1232 = vmatpush.msra.mxu0 0.0
      %1233 = vmatpush.msra.mxu0 0.0
      %1234 = vmatpush.msra.mxu0 0.0
      %1235 = vmatpush.msra.mxu0 0.0
      %1236 = vmatpush.msra.mxu0 0.0
      %1237 = vmatpush.msra.mxu0 0.0
      %1238 = vmatpush.msra.mxu0 0.0
      %1239 = vmatpush.msra.mxu0 0.0
      %1240 = vmatpush.msra.mxu0 0.0
      %1241 = vmatpush.msra.mxu0 0.0
      %1242 = vmatpush.msra.mxu0 0.0
      %1243 = vmatpush.msra.mxu0 0.0
      %1244 = vmatpush.msra.mxu0 %v1223
      %1245 = vmatmul.f32.gmra.mxu0 %v1212
      %v1246 = vpop.f32.mrf.mxu0
      %v1247 = vadd.f32 0.0, %v1246
      %1248 = vmatmul.f32.gmra.mxu0 %v1215
      %v1249 = vpop.f32.mrf.mxu0
      %v1250 = vadd.f32 0.0, %v1249
      %1251 = vmatmul.f32.gmra.mxu0 %v1218
      %v1252 = vpop.f32.mrf.mxu0
      %v1253 = vadd.f32 0.0, %v1252
      %1254 = vmatmul.f32.gmra.mxu0 %v1221
      %v1255 = vpop.f32.mrf.mxu0
      %v1256 = vadd.f32 0.0, %v1255
      %1257 = vdwg.mxu0
      %1258 = vmatpush.msra.mxu0 0.0
      %1259 = vmatpush.msra.mxu0 0.0
      %1260 = vmatpush.msra.mxu0 0.0
      %1261 = vmatpush.msra.mxu0 0.0
      %1262 = vmatpush.msra.mxu0 0.0
      %1263 = vmatpush.msra.mxu0 0.0
      %1264 = vmatpush.msra.mxu0 0.0
      %1265 = vmatpush.msra.mxu0 0.0
      %1266 = vmatpush.msra.mxu0 0.0
      %1267 = vmatpush.msra.mxu0 0.0
      %1268 = vmatpush.msra.mxu0 0.0
      %1269 = vmatpush.msra.mxu0 0.0
      %1270 = vmatpush.msra.mxu0 0.0
      %1271 = vmatpush.msra.mxu0 0.0
      %1272 = vmatpush.msra.mxu0 0.0
      %1273 = vmatpush.msra.mxu0 %v1225
      %1274 = vmatmul.f32.gmra.mxu0 %v1212
      %v1275 = vpop.f32.mrf.mxu0
      %v1276 = vadd.f32 0.0, %v1275
      %1277 = vmatmul.f32.gmra.mxu0 %v1215
      %v1278 = vpop.f32.mrf.mxu0
      %v1279 = vadd.f32 0.0, %v1278
      %1280 = vmatmul.f32.gmra.mxu0 %v1218
      %v1281 = vpop.f32.mrf.mxu0
      %v1282 = vadd.f32 0.0, %v1281
      %1283 = vmatmul.f32.gmra.mxu0 %v1221
      %v1284 = vpop.f32.mrf.mxu0
      %v1285 = vadd.f32 0.0, %v1284
      %1286 = vdwg.mxu0
      %1287 = vmatpush.msra.mxu0 0.0
      %1288 = vmatpush.msra.mxu0 0.0
      %1289 = vmatpush.msra.mxu0 0.0
      %1290 = vmatpush.msra.mxu0 0.0
      %1291 = vmatpush.msra.mxu0 0.0
      %1292 = vmatpush.msra.mxu0 0.0
      %1293 = vmatpush.msra.mxu0 0.0
      %1294 = vmatpush.msra.mxu0 0.0
      %1295 = vmatpush.msra.mxu0 0.0
      %1296 = vmatpush.msra.mxu0 0.0
      %1297 = vmatpush.msra.mxu0 0.0
      %1298 = vmatpush.msra.mxu0 0.0
      %1299 = vmatpush.msra.mxu0 0.0
      %1300 = vmatpush.msra.mxu0 0.0
      %1301 = vmatpush.msra.mxu0 0.0
      %1302 = vmatpush.msra.mxu0 %v1227
      %1303 = vmatmul.f32.gmra.mxu0 %v1212
      %v1304 = vpop.f32.mrf.mxu0
      %v1305 = vadd.f32 0.0, %v1304
      %1306 = vmatmul.f32.gmra.mxu0 %v1215
      %v1307 = vpop.f32.mrf.mxu0
      %v1308 = vadd.f32 0.0, %v1307
      %1309 = vmatmul.f32.gmra.mxu0 %v1218
      %v1310 = vpop.f32.mrf.mxu0
      %v1311 = vadd.f32 0.0, %v1310
      %1312 = vmatmul.f32.gmra.mxu0 %v1221
      %v1313 = vpop.f32.mrf.mxu0
      %v1314 = vadd.f32 0.0, %v1313
      %1315 = vdwg.mxu0
      %v1316 = vadd.f32 %v1171, %v1247
      %v1317 = vadd.f32 %v1172, %v1276
      %v1318 = vadd.f32 %v1173, %v1305
      %v1319 = vadd.f32 %v1174, %v1250
      %v1320 = vadd.f32 %v1175, %v1279
      %v1321 = vadd.f32 %v1176, %v1308
      %v1322 = vadd.f32 %v1177, %v1253
      %v1323 = vadd.f32 %v1178, %v1282
      %v1324 = vadd.f32 %v1179, %v1311
      %v1325 = vadd.f32 %v1180, %v1256
      %v1326 = vadd.f32 %v1181, %v1285
      %v1327 = vadd.f32 %v1182, %v1314
      %s1328 = scalar_lea.vmem %s2, 224
      %v1329 = vld [vmem:[%s1328] sm:$0xff]
      %v1330 = vld [vmem:[%s1328 + $0x8] sm:$0xff]
      %v1331 = vld [vmem:[%s1328 + $0x10] sm:$0xff]
      %v1332 = vld [vmem:[%s1328 + $0x18] sm:$0xff]
      %v1333 = vld [vmem:[#allocation2 + $0x4] sm:$0x33]
      %v1334 = vld [vmem:[#allocation2 + $0xc] sm:$0x33]
      %1337 = vst [vmem:[#allocation1] ss:$2 sm:$0xff] %v1333
      %s1338 = scalar_lea.vmem [#allocation1], 16
      %1339 = vst [vmem:[%s1338] ss:$2 sm:$0xff] %v1334
      %v1340 = vld.sshfl [vmem:[#allocation1] sm:$0xff pattern:$0x75316420]
      %v1341 = vld.sshfl [vmem:[#allocation1 + $0x8] sm:$0xff pattern:$0x75316420]
      %v1342 = vld.sshfl [vmem:[#allocation1 + $0x10] sm:$0xff pattern:$0x75316420]
      %v1343 = vld.sshfl [vmem:[#allocation1 + $0x18] sm:$0xff pattern:$0x75316420]
      %1344 = vrot.lane.b32.xlu0 %v1340, 110
      %v1345 = vpop.permute.xlu0 %1344
      %1346 = vrot.lane.b32.xlu0 %v1341, 110
      %v1347 = vpop.permute.xlu0 %1346
      %1348 = vrot.lane.b32.xlu0 %v1342, 110
      %v1349 = vpop.permute.xlu0 %1348
      %1350 = vrot.lane.b32.xlu0 %v1343, 110
      %v1351 = vpop.permute.xlu0 %1350
      %vm1352 = vcmask 900096
      %v1353 = vsel %vm1352, %v1345, %v1347
      %v1354 = vsel %vm1352, %v1347, %v1349
      %v1355 = vsel %vm1352, %v1349, %v1351
      %v1357 = vsel %vm385, %v1329, 0
      %v1360 = vsel %vm385, %v1330, 0
      %v1363 = vsel %vm385, %v1331, 0
      %v1366 = vsel %vm385, %v1332, 0
      %v1368 = vsel %vm398, %v1353, 0
      %v1370 = vsel %vm398, %v1354, 0
      %v1372 = vsel %vm398, %v1355, 0
      %1374 = vmatpush.msra.mxu0 0.0
      %1375 = vmatpush.msra.mxu0 0.0
      %1376 = vmatpush.msra.mxu0 0.0
      %1377 = vmatpush.msra.mxu0 0.0
      %1378 = vmatpush.msra.mxu0 0.0
      %1379 = vmatpush.msra.mxu0 0.0
      %1380 = vmatpush.msra.mxu0 0.0
      %1381 = vmatpush.msra.mxu0 0.0
      %1382 = vmatpush.msra.mxu0 0.0
      %1383 = vmatpush.msra.mxu0 0.0
      %1384 = vmatpush.msra.mxu0 0.0
      %1385 = vmatpush.msra.mxu0 0.0
      %1386 = vmatpush.msra.mxu0 0.0
      %1387 = vmatpush.msra.mxu0 0.0
      %1388 = vmatpush.msra.mxu0 0.0
      %1389 = vmatpush.msra.mxu0 %v1368
      %1390 = vmatmul.f32.gmra.mxu0 %v1357
      %v1391 = vpop.f32.mrf.mxu0
      %v1392 = vadd.f32 0.0, %v1391
      %1393 = vmatmul.f32.gmra.mxu0 %v1360
      %v1394 = vpop.f32.mrf.mxu0
      %v1395 = vadd.f32 0.0, %v1394
      %1396 = vmatmul.f32.gmra.mxu0 %v1363
      %v1397 = vpop.f32.mrf.mxu0
      %v1398 = vadd.f32 0.0, %v1397
      %1399 = vmatmul.f32.gmra.mxu0 %v1366
      %v1400 = vpop.f32.mrf.mxu0
      %v1401 = vadd.f32 0.0, %v1400
      %1402 = vdwg.mxu0
      %1403 = vmatpush.msra.mxu0 0.0
      %1404 = vmatpush.msra.mxu0 0.0
      %1405 = vmatpush.msra.mxu0 0.0
      %1406 = vmatpush.msra.mxu0 0.0
      %1407 = vmatpush.msra.mxu0 0.0
      %1408 = vmatpush.msra.mxu0 0.0
      %1409 = vmatpush.msra.mxu0 0.0
      %1410 = vmatpush.msra.mxu0 0.0
      %1411 = vmatpush.msra.mxu0 0.0
      %1412 = vmatpush.msra.mxu0 0.0
      %1413 = vmatpush.msra.mxu0 0.0
      %1414 = vmatpush.msra.mxu0 0.0
      %1415 = vmatpush.msra.mxu0 0.0
      %1416 = vmatpush.msra.mxu0 0.0
      %1417 = vmatpush.msra.mxu0 0.0
      %1418 = vmatpush.msra.mxu0 %v1370
      %1419 = vmatmul.f32.gmra.mxu0 %v1357
      %v1420 = vpop.f32.mrf.mxu0
      %v1421 = vadd.f32 0.0, %v1420
      %1422 = vmatmul.f32.gmra.mxu0 %v1360
      %v1423 = vpop.f32.mrf.mxu0
      %v1424 = vadd.f32 0.0, %v1423
      %1425 = vmatmul.f32.gmra.mxu0 %v1363
      %v1426 = vpop.f32.mrf.mxu0
      %v1427 = vadd.f32 0.0, %v1426
      %1428 = vmatmul.f32.gmra.mxu0 %v1366
      %v1429 = vpop.f32.mrf.mxu0
      %v1430 = vadd.f32 0.0, %v1429
      %1431 = vdwg.mxu0
      %1432 = vmatpush.msra.mxu0 0.0
      %1433 = vmatpush.msra.mxu0 0.0
      %1434 = vmatpush.msra.mxu0 0.0
      %1435 = vmatpush.msra.mxu0 0.0
      %1436 = vmatpush.msra.mxu0 0.0
      %1437 = vmatpush.msra.mxu0 0.0
      %1438 = vmatpush.msra.mxu0 0.0
      %1439 = vmatpush.msra.mxu0 0.0
      %1440 = vmatpush.msra.mxu0 0.0
      %1441 = vmatpush.msra.mxu0 0.0
      %1442 = vmatpush.msra.mxu0 0.0
      %1443 = vmatpush.msra.mxu0 0.0
      %1444 = vmatpush.msra.mxu0 0.0
      %1445 = vmatpush.msra.mxu0 0.0
      %1446 = vmatpush.msra.mxu0 0.0
      %1447 = vmatpush.msra.mxu0 %v1372
      %1448 = vmatmul.f32.gmra.mxu0 %v1357
      %v1449 = vpop.f32.mrf.mxu0
      %v1450 = vadd.f32 0.0, %v1449
      %1451 = vmatmul.f32.gmra.mxu0 %v1360
      %v1452 = vpop.f32.mrf.mxu0
      %v1453 = vadd.f32 0.0, %v1452
      %1454 = vmatmul.f32.gmra.mxu0 %v1363
      %v1455 = vpop.f32.mrf.mxu0
      %v1456 = vadd.f32 0.0, %v1455
      %1457 = vmatmul.f32.gmra.mxu0 %v1366
      %v1458 = vpop.f32.mrf.mxu0
      %v1459 = vadd.f32 0.0, %v1458
      %1460 = vdwg.mxu0
      %v1461 = vadd.f32 %v1316, %v1392
      %v1462 = vadd.f32 %v1317, %v1421
      %v1463 = vadd.f32 %v1318, %v1450
      %v1464 = vadd.f32 %v1319, %v1395
      %v1465 = vadd.f32 %v1320, %v1424
      %v1466 = vadd.f32 %v1321, %v1453
      %v1467 = vadd.f32 %v1322, %v1398
      %v1468 = vadd.f32 %v1323, %v1427
      %v1469 = vadd.f32 %v1324, %v1456
      %v1470 = vadd.f32 %v1325, %v1401
      %v1471 = vadd.f32 %v1326, %v1430
      %v1472 = vadd.f32 %v1327, %v1459
      %s1473 = scalar_lea.vmem %s2, 256
      %v1474 = vld [vmem:[%s1473] sm:$0xff]
      %v1475 = vld [vmem:[%s1473 + $0x8] sm:$0xff]
      %v1476 = vld [vmem:[%s1473 + $0x10] sm:$0xff]
      %v1477 = vld [vmem:[%s1473 + $0x18] sm:$0xff]
      %v1478 = vld [vmem:[#allocation2 + $0x4] sm:$0x33]
      %v1479 = vld [vmem:[#allocation2 + $0xc] sm:$0x33]
      %1482 = vst [vmem:[#allocation1] ss:$2 sm:$0xff] %v1478
      %s1483 = scalar_lea.vmem [#allocation1], 16
      %1484 = vst [vmem:[%s1483] ss:$2 sm:$0xff] %v1479
      %v1485 = vld.sshfl [vmem:[#allocation1] sm:$0xff pattern:$0x75316420]
      %v1486 = vld.sshfl [vmem:[#allocation1 + $0x8] sm:$0xff pattern:$0x75316420]
      %v1487 = vld.sshfl [vmem:[#allocation1 + $0x10] sm:$0xff pattern:$0x75316420]
      %v1488 = vld.sshfl [vmem:[#allocation1 + $0x18] sm:$0xff pattern:$0x75316420]
      %1489 = vrot.lane.b32.xlu0 %v1485, 109
      %v1490 = vpop.permute.xlu0 %1489
      %1491 = vrot.lane.b32.xlu0 %v1486, 109
      %v1492 = vpop.permute.xlu0 %1491
      %1493 = vrot.lane.b32.xlu0 %v1487, 109
      %v1494 = vpop.permute.xlu0 %1493
      %1495 = vrot.lane.b32.xlu0 %v1488, 109
      %v1496 = vpop.permute.xlu0 %1495
      %vm1497 = vcmask 891904
      %v1498 = vsel %vm1497, %v1490, %v1492
      %v1499 = vsel %vm1497, %v1492, %v1494
      %v1500 = vsel %vm1497, %v1494, %v1496
      %v1502 = vsel %vm385, %v1474, 0
      %v1505 = vsel %vm385, %v1475, 0
      %v1508 = vsel %vm385, %v1476, 0
      %v1511 = vsel %vm385, %v1477, 0
      %v1513 = vsel %vm398, %v1498, 0
      %v1515 = vsel %vm398, %v1499, 0
      %v1517 = vsel %vm398, %v1500, 0
      %1519 = vmatpush.msra.mxu0 0.0
      %1520 = vmatpush.msra.mxu0 0.0
      %1521 = vmatpush.msra.mxu0 0.0
      %1522 = vmatpush.msra.mxu0 0.0
      %1523 = vmatpush.msra.mxu0 0.0
      %1524 = vmatpush.msra.mxu0 0.0
      %1525 = vmatpush.msra.mxu0 0.0
      %1526 = vmatpush.msra.mxu0 0.0
      %1527 = vmatpush.msra.mxu0 0.0
      %1528 = vmatpush.msra.mxu0 0.0
      %1529 = vmatpush.msra.mxu0 0.0
      %1530 = vmatpush.msra.mxu0 0.0
      %1531 = vmatpush.msra.mxu0 0.0
      %1532 = vmatpush.msra.mxu0 0.0
      %1533 = vmatpush.msra.mxu0 0.0
      %1534 = vmatpush.msra.mxu0 %v1513
      %1535 = vmatmul.f32.gmra.mxu0 %v1502
      %v1536 = vpop.f32.mrf.mxu0
      %v1537 = vadd.f32 0.0, %v1536
      %1538 = vmatmul.f32.gmra.mxu0 %v1505
      %v1539 = vpop.f32.mrf.mxu0
      %v1540 = vadd.f32 0.0, %v1539
      %1541 = vmatmul.f32.gmra.mxu0 %v1508
      %v1542 = vpop.f32.mrf.mxu0
      %v1543 = vadd.f32 0.0, %v1542
      %1544 = vmatmul.f32.gmra.mxu0 %v1511
      %v1545 = vpop.f32.mrf.mxu0
      %v1546 = vadd.f32 0.0, %v1545
      %1547 = vdwg.mxu0
      %1548 = vmatpush.msra.mxu0 0.0
      %1549 = vmatpush.msra.mxu0 0.0
      %1550 = vmatpush.msra.mxu0 0.0
      %1551 = vmatpush.msra.mxu0 0.0
      %1552 = vmatpush.msra.mxu0 0.0
      %1553 = vmatpush.msra.mxu0 0.0
      %1554 = vmatpush.msra.mxu0 0.0
      %1555 = vmatpush.msra.mxu0 0.0
      %1556 = vmatpush.msra.mxu0 0.0
      %1557 = vmatpush.msra.mxu0 0.0
      %1558 = vmatpush.msra.mxu0 0.0
      %1559 = vmatpush.msra.mxu0 0.0
      %1560 = vmatpush.msra.mxu0 0.0
      %1561 = vmatpush.msra.mxu0 0.0
      %1562 = vmatpush.msra.mxu0 0.0
      %1563 = vmatpush.msra.mxu0 %v1515
      %1564 = vmatmul.f32.gmra.mxu0 %v1502
      %v1565 = vpop.f32.mrf.mxu0
      %v1566 = vadd.f32 0.0, %v1565
      %1567 = vmatmul.f32.gmra.mxu0 %v1505
      %v1568 = vpop.f32.mrf.mxu0
      %v1569 = vadd.f32 0.0, %v1568
      %1570 = vmatmul.f32.gmra.mxu0 %v1508
      %v1571 = vpop.f32.mrf.mxu0
      %v1572 = vadd.f32 0.0, %v1571
      %1573 = vmatmul.f32.gmra.mxu0 %v1511
      %v1574 = vpop.f32.mrf.mxu0
      %v1575 = vadd.f32 0.0, %v1574
      %1576 = vdwg.mxu0
      %1577 = vmatpush.msra.mxu0 0.0
      %1578 = vmatpush.msra.mxu0 0.0
      %1579 = vmatpush.msra.mxu0 0.0
      %1580 = vmatpush.msra.mxu0 0.0
      %1581 = vmatpush.msra.mxu0 0.0
      %1582 = vmatpush.msra.mxu0 0.0
      %1583 = vmatpush.msra.mxu0 0.0
      %1584 = vmatpush.msra.mxu0 0.0
      %1585 = vmatpush.msra.mxu0 0.0
      %1586 = vmatpush.msra.mxu0 0.0
      %1587 = vmatpush.msra.mxu0 0.0
      %1588 = vmatpush.msra.mxu0 0.0
      %1589 = vmatpush.msra.mxu0 0.0
      %1590 = vmatpush.msra.mxu0 0.0
      %1591 = vmatpush.msra.mxu0 0.0
      %1592 = vmatpush.msra.mxu0 %v1517
      %1593 = vmatmul.f32.gmra.mxu0 %v1502
      %v1594 = vpop.f32.mrf.mxu0
      %v1595 = vadd.f32 0.0, %v1594
      %1596 = vmatmul.f32.gmra.mxu0 %v1505
      %v1597 = vpop.f32.mrf.mxu0
      %v1598 = vadd.f32 0.0, %v1597
      %1599 = vmatmul.f32.gmra.mxu0 %v1508
      %v1600 = vpop.f32.mrf.mxu0
      %v1601 = vadd.f32 0.0, %v1600
      %1602 = vmatmul.f32.gmra.mxu0 %v1511
      %v1603 = vpop.f32.mrf.mxu0
      %v1604 = vadd.f32 0.0, %v1603
      %1605 = vdwg.mxu0
      %v1606 = vadd.f32 %v1461, %v1537
      %v1607 = vadd.f32 %v1462, %v1566
      %v1608 = vadd.f32 %v1463, %v1595
      %v1609 = vadd.f32 %v1464, %v1540
      %v1610 = vadd.f32 %v1465, %v1569
      %v1611 = vadd.f32 %v1466, %v1598
      %v1612 = vadd.f32 %v1467, %v1543
      %v1613 = vadd.f32 %v1468, %v1572
      %v1614 = vadd.f32 %v1469, %v1601
      %v1615 = vadd.f32 %v1470, %v1546
      %v1616 = vadd.f32 %v1471, %v1575
      %v1617 = vadd.f32 %v1472, %v1604
      %v1618 = vld [vmem:[%s3] sm:$0xff]
      %v1619 = vld [vmem:[%s3 + $0x8] sm:$0xff]
      %v1620 = vld [vmem:[%s3 + $0x10] sm:$0xff]
      %v1621 = vld [vmem:[%s3 + $0x18] sm:$0xff]
      %1623 = vset.pattern.permute.xlu0 0
      %1624 = vperm.xlu0 %1623, %v1618
      %v1625 = vpop.permute.xlu0 %1624
      %1628 = vset.pattern.permute.xlu0 0
      %1629 = vperm.xlu0 %1628, %v1619
      %v1630 = vpop.permute.xlu0 %1629
      %1633 = vset.pattern.permute.xlu0 0
      %1634 = vperm.xlu0 %1633, %v1620
      %v1635 = vpop.permute.xlu0 %1634
      %1638 = vset.pattern.permute.xlu0 0
      %1639 = vperm.xlu0 %1638, %v1621
      %v1640 = vpop.permute.xlu0 %1639
      %v1642 = vadd.f32 %v1606, %v1625
      %v1643 = vadd.f32 %v1607, %v1625
      %v1644 = vadd.f32 %v1608, %v1625
      %v1645 = vadd.f32 %v1609, %v1630
      %v1646 = vadd.f32 %v1610, %v1630
      %v1647 = vadd.f32 %v1611, %v1630
      %v1648 = vadd.f32 %v1612, %v1635
      %v1649 = vadd.f32 %v1613, %v1635
      %v1650 = vadd.f32 %v1614, %v1635
      %v1651 = vadd.f32 %v1615, %v1640
      %v1652 = vadd.f32 %v1616, %v1640
      %v1653 = vadd.f32 %v1617, %v1640
      %v1654 = vmax.f32 %v1642, 0.0
      %v1655 = vmax.f32 %v1643, 0.0
      %v1656 = vmax.f32 %v1644, 0.0
      %v1657 = vmax.f32 %v1645, 0.0
      %v1658 = vmax.f32 %v1646, 0.0
      %v1659 = vmax.f32 %v1647, 0.0
      %v1660 = vmax.f32 %v1648, 0.0
      %v1661 = vmax.f32 %v1649, 0.0
      %v1662 = vmax.f32 %v1650, 0.0
      %v1663 = vmax.f32 %v1651, 0.0
      %v1664 = vmax.f32 %v1652, 0.0
      %v1665 = vmax.f32 %v1653, 0.0
      %v1666 = vld [vmem:[%s4] sm:$0xff]
      %v1667 = vld [vmem:[%s4 + $0x8] sm:$0xff]
      %v1668 = vld [vmem:[%s4 + $0x10] sm:$0xff]
      %v1669 = vld [vmem:[%s4 + $0x18] sm:$0xff]
      %v1670 = vld [vmem:[%s5] sm:$0xff]
      %v1671 = vld [vmem:[%s5 + $0x8] sm:$0xff]
      %v1672 = vld [vmem:[%s5 + $0x10] sm:$0xff]
      %v1673 = vld [vmem:[%s5 + $0x18] sm:$0xff]
      %1675 = vset.pattern.permute.xlu0 0
      %1676 = vperm.xlu0 %1675, %v1670
      %v1677 = vpop.permute.xlu0 %1676
      %1680 = vset.pattern.permute.xlu0 0
      %1681 = vperm.xlu0 %1680, %v1671
      %v1682 = vpop.permute.xlu0 %1681
      %1685 = vset.pattern.permute.xlu0 0
      %1686 = vperm.xlu0 %1685, %v1672
      %v1687 = vpop.permute.xlu0 %1686
      %1690 = vset.pattern.permute.xlu0 0
      %1691 = vperm.xlu0 %1690, %v1673
      %v1692 = vpop.permute.xlu0 %1691
      %vm1694 = vcmask 261120
      %v1696 = vsel %vm1694, %v1666, 0
      %v1699 = vsel %vm1694, %v1667, 0
      %v1702 = vsel %vm1694, %v1668, 0
      %v1705 = vsel %vm1694, %v1669, 0
      %1707 = vmatpush.msra.mxu0 0.0
      %1708 = vmatpush.msra.mxu0 0.0
      %1709 = vmatpush.msra.mxu0 0.0
      %1710 = vmatpush.msra.mxu0 0.0
      %1711 = vmatpush.msra.mxu0 0.0
      %1712 = vmatpush.msra.mxu0 0.0
      %1713 = vmatpush.msra.mxu0 0.0
      %1714 = vmatpush.msra.mxu0 0.0
      %1715 = vmatpush.msra.mxu0 0.0
      %1716 = vmatpush.msra.mxu0 0.0
      %1717 = vmatpush.msra.mxu0 0.0
      %1718 = vmatpush.msra.mxu0 0.0
      %1719 = vmatpush.msra.mxu0 %v1663
      %1720 = vmatpush.msra.mxu0 %v1660
      %1721 = vmatpush.msra.mxu0 %v1657
      %1722 = vmatpush.msra.mxu0 %v1654
      %1723 = vmatmul.f32.gmra.mxu0 %v1696
      %v1724 = vpop.f32.mrf.mxu0
      %v1725 = vadd.f32 %v1677, %v1724
      %1726 = vmatmul.f32.gmra.mxu0 %v1699
      %v1727 = vpop.f32.mrf.mxu0
      %v1728 = vadd.f32 %v1682, %v1727
      %1729 = vmatmul.f32.gmra.mxu0 %v1702
      %v1730 = vpop.f32.mrf.mxu0
      %v1731 = vadd.f32 %v1687, %v1730
      %1732 = vmatmul.f32.gmra.mxu0 %v1705
      %v1733 = vpop.f32.mrf.mxu0
      %v1734 = vadd.f32 %v1692, %v1733
      %1735 = vdwg.mxu0
      %1736 = vmatpush.msra.mxu0 0.0
      %1737 = vmatpush.msra.mxu0 0.0
      %1738 = vmatpush.msra.mxu0 0.0
      %1739 = vmatpush.msra.mxu0 0.0
      %1740 = vmatpush.msra.mxu0 0.0
      %1741 = vmatpush.msra.mxu0 0.0
      %1742 = vmatpush.msra.mxu0 0.0
      %1743 = vmatpush.msra.mxu0 0.0
      %1744 = vmatpush.msra.mxu0 0.0
      %1745 = vmatpush.msra.mxu0 0.0
      %1746 = vmatpush.msra.mxu0 0.0
      %1747 = vmatpush.msra.mxu0 0.0
      %1748 = vmatpush.msra.mxu0 %v1664
      %1749 = vmatpush.msra.mxu0 %v1661
      %1750 = vmatpush.msra.mxu0 %v1658
      %1751 = vmatpush.msra.mxu0 %v1655
      %1752 = vmatmul.f32.gmra.mxu0 %v1696
      %v1753 = vpop.f32.mrf.mxu0
      %v1754 = vadd.f32 %v1677, %v1753
      %1755 = vmatmul.f32.gmra.mxu0 %v1699
      %v1756 = vpop.f32.mrf.mxu0
      %v1757 = vadd.f32 %v1682, %v1756
      %1758 = vmatmul.f32.gmra.mxu0 %v1702
      %v1759 = vpop.f32.mrf.mxu0
      %v1760 = vadd.f32 %v1687, %v1759
      %1761 = vmatmul.f32.gmra.mxu0 %v1705
      %v1762 = vpop.f32.mrf.mxu0
      %v1763 = vadd.f32 %v1692, %v1762
      %1764 = vdwg.mxu0
      %1765 = vmatpush.msra.mxu0 0.0
      %1766 = vmatpush.msra.mxu0 0.0
      %1767 = vmatpush.msra.mxu0 0.0
      %1768 = vmatpush.msra.mxu0 0.0
      %1769 = vmatpush.msra.mxu0 0.0
      %1770 = vmatpush.msra.mxu0 0.0
      %1771 = vmatpush.msra.mxu0 0.0
      %1772 = vmatpush.msra.mxu0 0.0
      %1773 = vmatpush.msra.mxu0 0.0
      %1774 = vmatpush.msra.mxu0 0.0
      %1775 = vmatpush.msra.mxu0 0.0
      %1776 = vmatpush.msra.mxu0 0.0
      %1777 = vmatpush.msra.mxu0 %v1665
      %1778 = vmatpush.msra.mxu0 %v1662
      %1779 = vmatpush.msra.mxu0 %v1659
      %1780 = vmatpush.msra.mxu0 %v1656
      %1781 = vmatmul.f32.gmra.mxu0 %v1696
      %v1782 = vpop.f32.mrf.mxu0
      %v1783 = vadd.f32 %v1677, %v1782
      %1784 = vmatmul.f32.gmra.mxu0 %v1699
      %v1785 = vpop.f32.mrf.mxu0
      %v1786 = vadd.f32 %v1682, %v1785
      %1787 = vmatmul.f32.gmra.mxu0 %v1702
      %v1788 = vpop.f32.mrf.mxu0
      %v1789 = vadd.f32 %v1687, %v1788
      %1790 = vmatmul.f32.gmra.mxu0 %v1705
      %v1791 = vpop.f32.mrf.mxu0
      %v1792 = vadd.f32 %v1692, %v1791
      %1793 = vdwg.mxu0
      %v1794 = vmax.f32 %v1725, 0.0
      %v1795 = vmax.f32 %v1754, 0.0
      %v1796 = vmax.f32 %v1783, 0.0
      %v1797 = vmax.f32 %v1728, 0.0
      %v1798 = vmax.f32 %v1757, 0.0
      %v1799 = vmax.f32 %v1786, 0.0
      %v1800 = vmax.f32 %v1731, 0.0
      %v1801 = vmax.f32 %v1760, 0.0
      %v1802 = vmax.f32 %v1789, 0.0
      %v1803 = vmax.f32 %v1734, 0.0
      %v1804 = vmax.f32 %v1763, 0.0
      %v1805 = vmax.f32 %v1792, 0.0
      %v1806 = vld [vmem:[%s1] sm:$0x7]
      %vm1807 = vcmp.ne.f32.partialorder %v1806, 0.0
      %v1808 = vsel %vm1807, 1, 0
      %v1809 = vperm.slane %v1808, 0
      %v1810 = vperm.slane %v1808, 1
      %v1811 = vperm.slane %v1808, 2
      %vm1812 = vcmp.eq.s32.totalorder %v1809, 1
      %vm1813 = vcmp.eq.s32.totalorder %v1810, 1
      %vm1814 = vcmp.eq.s32.totalorder %v1811, 1
      %v1815 = vsel %vm1812, 1.0, %v1794
      %v1816 = vsel %vm1813, 1.0, %v1795
      %v1817 = vsel %vm1814, 1.0, %v1796
      %v1818 = vsel %vm1812, 1.0, %v1797
      %v1819 = vsel %vm1813, 1.0, %v1798
      %v1820 = vsel %vm1814, 1.0, %v1799
      %v1821 = vsel %vm1812, 1.0, %v1800
      %v1822 = vsel %vm1813, 1.0, %v1801
      %v1823 = vsel %vm1814, 1.0, %v1802
      %v1824 = vsel %vm1812, 1.0, %v1803
      %v1825 = vsel %vm1813, 1.0, %v1804
      %v1826 = vsel %vm1814, 1.0, %v1805
      %1827 = vst [vmem:[#allocation3 + $0x8] sm:$0xff] %v1815
      %1828 = vst [vmem:[#allocation3 + $0x10] sm:$0xff] %v1816
      %1829 = vst [vmem:[#allocation3 + $0x18] sm:$0xff] %v1817
      %1830 = vst [vmem:[#allocation3 + $0x30] sm:$0xff] %v1818
      %1831 = vst [vmem:[#allocation3 + $0x38] sm:$0xff] %v1819
      %1832 = vst [vmem:[#allocation3 + $0x40] sm:$0xff] %v1820
      %1833 = vst [vmem:[#allocation3 + $0x58] sm:$0xff] %v1821
      %1834 = vst [vmem:[#allocation3 + $0x60] sm:$0xff] %v1822
      %1835 = vst [vmem:[#allocation3 + $0x68] sm:$0xff] %v1823
      %1836 = vst [vmem:[#allocation3 + $0x80] sm:$0xff] %v1824
      %1837 = vst [vmem:[#allocation3 + $0x88] sm:$0xff] %v1825
      %1838 = vst [vmem:[#allocation3 + $0x90] sm:$0xff] %v1826
      %v1839 = vld [vmem:[%s6] sm:$0xf]
      %v1840 = vld [vmem:[#allocation3] sm:$0xff]
      %v1841 = vld [vmem:[#allocation3 + $0x8] sm:$0xff]
      %v1842 = vld [vmem:[#allocation3 + $0x10] sm:$0xff]
      %v1843 = vld [vmem:[#allocation3 + $0x18] sm:$0xff]
      %v1844 = vld [vmem:[#allocation3 + $0x28] sm:$0xff]
      %v1845 = vld [vmem:[#allocation3 + $0x30] sm:$0xff]
      %v1846 = vld [vmem:[#allocation3 + $0x38] sm:$0xff]
      %v1847 = vld [vmem:[#allocation3 + $0x40] sm:$0xff]
      %v1848 = vld [vmem:[#allocation3 + $0x50] sm:$0xff]
      %v1849 = vld [vmem:[#allocation3 + $0x58] sm:$0xff]
      %v1850 = vld [vmem:[#allocation3 + $0x60] sm:$0xff]
      %v1851 = vld [vmem:[#allocation3 + $0x68] sm:$0xff]
      %v1852 = vld [vmem:[#allocation3 + $0x78] sm:$0xff]
      %v1853 = vld [vmem:[#allocation3 + $0x80] sm:$0xff]
      %v1854 = vld [vmem:[#allocation3 + $0x88] sm:$0xff]
      %v1855 = vld [vmem:[#allocation3 + $0x90] sm:$0xff]
      %s1856 = scalar_lea.vmem %s6, 4
      %v1857 = vld [vmem:[%s1856] sm:$0xf]
      %1874 = vrot.lane.b32.xlu0 %v1840, 18
      %v1875 = vpop.permute.xlu0 %1874
      %1876 = vrot.lane.b32.xlu0 %v1841, 18
      %v1877 = vpop.permute.xlu0 %1876
      %1878 = vrot.lane.b32.xlu0 %v1842, 18
      %v1879 = vpop.permute.xlu0 %1878
      %1880 = vrot.lane.b32.xlu0 %v1843, 18
      %v1881 = vpop.permute.xlu0 %1880
      %1882 = vrot.lane.b32.xlu0 %v1844, 18
      %v1883 = vpop.permute.xlu0 %1882
      %1884 = vrot.lane.b32.xlu0 %v1845, 18
      %v1885 = vpop.permute.xlu0 %1884
      %1886 = vrot.lane.b32.xlu0 %v1846, 18
      %v1887 = vpop.permute.xlu0 %1886
      %1888 = vrot.lane.b32.xlu0 %v1847, 18
      %v1889 = vpop.permute.xlu0 %1888
      %1890 = vrot.lane.b32.xlu0 %v1848, 18
      %v1891 = vpop.permute.xlu0 %1890
      %1892 = vrot.lane.b32.xlu0 %v1849, 18
      %v1893 = vpop.permute.xlu0 %1892
      %1894 = vrot.lane.b32.xlu0 %v1850, 18
      %v1895 = vpop.permute.xlu0 %1894
      %1896 = vrot.lane.b32.xlu0 %v1851, 18
      %v1897 = vpop.permute.xlu0 %1896
      %1898 = vrot.lane.b32.xlu0 %v1852, 18
      %v1899 = vpop.permute.xlu0 %1898
      %1900 = vrot.lane.b32.xlu0 %v1853, 18
      %v1901 = vpop.permute.xlu0 %1900
      %1902 = vrot.lane.b32.xlu0 %v1854, 18
      %v1903 = vpop.permute.xlu0 %1902
      %1904 = vrot.lane.b32.xlu0 %v1855, 18
      %v1905 = vpop.permute.xlu0 %1904
      %v1906 = vsel %vm381, %v1875, %v1877
      %v1907 = vsel %vm381, %v1877, %v1879
      %v1908 = vsel %vm381, %v1879, %v1881
      %v1909 = vsel %vm381, %v1883, %v1885
      %v1910 = vsel %vm381, %v1885, %v1887
      %v1911 = vsel %vm381, %v1887, %v1889
      %v1912 = vsel %vm381, %v1891, %v1893
      %v1913 = vsel %vm381, %v1893, %v1895
      %v1914 = vsel %vm381, %v1895, %v1897
      %v1915 = vsel %vm381, %v1899, %v1901
      %v1916 = vsel %vm381, %v1901, %v1903
      %v1917 = vsel %vm381, %v1903, %v1905
      %v1931 = vsel %vm1694, %v1857, 0
      %1933 = vmatpush.msra.mxu0 0.0
      %1934 = vmatpush.msra.mxu0 0.0
      %1935 = vmatpush.msra.mxu0 0.0
      %1936 = vmatpush.msra.mxu0 0.0
      %1937 = vmatpush.msra.mxu0 0.0
      %1938 = vmatpush.msra.mxu0 0.0
      %1939 = vmatpush.msra.mxu0 0.0
      %1940 = vmatpush.msra.mxu0 0.0
      %1941 = vmatpush.msra.mxu0 0.0
      %1942 = vmatpush.msra.mxu0 0.0
      %1943 = vmatpush.msra.mxu0 0.0
      %1944 = vmatpush.msra.mxu0 0.0
      %1945 = vmatpush.msra.mxu0 %v1915
      %1946 = vmatpush.msra.mxu0 %v1912
      %1947 = vmatpush.msra.mxu0 %v1909
      %1948 = vmatpush.msra.mxu0 %v1906
      %1949 = vmatmul.f32.gmra.mxu0 %v1931
      %v1950 = vpop.f32.mrf.mxu0
      %v1951 = vadd.f32 0.0, %v1950
      %1952 = vdwg.mxu0
      %1953 = vmatpush.msra.mxu0 0.0
      %1954 = vmatpush.msra.mxu0 0.0
      %1955 = vmatpush.msra.mxu0 0.0
      %1956 = vmatpush.msra.mxu0 0.0
      %1957 = vmatpush.msra.mxu0 0.0
      %1958 = vmatpush.msra.mxu0 0.0
      %1959 = vmatpush.msra.mxu0 0.0
      %1960 = vmatpush.msra.mxu0 0.0
      %1961 = vmatpush.msra.mxu0 0.0
      %1962 = vmatpush.msra.mxu0 0.0
      %1963 = vmatpush.msra.mxu0 0.0
      %1964 = vmatpush.msra.mxu0 0.0
      %1965 = vmatpush.msra.mxu0 %v1916
      %1966 = vmatpush.msra.mxu0 %v1913
      %1967 = vmatpush.msra.mxu0 %v1910
      %1968 = vmatpush.msra.mxu0 %v1907
      %1969 = vmatmul.f32.gmra.mxu0 %v1931
      %v1970 = vpop.f32.mrf.mxu0
      %v1971 = vadd.f32 0.0, %v1970
      %1972 = vdwg.mxu0
      %1973 = vmatpush.msra.mxu0 0.0
      %1974 = vmatpush.msra.mxu0 0.0
      %1975 = vmatpush.msra.mxu0 0.0
      %1976 = vmatpush.msra.mxu0 0.0
      %1977 = vmatpush.msra.mxu0 0.0
      %1978 = vmatpush.msra.mxu0 0.0
      %1979 = vmatpush.msra.mxu0 0.0
      %1980 = vmatpush.msra.mxu0 0.0
      %1981 = vmatpush.msra.mxu0 0.0
      %1982 = vmatpush.msra.mxu0 0.0
      %1983 = vmatpush.msra.mxu0 0.0
      %1984 = vmatpush.msra.mxu0 0.0
      %1985 = vmatpush.msra.mxu0 %v1917
      %1986 = vmatpush.msra.mxu0 %v1914
      %1987 = vmatpush.msra.mxu0 %v1911
      %1988 = vmatpush.msra.mxu0 %v1908
      %1989 = vmatmul.f32.gmra.mxu0 %v1931
      %v1990 = vpop.f32.mrf.mxu0
      %v1991 = vadd.f32 0.0, %v1990
      %1992 = vdwg.mxu0
      %1993 = vrot.lane.b32.xlu0 %v1840, 19
      %v1994 = vpop.permute.xlu0 %1993
      %1995 = vrot.lane.b32.xlu0 %v1841, 19
      %v1996 = vpop.permute.xlu0 %1995
      %1997 = vrot.lane.b32.xlu0 %v1842, 19
      %v1998 = vpop.permute.xlu0 %1997
      %1999 = vrot.lane.b32.xlu0 %v1843, 19
      %v2000 = vpop.permute.xlu0 %1999
      %2001 = vrot.lane.b32.xlu0 %v1844, 19
      %v2002 = vpop.permute.xlu0 %2001
      %2003 = vrot.lane.b32.xlu0 %v1845, 19
      %v2004 = vpop.permute.xlu0 %2003
      %2005 = vrot.lane.b32.xlu0 %v1846, 19
      %v2006 = vpop.permute.xlu0 %2005
      %2007 = vrot.lane.b32.xlu0 %v1847, 19
      %v2008 = vpop.permute.xlu0 %2007
      %2009 = vrot.lane.b32.xlu0 %v1848, 19
      %v2010 = vpop.permute.xlu0 %2009
      %2011 = vrot.lane.b32.xlu0 %v1849, 19
      %v2012 = vpop.permute.xlu0 %2011
      %2013 = vrot.lane.b32.xlu0 %v1850, 19
      %v2014 = vpop.permute.xlu0 %2013
      %2015 = vrot.lane.b32.xlu0 %v1851, 19
      %v2016 = vpop.permute.xlu0 %2015
      %2017 = vrot.lane.b32.xlu0 %v1852, 19
      %v2018 = vpop.permute.xlu0 %2017
      %2019 = vrot.lane.b32.xlu0 %v1853, 19
      %v2020 = vpop.permute.xlu0 %2019
      %2021 = vrot.lane.b32.xlu0 %v1854, 19
      %v2022 = vpop.permute.xlu0 %2021
      %2023 = vrot.lane.b32.xlu0 %v1855, 19
      %v2024 = vpop.permute.xlu0 %2023
      %v2025 = vsel %vm507, %v1994, %v1996
      %v2026 = vsel %vm507, %v1996, %v1998
      %v2027 = vsel %vm507, %v1998, %v2000
      %v2028 = vsel %vm507, %v2002, %v2004
      %v2029 = vsel %vm507, %v2004, %v2006
      %v2030 = vsel %vm507, %v2006, %v2008
      %v2031 = vsel %vm507, %v2010, %v2012
      %v2032 = vsel %vm507, %v2012, %v2014
      %v2033 = vsel %vm507, %v2014, %v2016
      %v2034 = vsel %vm507, %v2018, %v2020
      %v2035 = vsel %vm507, %v2020, %v2022
      %v2036 = vsel %vm507, %v2022, %v2024
      %v2050 = vsel %vm1694, %v1839, 0
      %2052 = vmatpush.msra.mxu0 0.0
      %2053 = vmatpush.msra.mxu0 0.0
      %2054 = vmatpush.msra.mxu0 0.0
      %2055 = vmatpush.msra.mxu0 0.0
      %2056 = vmatpush.msra.mxu0 0.0
      %2057 = vmatpush.msra.mxu0 0.0
      %2058 = vmatpush.msra.mxu0 0.0
      %2059 = vmatpush.msra.mxu0 0.0
      %2060 = vmatpush.msra.mxu0 0.0
      %2061 = vmatpush.msra.mxu0 0.0
      %2062 = vmatpush.msra.mxu0 0.0
      %2063 = vmatpush.msra.mxu0 0.0
      %2064 = vmatpush.msra.mxu0 %v2034
      %2065 = vmatpush.msra.mxu0 %v2031
      %2066 = vmatpush.msra.mxu0 %v2028
      %2067 = vmatpush.msra.mxu0 %v2025
      %2068 = vmatmul.f32.gmra.mxu0 %v2050
      %v2069 = vpop.f32.mrf.mxu0
      %v2070 = vadd.f32 %v1951, %v2069
      %2071 = vdwg.mxu0
      %2072 = vmatpush.msra.mxu0 0.0
      %2073 = vmatpush.msra.mxu0 0.0
      %2074 = vmatpush.msra.mxu0 0.0
      %2075 = vmatpush.msra.mxu0 0.0
      %2076 = vmatpush.msra.mxu0 0.0
      %2077 = vmatpush.msra.mxu0 0.0
      %2078 = vmatpush.msra.mxu0 0.0
      %2079 = vmatpush.msra.mxu0 0.0
      %2080 = vmatpush.msra.mxu0 0.0
      %2081 = vmatpush.msra.mxu0 0.0
      %2082 = vmatpush.msra.mxu0 0.0
      %2083 = vmatpush.msra.mxu0 0.0
      %2084 = vmatpush.msra.mxu0 %v2035
      %2085 = vmatpush.msra.mxu0 %v2032
      %2086 = vmatpush.msra.mxu0 %v2029
      %2087 = vmatpush.msra.mxu0 %v2026
      %2088 = vmatmul.f32.gmra.mxu0 %v2050
      %v2089 = vpop.f32.mrf.mxu0
      %v2090 = vadd.f32 %v1971, %v2089
      %2091 = vdwg.mxu0
      %2092 = vmatpush.msra.mxu0 0.0
      %2093 = vmatpush.msra.mxu0 0.0
      %2094 = vmatpush.msra.mxu0 0.0
      %2095 = vmatpush.msra.mxu0 0.0
      %2096 = vmatpush.msra.mxu0 0.0
      %2097 = vmatpush.msra.mxu0 0.0
      %2098 = vmatpush.msra.mxu0 0.0
      %2099 = vmatpush.msra.mxu0 0.0
      %2100 = vmatpush.msra.mxu0 0.0
      %2101 = vmatpush.msra.mxu0 0.0
      %2102 = vmatpush.msra.mxu0 0.0
      %2103 = vmatpush.msra.mxu0 0.0
      %2104 = vmatpush.msra.mxu0 %v2036
      %2105 = vmatpush.msra.mxu0 %v2033
      %2106 = vmatpush.msra.mxu0 %v2030
      %2107 = vmatpush.msra.mxu0 %v2027
      %2108 = vmatmul.f32.gmra.mxu0 %v2050
      %v2109 = vpop.f32.mrf.mxu0
      %v2110 = vadd.f32 %v1991, %v2109
      %2111 = vdwg.mxu0
      %s2112 = scalar_lea.vmem %s6, 8
      %v2113 = vld [vmem:[%s2112] sm:$0xf]
      %2114 = vrot.lane.b32.xlu0 %v1840, 17
      %v2115 = vpop.permute.xlu0 %2114
      %2116 = vrot.lane.b32.xlu0 %v1841, 17
      %v2117 = vpop.permute.xlu0 %2116
      %2118 = vrot.lane.b32.xlu0 %v1842, 17
      %v2119 = vpop.permute.xlu0 %2118
      %2120 = vrot.lane.b32.xlu0 %v1843, 17
      %v2121 = vpop.permute.xlu0 %2120
      %2122 = vrot.lane.b32.xlu0 %v1844, 17
      %v2123 = vpop.permute.xlu0 %2122
      %2124 = vrot.lane.b32.xlu0 %v1845, 17
      %v2125 = vpop.permute.xlu0 %2124
      %2126 = vrot.lane.b32.xlu0 %v1846, 17
      %v2127 = vpop.permute.xlu0 %2126
      %2128 = vrot.lane.b32.xlu0 %v1847, 17
      %v2129 = vpop.permute.xlu0 %2128
      %2130 = vrot.lane.b32.xlu0 %v1848, 17
      %v2131 = vpop.permute.xlu0 %2130
      %2132 = vrot.lane.b32.xlu0 %v1849, 17
      %v2133 = vpop.permute.xlu0 %2132
      %2134 = vrot.lane.b32.xlu0 %v1850, 17
      %v2135 = vpop.permute.xlu0 %2134
      %2136 = vrot.lane.b32.xlu0 %v1851, 17
      %v2137 = vpop.permute.xlu0 %2136
      %2138 = vrot.lane.b32.xlu0 %v1852, 17
      %v2139 = vpop.permute.xlu0 %2138
      %2140 = vrot.lane.b32.xlu0 %v1853, 17
      %v2141 = vpop.permute.xlu0 %2140
      %2142 = vrot.lane.b32.xlu0 %v1854, 17
      %v2143 = vpop.permute.xlu0 %2142
      %2144 = vrot.lane.b32.xlu0 %v1855, 17
      %v2145 = vpop.permute.xlu0 %2144
      %v2146 = vsel %vm640, %v2115, %v2117
      %v2147 = vsel %vm640, %v2117, %v2119
      %v2148 = vsel %vm640, %v2119, %v2121
      %v2149 = vsel %vm640, %v2123, %v2125
      %v2150 = vsel %vm640, %v2125, %v2127
      %v2151 = vsel %vm640, %v2127, %v2129
      %v2152 = vsel %vm640, %v2131, %v2133
      %v2153 = vsel %vm640, %v2133, %v2135
      %v2154 = vsel %vm640, %v2135, %v2137
      %v2155 = vsel %vm640, %v2139, %v2141
      %v2156 = vsel %vm640, %v2141, %v2143
      %v2157 = vsel %vm640, %v2143, %v2145
      %v2171 = vsel %vm1694, %v2113, 0
      %2173 = vmatpush.msra.mxu0 0.0
      %2174 = vmatpush.msra.mxu0 0.0
      %2175 = vmatpush.msra.mxu0 0.0
      %2176 = vmatpush.msra.mxu0 0.0
      %2177 = vmatpush.msra.mxu0 0.0
      %2178 = vmatpush.msra.mxu0 0.0
      %2179 = vmatpush.msra.mxu0 0.0
      %2180 = vmatpush.msra.mxu0 0.0
      %2181 = vmatpush.msra.mxu0 0.0
      %2182 = vmatpush.msra.mxu0 0.0
      %2183 = vmatpush.msra.mxu0 0.0
      %2184 = vmatpush.msra.mxu0 0.0
      %2185 = vmatpush.msra.mxu0 %v2155
      %2186 = vmatpush.msra.mxu0 %v2152
      %2187 = vmatpush.msra.mxu0 %v2149
      %2188 = vmatpush.msra.mxu0 %v2146
      %2189 = vmatmul.f32.gmra.mxu0 %v2171
      %v2190 = vpop.f32.mrf.mxu0
      %v2191 = vadd.f32 0.0, %v2190
      %2192 = vdwg.mxu0
      %2193 = vmatpush.msra.mxu0 0.0
      %2194 = vmatpush.msra.mxu0 0.0
      %2195 = vmatpush.msra.mxu0 0.0
      %2196 = vmatpush.msra.mxu0 0.0
      %2197 = vmatpush.msra.mxu0 0.0
      %2198 = vmatpush.msra.mxu0 0.0
      %2199 = vmatpush.msra.mxu0 0.0
      %2200 = vmatpush.msra.mxu0 0.0
      %2201 = vmatpush.msra.mxu0 0.0
      %2202 = vmatpush.msra.mxu0 0.0
      %2203 = vmatpush.msra.mxu0 0.0
      %2204 = vmatpush.msra.mxu0 0.0
      %2205 = vmatpush.msra.mxu0 %v2156
      %2206 = vmatpush.msra.mxu0 %v2153
      %2207 = vmatpush.msra.mxu0 %v2150
      %2208 = vmatpush.msra.mxu0 %v2147
      %2209 = vmatmul.f32.gmra.mxu0 %v2171
      %v2210 = vpop.f32.mrf.mxu0
      %v2211 = vadd.f32 0.0, %v2210
      %2212 = vdwg.mxu0
      %2213 = vmatpush.msra.mxu0 0.0
      %2214 = vmatpush.msra.mxu0 0.0
      %2215 = vmatpush.msra.mxu0 0.0
      %2216 = vmatpush.msra.mxu0 0.0
      %2217 = vmatpush.msra.mxu0 0.0
      %2218 = vmatpush.msra.mxu0 0.0
      %2219 = vmatpush.msra.mxu0 0.0
      %2220 = vmatpush.msra.mxu0 0.0
      %2221 = vmatpush.msra.mxu0 0.0
      %2222 = vmatpush.msra.mxu0 0.0
      %2223 = vmatpush.msra.mxu0 0.0
      %2224 = vmatpush.msra.mxu0 0.0
      %2225 = vmatpush.msra.mxu0 %v2157
      %2226 = vmatpush.msra.mxu0 %v2154
      %2227 = vmatpush.msra.mxu0 %v2151
      %2228 = vmatpush.msra.mxu0 %v2148
      %2229 = vmatmul.f32.gmra.mxu0 %v2171
      %v2230 = vpop.f32.mrf.mxu0
      %v2231 = vadd.f32 0.0, %v2230
      %2232 = vdwg.mxu0
      %v2233 = vadd.f32 %v2070, %v2191
      %v2234 = vadd.f32 %v2090, %v2211
      %v2235 = vadd.f32 %v2110, %v2231
      %s2236 = scalar_lea.vmem %s6, 12
      %v2237 = vld [vmem:[%s2236] sm:$0xf]
      %2238 = vrot.lane.b32.xlu0 %v1840, 1
      %v2239 = vpop.permute.xlu0 %2238
      %2240 = vrot.lane.b32.xlu0 %v1841, 1
      %v2241 = vpop.permute.xlu0 %2240
      %2242 = vrot.lane.b32.xlu0 %v1842, 1
      %v2243 = vpop.permute.xlu0 %2242
      %2244 = vrot.lane.b32.xlu0 %v1843, 1
      %v2245 = vpop.permute.xlu0 %2244
      %2246 = vrot.lane.b32.xlu0 %v1844, 1
      %v2247 = vpop.permute.xlu0 %2246
      %2248 = vrot.lane.b32.xlu0 %v1845, 1
      %v2249 = vpop.permute.xlu0 %2248
      %2250 = vrot.lane.b32.xlu0 %v1846, 1
      %v2251 = vpop.permute.xlu0 %2250
      %2252 = vrot.lane.b32.xlu0 %v1847, 1
      %v2253 = vpop.permute.xlu0 %2252
      %2254 = vrot.lane.b32.xlu0 %v1848, 1
      %v2255 = vpop.permute.xlu0 %2254
      %2256 = vrot.lane.b32.xlu0 %v1849, 1
      %v2257 = vpop.permute.xlu0 %2256
      %2258 = vrot.lane.b32.xlu0 %v1850, 1
      %v2259 = vpop.permute.xlu0 %2258
      %2260 = vrot.lane.b32.xlu0 %v1851, 1
      %v2261 = vpop.permute.xlu0 %2260
      %2262 = vrot.lane.b32.xlu0 %v1852, 1
      %v2263 = vpop.permute.xlu0 %2262
      %2264 = vrot.lane.b32.xlu0 %v1853, 1
      %v2265 = vpop.permute.xlu0 %2264
      %2266 = vrot.lane.b32.xlu0 %v1854, 1
      %v2267 = vpop.permute.xlu0 %2266
      %2268 = vrot.lane.b32.xlu0 %v1855, 1
      %v2269 = vpop.permute.xlu0 %2268
      %v2270 = vsel %vm785, %v2239, %v2241
      %v2271 = vsel %vm785, %v2241, %v2243
      %v2272 = vsel %vm785, %v2243, %v2245
      %v2273 = vsel %vm785, %v2247, %v2249
      %v2274 = vsel %vm785, %v2249, %v2251
      %v2275 = vsel %vm785, %v2251, %v2253
      %v2276 = vsel %vm785, %v2255, %v2257
      %v2277 = vsel %vm785, %v2257, %v2259
      %v2278 = vsel %vm785, %v2259, %v2261
      %v2279 = vsel %vm785, %v2263, %v2265
      %v2280 = vsel %vm785, %v2265, %v2267
      %v2281 = vsel %vm785, %v2267, %v2269
      %v2295 = vsel %vm1694, %v2237, 0
      %2297 = vmatpush.msra.mxu0 0.0
      %2298 = vmatpush.msra.mxu0 0.0
      %2299 = vmatpush.msra.mxu0 0.0
      %2300 = vmatpush.msra.mxu0 0.0
      %2301 = vmatpush.msra.mxu0 0.0
      %2302 = vmatpush.msra.mxu0 0.0
      %2303 = vmatpush.msra.mxu0 0.0
      %2304 = vmatpush.msra.mxu0 0.0
      %2305 = vmatpush.msra.mxu0 0.0
      %2306 = vmatpush.msra.mxu0 0.0
      %2307 = vmatpush.msra.mxu0 0.0
      %2308 = vmatpush.msra.mxu0 0.0
      %2309 = vmatpush.msra.mxu0 %v2279
      %2310 = vmatpush.msra.mxu0 %v2276
      %2311 = vmatpush.msra.mxu0 %v2273
      %2312 = vmatpush.msra.mxu0 %v2270
      %2313 = vmatmul.f32.gmra.mxu0 %v2295
      %v2314 = vpop.f32.mrf.mxu0
      %v2315 = vadd.f32 0.0, %v2314
      %2316 = vdwg.mxu0
      %2317 = vmatpush.msra.mxu0 0.0
      %2318 = vmatpush.msra.mxu0 0.0
      %2319 = vmatpush.msra.mxu0 0.0
      %2320 = vmatpush.msra.mxu0 0.0
      %2321 = vmatpush.msra.mxu0 0.0
      %2322 = vmatpush.msra.mxu0 0.0
      %2323 = vmatpush.msra.mxu0 0.0
      %2324 = vmatpush.msra.mxu0 0.0
      %2325 = vmatpush.msra.mxu0 0.0
      %2326 = vmatpush.msra.mxu0 0.0
      %2327 = vmatpush.msra.mxu0 0.0
      %2328 = vmatpush.msra.mxu0 0.0
      %2329 = vmatpush.msra.mxu0 %v2280
      %2330 = vmatpush.msra.mxu0 %v2277
      %2331 = vmatpush.msra.mxu0 %v2274
      %2332 = vmatpush.msra.mxu0 %v2271
      %2333 = vmatmul.f32.gmra.mxu0 %v2295
      %v2334 = vpop.f32.mrf.mxu0
      %v2335 = vadd.f32 0.0, %v2334
      %2336 = vdwg.mxu0
      %2337 = vmatpush.msra.mxu0 0.0
      %2338 = vmatpush.msra.mxu0 0.0
      %2339 = vmatpush.msra.mxu0 0.0
      %2340 = vmatpush.msra.mxu0 0.0
      %2341 = vmatpush.msra.mxu0 0.0
      %2342 = vmatpush.msra.mxu0 0.0
      %2343 = vmatpush.msra.mxu0 0.0
      %2344 = vmatpush.msra.mxu0 0.0
      %2345 = vmatpush.msra.mxu0 0.0
      %2346 = vmatpush.msra.mxu0 0.0
      %2347 = vmatpush.msra.mxu0 0.0
      %2348 = vmatpush.msra.mxu0 0.0
      %2349 = vmatpush.msra.mxu0 %v2281
      %2350 = vmatpush.msra.mxu0 %v2278
      %2351 = vmatpush.msra.mxu0 %v2275
      %2352 = vmatpush.msra.mxu0 %v2272
      %2353 = vmatmul.f32.gmra.mxu0 %v2295
      %v2354 = vpop.f32.mrf.mxu0
      %v2355 = vadd.f32 0.0, %v2354
      %2356 = vdwg.mxu0
      %v2357 = vadd.f32 %v2233, %v2315
      %v2358 = vadd.f32 %v2234, %v2335
      %v2359 = vadd.f32 %v2235, %v2355
      %s2360 = scalar_lea.vmem %s6, 16
      %v2361 = vld [vmem:[%s2360] sm:$0xf]
      %v2363 = vsel %vm1694, %v2361, 0
      %2365 = vmatpush.msra.mxu0 0.0
      %2366 = vmatpush.msra.mxu0 0.0
      %2367 = vmatpush.msra.mxu0 0.0
      %2368 = vmatpush.msra.mxu0 0.0
      %2369 = vmatpush.msra.mxu0 0.0
      %2370 = vmatpush.msra.mxu0 0.0
      %2371 = vmatpush.msra.mxu0 0.0
      %2372 = vmatpush.msra.mxu0 0.0
      %2373 = vmatpush.msra.mxu0 0.0
      %2374 = vmatpush.msra.mxu0 0.0
      %2375 = vmatpush.msra.mxu0 0.0
      %2376 = vmatpush.msra.mxu0 0.0
      %2377 = vmatpush.msra.mxu0 %v1853
      %2378 = vmatpush.msra.mxu0 %v1849
      %2379 = vmatpush.msra.mxu0 %v1845
      %2380 = vmatpush.msra.mxu0 %v1841
      %2381 = vmatmul.f32.gmra.mxu0 %v2363
      %v2382 = vpop.f32.mrf.mxu0
      %v2383 = vadd.f32 0.0, %v2382
      %2384 = vdwg.mxu0
      %2385 = vmatpush.msra.mxu0 0.0
      %2386 = vmatpush.msra.mxu0 0.0
      %2387 = vmatpush.msra.mxu0 0.0
      %2388 = vmatpush.msra.mxu0 0.0
      %2389 = vmatpush.msra.mxu0 0.0
      %2390 = vmatpush.msra.mxu0 0.0
      %2391 = vmatpush.msra.mxu0 0.0
      %2392 = vmatpush.msra.mxu0 0.0
      %2393 = vmatpush.msra.mxu0 0.0
      %2394 = vmatpush.msra.mxu0 0.0
      %2395 = vmatpush.msra.mxu0 0.0
      %2396 = vmatpush.msra.mxu0 0.0
      %2397 = vmatpush.msra.mxu0 %v1854
      %2398 = vmatpush.msra.mxu0 %v1850
      %2399 = vmatpush.msra.mxu0 %v1846
      %2400 = vmatpush.msra.mxu0 %v1842
      %2401 = vmatmul.f32.gmra.mxu0 %v2363
      %v2402 = vpop.f32.mrf.mxu0
      %v2403 = vadd.f32 0.0, %v2402
      %2404 = vdwg.mxu0
      %2405 = vmatpush.msra.mxu0 0.0
      %2406 = vmatpush.msra.mxu0 0.0
      %2407 = vmatpush.msra.mxu0 0.0
      %2408 = vmatpush.msra.mxu0 0.0
      %2409 = vmatpush.msra.mxu0 0.0
      %2410 = vmatpush.msra.mxu0 0.0
      %2411 = vmatpush.msra.mxu0 0.0
      %2412 = vmatpush.msra.mxu0 0.0
      %2413 = vmatpush.msra.mxu0 0.0
      %2414 = vmatpush.msra.mxu0 0.0
      %2415 = vmatpush.msra.mxu0 0.0
      %2416 = vmatpush.msra.mxu0 0.0
      %2417 = vmatpush.msra.mxu0 %v1855
      %2418 = vmatpush.msra.mxu0 %v1851
      %2419 = vmatpush.msra.mxu0 %v1847
      %2420 = vmatpush.msra.mxu0 %v1843
      %2421 = vmatmul.f32.gmra.mxu0 %v2363
      %v2422 = vpop.f32.mrf.mxu0
      %v2423 = vadd.f32 0.0, %v2422
      %2424 = vdwg.mxu0
      %v2425 = vadd.f32 %v2357, %v2383
      %v2426 = vadd.f32 %v2358, %v2403
      %v2427 = vadd.f32 %v2359, %v2423
      %s2428 = scalar_lea.vmem %s6, 20
      %v2429 = vld [vmem:[%s2428] sm:$0xf]
      %v2430 = vld [vmem:[#allocation3 + $0x8] sm:$0xff]
      %v2431 = vld [vmem:[#allocation3 + $0x10] sm:$0xff]
      %v2432 = vld [vmem:[#allocation3 + $0x18] sm:$0xff]
      %v2433 = vld [vmem:[#allocation3 + $0x20] sm:$0xff]
      %v2434 = vld [vmem:[#allocation3 + $0x30] sm:$0xff]
      %v2435 = vld [vmem:[#allocation3 + $0x38] sm:$0xff]
      %v2436 = vld [vmem:[#allocation3 + $0x40] sm:$0xff]
      %v2437 = vld [vmem:[#allocation3 + $0x48] sm:$0xff]
      %v2438 = vld [vmem:[#allocation3 + $0x58] sm:$0xff]
      %v2439 = vld [vmem:[#allocation3 + $0x60] sm:$0xff]
      %v2440 = vld [vmem:[#allocation3 + $0x68] sm:$0xff]
      %v2441 = vld [vmem:[#allocation3 + $0x70] sm:$0xff]
      %v2442 = vld [vmem:[#allocation3 + $0x80] sm:$0xff]
      %v2443 = vld [vmem:[#allocation3 + $0x88] sm:$0xff]
      %v2444 = vld [vmem:[#allocation3 + $0x90] sm:$0xff]
      %v2445 = vld [vmem:[#allocation3 + $0x98] sm:$0xff]
      %2462 = vrot.lane.b32.xlu0 %v2430, 127
      %v2463 = vpop.permute.xlu0 %2462
      %2464 = vrot.lane.b32.xlu0 %v2431, 127
      %v2465 = vpop.permute.xlu0 %2464
      %2466 = vrot.lane.b32.xlu0 %v2432, 127
      %v2467 = vpop.permute.xlu0 %2466
      %2468 = vrot.lane.b32.xlu0 %v2433, 127
      %v2469 = vpop.permute.xlu0 %2468
      %2470 = vrot.lane.b32.xlu0 %v2434, 127
      %v2471 = vpop.permute.xlu0 %2470
      %2472 = vrot.lane.b32.xlu0 %v2435, 127
      %v2473 = vpop.permute.xlu0 %2472
      %2474 = vrot.lane.b32.xlu0 %v2436, 127
      %v2475 = vpop.permute.xlu0 %2474
      %2476 = vrot.lane.b32.xlu0 %v2437, 127
      %v2477 = vpop.permute.xlu0 %2476
      %2478 = vrot.lane.b32.xlu0 %v2438, 127
      %v2479 = vpop.permute.xlu0 %2478
      %2480 = vrot.lane.b32.xlu0 %v2439, 127
      %v2481 = vpop.permute.xlu0 %2480
      %2482 = vrot.lane.b32.xlu0 %v2440, 127
      %v2483 = vpop.permute.xlu0 %2482
      %2484 = vrot.lane.b32.xlu0 %v2441, 127
      %v2485 = vpop.permute.xlu0 %2484
      %2486 = vrot.lane.b32.xlu0 %v2442, 127
      %v2487 = vpop.permute.xlu0 %2486
      %2488 = vrot.lane.b32.xlu0 %v2443, 127
      %v2489 = vpop.permute.xlu0 %2488
      %2490 = vrot.lane.b32.xlu0 %v2444, 127
      %v2491 = vpop.permute.xlu0 %2490
      %2492 = vrot.lane.b32.xlu0 %v2445, 127
      %v2493 = vpop.permute.xlu0 %2492
      %v2494 = vsel %vm1062, %v2463, %v2465
      %v2495 = vsel %vm1062, %v2465, %v2467
      %v2496 = vsel %vm1062, %v2467, %v2469
      %v2497 = vsel %vm1062, %v2471, %v2473
      %v2498 = vsel %vm1062, %v2473, %v2475
      %v2499 = vsel %vm1062, %v2475, %v2477
      %v2500 = vsel %vm1062, %v2479, %v2481
      %v2501 = vsel %vm1062, %v2481, %v2483
      %v2502 = vsel %vm1062, %v2483, %v2485
      %v2503 = vsel %vm1062, %v2487, %v2489
      %v2504 = vsel %vm1062, %v2489, %v2491
      %v2505 = vsel %vm1062, %v2491, %v2493
      %v2519 = vsel %vm1694, %v2429, 0
      %2521 = vmatpush.msra.mxu0 0.0
      %2522 = vmatpush.msra.mxu0 0.0
      %2523 = vmatpush.msra.mxu0 0.0
      %2524 = vmatpush.msra.mxu0 0.0
      %2525 = vmatpush.msra.mxu0 0.0
      %2526 = vmatpush.msra.mxu0 0.0
      %2527 = vmatpush.msra.mxu0 0.0
      %2528 = vmatpush.msra.mxu0 0.0
      %2529 = vmatpush.msra.mxu0 0.0
      %2530 = vmatpush.msra.mxu0 0.0
      %2531 = vmatpush.msra.mxu0 0.0
      %2532 = vmatpush.msra.mxu0 0.0
      %2533 = vmatpush.msra.mxu0 %v2503
      %2534 = vmatpush.msra.mxu0 %v2500
      %2535 = vmatpush.msra.mxu0 %v2497
      %2536 = vmatpush.msra.mxu0 %v2494
      %2537 = vmatmul.f32.gmra.mxu0 %v2519
      %v2538 = vpop.f32.mrf.mxu0
      %v2539 = vadd.f32 0.0, %v2538
      %2540 = vdwg.mxu0
      %2541 = vmatpush.msra.mxu0 0.0
      %2542 = vmatpush.msra.mxu0 0.0
      %2543 = vmatpush.msra.mxu0 0.0
      %2544 = vmatpush.msra.mxu0 0.0
      %2545 = vmatpush.msra.mxu0 0.0
      %2546 = vmatpush.msra.mxu0 0.0
      %2547 = vmatpush.msra.mxu0 0.0
      %2548 = vmatpush.msra.mxu0 0.0
      %2549 = vmatpush.msra.mxu0 0.0
      %2550 = vmatpush.msra.mxu0 0.0
      %2551 = vmatpush.msra.mxu0 0.0
      %2552 = vmatpush.msra.mxu0 0.0
      %2553 = vmatpush.msra.mxu0 %v2504
      %2554 = vmatpush.msra.mxu0 %v2501
      %2555 = vmatpush.msra.mxu0 %v2498
      %2556 = vmatpush.msra.mxu0 %v2495
      %2557 = vmatmul.f32.gmra.mxu0 %v2519
      %v2558 = vpop.f32.mrf.mxu0
      %v2559 = vadd.f32 0.0, %v2558
      %2560 = vdwg.mxu0
      %2561 = vmatpush.msra.mxu0 0.0
      %2562 = vmatpush.msra.mxu0 0.0
      %2563 = vmatpush.msra.mxu0 0.0
      %2564 = vmatpush.msra.mxu0 0.0
      %2565 = vmatpush.msra.mxu0 0.0
      %2566 = vmatpush.msra.mxu0 0.0
      %2567 = vmatpush.msra.mxu0 0.0
      %2568 = vmatpush.msra.mxu0 0.0
      %2569 = vmatpush.msra.mxu0 0.0
      %2570 = vmatpush.msra.mxu0 0.0
      %2571 = vmatpush.msra.mxu0 0.0
      %2572 = vmatpush.msra.mxu0 0.0
      %2573 = vmatpush.msra.mxu0 %v2505
      %2574 = vmatpush.msra.mxu0 %v2502
      %2575 = vmatpush.msra.mxu0 %v2499
      %2576 = vmatpush.msra.mxu0 %v2496
      %2577 = vmatmul.f32.gmra.mxu0 %v2519
      %v2578 = vpop.f32.mrf.mxu0
      %v2579 = vadd.f32 0.0, %v2578
      %2580 = vdwg.mxu0
      %v2581 = vadd.f32 %v2425, %v2539
      %v2582 = vadd.f32 %v2426, %v2559
      %v2583 = vadd.f32 %v2427, %v2579
      %s2584 = scalar_lea.vmem %s6, 24
      %v2585 = vld [vmem:[%s2584] sm:$0xf]
      %2586 = vrot.lane.b32.xlu0 %v2430, 111
      %v2587 = vpop.permute.xlu0 %2586
      %2588 = vrot.lane.b32.xlu0 %v2431, 111
      %v2589 = vpop.permute.xlu0 %2588
      %2590 = vrot.lane.b32.xlu0 %v2432, 111
      %v2591 = vpop.permute.xlu0 %2590
      %2592 = vrot.lane.b32.xlu0 %v2433, 111
      %v2593 = vpop.permute.xlu0 %2592
      %2594 = vrot.lane.b32.xlu0 %v2434, 111
      %v2595 = vpop.permute.xlu0 %2594
      %2596 = vrot.lane.b32.xlu0 %v2435, 111
      %v2597 = vpop.permute.xlu0 %2596
      %2598 = vrot.lane.b32.xlu0 %v2436, 111
      %v2599 = vpop.permute.xlu0 %2598
      %2600 = vrot.lane.b32.xlu0 %v2437, 111
      %v2601 = vpop.permute.xlu0 %2600
      %2602 = vrot.lane.b32.xlu0 %v2438, 111
      %v2603 = vpop.permute.xlu0 %2602
      %2604 = vrot.lane.b32.xlu0 %v2439, 111
      %v2605 = vpop.permute.xlu0 %2604
      %2606 = vrot.lane.b32.xlu0 %v2440, 111
      %v2607 = vpop.permute.xlu0 %2606
      %2608 = vrot.lane.b32.xlu0 %v2441, 111
      %v2609 = vpop.permute.xlu0 %2608
      %2610 = vrot.lane.b32.xlu0 %v2442, 111
      %v2611 = vpop.permute.xlu0 %2610
      %2612 = vrot.lane.b32.xlu0 %v2443, 111
      %v2613 = vpop.permute.xlu0 %2612
      %2614 = vrot.lane.b32.xlu0 %v2444, 111
      %v2615 = vpop.permute.xlu0 %2614
      %2616 = vrot.lane.b32.xlu0 %v2445, 111
      %v2617 = vpop.permute.xlu0 %2616
      %v2618 = vsel %vm1207, %v2587, %v2589
      %v2619 = vsel %vm1207, %v2589, %v2591
      %v2620 = vsel %vm1207, %v2591, %v2593
      %v2621 = vsel %vm1207, %v2595, %v2597
      %v2622 = vsel %vm1207, %v2597, %v2599
      %v2623 = vsel %vm1207, %v2599, %v2601
      %v2624 = vsel %vm1207, %v2603, %v2605
      %v2625 = vsel %vm1207, %v2605, %v2607
      %v2626 = vsel %vm1207, %v2607, %v2609
      %v2627 = vsel %vm1207, %v2611, %v2613
      %v2628 = vsel %vm1207, %v2613, %v2615
      %v2629 = vsel %vm1207, %v2615, %v2617
      %v2643 = vsel %vm1694, %v2585, 0
      %2645 = vmatpush.msra.mxu0 0.0
      %2646 = vmatpush.msra.mxu0 0.0
      %2647 = vmatpush.msra.mxu0 0.0
      %2648 = vmatpush.msra.mxu0 0.0
      %2649 = vmatpush.msra.mxu0 0.0
      %2650 = vmatpush.msra.mxu0 0.0
      %2651 = vmatpush.msra.mxu0 0.0
      %2652 = vmatpush.msra.mxu0 0.0
      %2653 = vmatpush.msra.mxu0 0.0
      %2654 = vmatpush.msra.mxu0 0.0
      %2655 = vmatpush.msra.mxu0 0.0
      %2656 = vmatpush.msra.mxu0 0.0
      %2657 = vmatpush.msra.mxu0 %v2627
      %2658 = vmatpush.msra.mxu0 %v2624
      %2659 = vmatpush.msra.mxu0 %v2621
      %2660 = vmatpush.msra.mxu0 %v2618
      %2661 = vmatmul.f32.gmra.mxu0 %v2643
      %v2662 = vpop.f32.mrf.mxu0
      %v2663 = vadd.f32 0.0, %v2662
      %2664 = vdwg.mxu0
      %2665 = vmatpush.msra.mxu0 0.0
      %2666 = vmatpush.msra.mxu0 0.0
      %2667 = vmatpush.msra.mxu0 0.0
      %2668 = vmatpush.msra.mxu0 0.0
      %2669 = vmatpush.msra.mxu0 0.0
      %2670 = vmatpush.msra.mxu0 0.0
      %2671 = vmatpush.msra.mxu0 0.0
      %2672 = vmatpush.msra.mxu0 0.0
      %2673 = vmatpush.msra.mxu0 0.0
      %2674 = vmatpush.msra.mxu0 0.0
      %2675 = vmatpush.msra.mxu0 0.0
      %2676 = vmatpush.msra.mxu0 0.0
      %2677 = vmatpush.msra.mxu0 %v2628
      %2678 = vmatpush.msra.mxu0 %v2625
      %2679 = vmatpush.msra.mxu0 %v2622
      %2680 = vmatpush.msra.mxu0 %v2619
      %2681 = vmatmul.f32.gmra.mxu0 %v2643
      %v2682 = vpop.f32.mrf.mxu0
      %v2683 = vadd.f32 0.0, %v2682
      %2684 = vdwg.mxu0
      %2685 = vmatpush.msra.mxu0 0.0
      %2686 = vmatpush.msra.mxu0 0.0
      %2687 = vmatpush.msra.mxu0 0.0
      %2688 = vmatpush.msra.mxu0 0.0
      %2689 = vmatpush.msra.mxu0 0.0
      %2690 = vmatpush.msra.mxu0 0.0
      %2691 = vmatpush.msra.mxu0 0.0
      %2692 = vmatpush.msra.mxu0 0.0
      %2693 = vmatpush.msra.mxu0 0.0
      %2694 = vmatpush.msra.mxu0 0.0
      %2695 = vmatpush.msra.mxu0 0.0
      %2696 = vmatpush.msra.mxu0 0.0
      %2697 = vmatpush.msra.mxu0 %v2629
      %2698 = vmatpush.msra.mxu0 %v2626
      %2699 = vmatpush.msra.mxu0 %v2623
      %2700 = vmatpush.msra.mxu0 %v2620
      %2701 = vmatmul.f32.gmra.mxu0 %v2643
      %v2702 = vpop.f32.mrf.mxu0
      %v2703 = vadd.f32 0.0, %v2702
      %2704 = vdwg.mxu0
      %v2705 = vadd.f32 %v2581, %v2663
      %v2706 = vadd.f32 %v2582, %v2683
      %v2707 = vadd.f32 %v2583, %v2703
      %s2708 = scalar_lea.vmem %s6, 28
      %v2709 = vld [vmem:[%s2708] sm:$0xf]
      %2710 = vrot.lane.b32.xlu0 %v2430, 110
      %v2711 = vpop.permute.xlu0 %2710
      %2712 = vrot.lane.b32.xlu0 %v2431, 110
      %v2713 = vpop.permute.xlu0 %2712
      %2714 = vrot.lane.b32.xlu0 %v2432, 110
      %v2715 = vpop.permute.xlu0 %2714
      %2716 = vrot.lane.b32.xlu0 %v2433, 110
      %v2717 = vpop.permute.xlu0 %2716
      %2718 = vrot.lane.b32.xlu0 %v2434, 110
      %v2719 = vpop.permute.xlu0 %2718
      %2720 = vrot.lane.b32.xlu0 %v2435, 110
      %v2721 = vpop.permute.xlu0 %2720
      %2722 = vrot.lane.b32.xlu0 %v2436, 110
      %v2723 = vpop.permute.xlu0 %2722
      %2724 = vrot.lane.b32.xlu0 %v2437, 110
      %v2725 = vpop.permute.xlu0 %2724
      %2726 = vrot.lane.b32.xlu0 %v2438, 110
      %v2727 = vpop.permute.xlu0 %2726
      %2728 = vrot.lane.b32.xlu0 %v2439, 110
      %v2729 = vpop.permute.xlu0 %2728
      %2730 = vrot.lane.b32.xlu0 %v2440, 110
      %v2731 = vpop.permute.xlu0 %2730
      %2732 = vrot.lane.b32.xlu0 %v2441, 110
      %v2733 = vpop.permute.xlu0 %2732
      %2734 = vrot.lane.b32.xlu0 %v2442, 110
      %v2735 = vpop.permute.xlu0 %2734
      %2736 = vrot.lane.b32.xlu0 %v2443, 110
      %v2737 = vpop.permute.xlu0 %2736
      %2738 = vrot.lane.b32.xlu0 %v2444, 110
      %v2739 = vpop.permute.xlu0 %2738
      %2740 = vrot.lane.b32.xlu0 %v2445, 110
      %v2741 = vpop.permute.xlu0 %2740
      %v2742 = vsel %vm1352, %v2711, %v2713
      %v2743 = vsel %vm1352, %v2713, %v2715
      %v2744 = vsel %vm1352, %v2715, %v2717
      %v2745 = vsel %vm1352, %v2719, %v2721
      %v2746 = vsel %vm1352, %v2721, %v2723
      %v2747 = vsel %vm1352, %v2723, %v2725
      %v2748 = vsel %vm1352, %v2727, %v2729
      %v2749 = vsel %vm1352, %v2729, %v2731
      %v2750 = vsel %vm1352, %v2731, %v2733
      %v2751 = vsel %vm1352, %v2735, %v2737
      %v2752 = vsel %vm1352, %v2737, %v2739
      %v2753 = vsel %vm1352, %v2739, %v2741
      %v2767 = vsel %vm1694, %v2709, 0
      %2769 = vmatpush.msra.mxu0 0.0
      %2770 = vmatpush.msra.mxu0 0.0
      %2771 = vmatpush.msra.mxu0 0.0
      %2772 = vmatpush.msra.mxu0 0.0
      %2773 = vmatpush.msra.mxu0 0.0
      %2774 = vmatpush.msra.mxu0 0.0
      %2775 = vmatpush.msra.mxu0 0.0
      %2776 = vmatpush.msra.mxu0 0.0
      %2777 = vmatpush.msra.mxu0 0.0
      %2778 = vmatpush.msra.mxu0 0.0
      %2779 = vmatpush.msra.mxu0 0.0
      %2780 = vmatpush.msra.mxu0 0.0
      %2781 = vmatpush.msra.mxu0 %v2751
      %2782 = vmatpush.msra.mxu0 %v2748
      %2783 = vmatpush.msra.mxu0 %v2745
      %2784 = vmatpush.msra.mxu0 %v2742
      %2785 = vmatmul.f32.gmra.mxu0 %v2767
      %v2786 = vpop.f32.mrf.mxu0
      %v2787 = vadd.f32 0.0, %v2786
      %2788 = vdwg.mxu0
      %2789 = vmatpush.msra.mxu0 0.0
      %2790 = vmatpush.msra.mxu0 0.0
      %2791 = vmatpush.msra.mxu0 0.0
      %2792 = vmatpush.msra.mxu0 0.0
      %2793 = vmatpush.msra.mxu0 0.0
      %2794 = vmatpush.msra.mxu0 0.0
      %2795 = vmatpush.msra.mxu0 0.0
      %2796 = vmatpush.msra.mxu0 0.0
      %2797 = vmatpush.msra.mxu0 0.0
      %2798 = vmatpush.msra.mxu0 0.0
      %2799 = vmatpush.msra.mxu0 0.0
      %2800 = vmatpush.msra.mxu0 0.0
      %2801 = vmatpush.msra.mxu0 %v2752
      %2802 = vmatpush.msra.mxu0 %v2749
      %2803 = vmatpush.msra.mxu0 %v2746
      %2804 = vmatpush.msra.mxu0 %v2743
      %2805 = vmatmul.f32.gmra.mxu0 %v2767
      %v2806 = vpop.f32.mrf.mxu0
      %v2807 = vadd.f32 0.0, %v2806
      %2808 = vdwg.mxu0
      %2809 = vmatpush.msra.mxu0 0.0
      %2810 = vmatpush.msra.mxu0 0.0
      %2811 = vmatpush.msra.mxu0 0.0
      %2812 = vmatpush.msra.mxu0 0.0
      %2813 = vmatpush.msra.mxu0 0.0
      %2814 = vmatpush.msra.mxu0 0.0
      %2815 = vmatpush.msra.mxu0 0.0
      %2816 = vmatpush.msra.mxu0 0.0
      %2817 = vmatpush.msra.mxu0 0.0
      %2818 = vmatpush.msra.mxu0 0.0
      %2819 = vmatpush.msra.mxu0 0.0
      %2820 = vmatpush.msra.mxu0 0.0
      %2821 = vmatpush.msra.mxu0 %v2753
      %2822 = vmatpush.msra.mxu0 %v2750
      %2823 = vmatpush.msra.mxu0 %v2747
      %2824 = vmatpush.msra.mxu0 %v2744
      %2825 = vmatmul.f32.gmra.mxu0 %v2767
      %v2826 = vpop.f32.mrf.mxu0
      %v2827 = vadd.f32 0.0, %v2826
      %2828 = vdwg.mxu0
      %v2829 = vadd.f32 %v2705, %v2787
      %v2830 = vadd.f32 %v2706, %v2807
      %v2831 = vadd.f32 %v2707, %v2827
      %s2832 = scalar_lea.vmem %s6, 32
      %v2833 = vld [vmem:[%s2832] sm:$0xf]
      %2834 = vrot.lane.b32.xlu0 %v2430, 109
      %v2835 = vpop.permute.xlu0 %2834
      %2836 = vrot.lane.b32.xlu0 %v2431, 109
      %v2837 = vpop.permute.xlu0 %2836
      %2838 = vrot.lane.b32.xlu0 %v2432, 109
      %v2839 = vpop.permute.xlu0 %2838
      %2840 = vrot.lane.b32.xlu0 %v2433, 109
      %v2841 = vpop.permute.xlu0 %2840
      %2842 = vrot.lane.b32.xlu0 %v2434, 109
      %v2843 = vpop.permute.xlu0 %2842
      %2844 = vrot.lane.b32.xlu0 %v2435, 109
      %v2845 = vpop.permute.xlu0 %2844
      %2846 = vrot.lane.b32.xlu0 %v2436, 109
      %v2847 = vpop.permute.xlu0 %2846
      %2848 = vrot.lane.b32.xlu0 %v2437, 109
      %v2849 = vpop.permute.xlu0 %2848
      %2850 = vrot.lane.b32.xlu0 %v2438, 109
      %v2851 = vpop.permute.xlu0 %2850
      %2852 = vrot.lane.b32.xlu0 %v2439, 109
      %v2853 = vpop.permute.xlu0 %2852
      %2854 = vrot.lane.b32.xlu0 %v2440, 109
      %v2855 = vpop.permute.xlu0 %2854
      %2856 = vrot.lane.b32.xlu0 %v2441, 109
      %v2857 = vpop.permute.xlu0 %2856
      %2858 = vrot.lane.b32.xlu0 %v2442, 109
      %v2859 = vpop.permute.xlu0 %2858
      %2860 = vrot.lane.b32.xlu0 %v2443, 109
      %v2861 = vpop.permute.xlu0 %2860
      %2862 = vrot.lane.b32.xlu0 %v2444, 109
      %v2863 = vpop.permute.xlu0 %2862
      %2864 = vrot.lane.b32.xlu0 %v2445, 109
      %v2865 = vpop.permute.xlu0 %2864
      %v2866 = vsel %vm1497, %v2835, %v2837
      %v2867 = vsel %vm1497, %v2837, %v2839
      %v2868 = vsel %vm1497, %v2839, %v2841
      %v2869 = vsel %vm1497, %v2843, %v2845
      %v2870 = vsel %vm1497, %v2845, %v2847
      %v2871 = vsel %vm1497, %v2847, %v2849
      %v2872 = vsel %vm1497, %v2851, %v2853
      %v2873 = vsel %vm1497, %v2853, %v2855
      %v2874 = vsel %vm1497, %v2855, %v2857
      %v2875 = vsel %vm1497, %v2859, %v2861
      %v2876 = vsel %vm1497, %v2861, %v2863
      %v2877 = vsel %vm1497, %v2863, %v2865
      %v2891 = vsel %vm1694, %v2833, 0
      %2893 = vmatpush.msra.mxu0 0.0
      %2894 = vmatpush.msra.mxu0 0.0
      %2895 = vmatpush.msra.mxu0 0.0
      %2896 = vmatpush.msra.mxu0 0.0
      %2897 = vmatpush.msra.mxu0 0.0
      %2898 = vmatpush.msra.mxu0 0.0
      %2899 = vmatpush.msra.mxu0 0.0
      %2900 = vmatpush.msra.mxu0 0.0
      %2901 = vmatpush.msra.mxu0 0.0
      %2902 = vmatpush.msra.mxu0 0.0
      %2903 = vmatpush.msra.mxu0 0.0
      %2904 = vmatpush.msra.mxu0 0.0
      %2905 = vmatpush.msra.mxu0 %v2875
      %2906 = vmatpush.msra.mxu0 %v2872
      %2907 = vmatpush.msra.mxu0 %v2869
      %2908 = vmatpush.msra.mxu0 %v2866
      %2909 = vmatmul.f32.gmra.mxu0 %v2891
      %v2910 = vpop.f32.mrf.mxu0
      %v2911 = vadd.f32 0.0, %v2910
      %2912 = vdwg.mxu0
      %2913 = vmatpush.msra.mxu0 0.0
      %2914 = vmatpush.msra.mxu0 0.0
      %2915 = vmatpush.msra.mxu0 0.0
      %2916 = vmatpush.msra.mxu0 0.0
      %2917 = vmatpush.msra.mxu0 0.0
      %2918 = vmatpush.msra.mxu0 0.0
      %2919 = vmatpush.msra.mxu0 0.0
      %2920 = vmatpush.msra.mxu0 0.0
      %2921 = vmatpush.msra.mxu0 0.0
      %2922 = vmatpush.msra.mxu0 0.0
      %2923 = vmatpush.msra.mxu0 0.0
      %2924 = vmatpush.msra.mxu0 0.0
      %2925 = vmatpush.msra.mxu0 %v2876
      %2926 = vmatpush.msra.mxu0 %v2873
      %2927 = vmatpush.msra.mxu0 %v2870
      %2928 = vmatpush.msra.mxu0 %v2867
      %2929 = vmatmul.f32.gmra.mxu0 %v2891
      %v2930 = vpop.f32.mrf.mxu0
      %v2931 = vadd.f32 0.0, %v2930
      %2932 = vdwg.mxu0
      %2933 = vmatpush.msra.mxu0 0.0
      %2934 = vmatpush.msra.mxu0 0.0
      %2935 = vmatpush.msra.mxu0 0.0
      %2936 = vmatpush.msra.mxu0 0.0
      %2937 = vmatpush.msra.mxu0 0.0
      %2938 = vmatpush.msra.mxu0 0.0
      %2939 = vmatpush.msra.mxu0 0.0
      %2940 = vmatpush.msra.mxu0 0.0
      %2941 = vmatpush.msra.mxu0 0.0
      %2942 = vmatpush.msra.mxu0 0.0
      %2943 = vmatpush.msra.mxu0 0.0
      %2944 = vmatpush.msra.mxu0 0.0
      %2945 = vmatpush.msra.mxu0 %v2877
      %2946 = vmatpush.msra.mxu0 %v2874
      %2947 = vmatpush.msra.mxu0 %v2871
      %2948 = vmatpush.msra.mxu0 %v2868
      %2949 = vmatmul.f32.gmra.mxu0 %v2891
      %v2950 = vpop.f32.mrf.mxu0
      %v2951 = vadd.f32 0.0, %v2950
      %2952 = vdwg.mxu0
      %v2953 = vadd.f32 %v2829, %v2911
      %v2954 = vadd.f32 %v2830, %v2931
      %v2955 = vadd.f32 %v2831, %v2951
      %v2956 = vld [vmem:[%s7] sm:$0xf]
      %2958 = vset.pattern.permute.xlu0 0
      %2959 = vperm.xlu0 %2958, %v2956
      %v2960 = vpop.permute.xlu0 %2959
      %v2962 = vadd.f32 %v2953, %v2960
      %v2963 = vadd.f32 %v2954, %v2960
      %v2964 = vadd.f32 %v2955, %v2960
      %v2965 = vld [vmem:[%s8] sm:$0xf]
      %v2966 = vmul.f32 %v2965, 3.0
      %v2967 = vmul.f32 %v2966, 1.442695
      %v2968 = vpow.pop %v2967
      %2970 = vset.pattern.permute.xlu0 0
      %2971 = vperm.xlu0 %2970, %v2968
      %v2972 = vpop.permute.xlu0 %2971
      %v2974 = vmul.f32 %v2962, %v2972
      %v2975 = vmul.f32 %v2963, %v2972
      %v2976 = vmul.f32 %v2964, %v2972
      %v2977 = vadd.f32 %v2974, 2.0
      %v2978 = vadd.f32 %v2975, 2.0
      %v2979 = vadd.f32 %v2976, 2.0
      %v2980 = vxor.u32 %v2977, 2147483648
      %v2981 = vxor.u32 %v2978, 2147483648
      %v2982 = vxor.u32 %v2979, 2147483648
      %v2983 = vmul.f32 %v2980, 1.442695
      %v2984 = vpow.pop %v2983
      %v2985 = vmul.f32 %v2981, 1.442695
      %v2986 = vpow.pop %v2985
      %v2987 = vmul.f32 %v2982, 1.442695
      %v2988 = vpow.pop %v2987
      %v2989 = vadd.f32 %v2984, 1.0
      %v2990 = vadd.f32 %v2986, 1.0
      %v2991 = vadd.f32 %v2988, 1.0
      %v2992 = vrcp.pop %v2989
      %v2993 = vmul.f32 %v2989, %v2992
      %v2994 = vsub.f32 1.0, %v2993
      %v2995 = vmul.f32 %v2992, %v2994
      %v2996 = vadd.f32 %v2992, %v2995
      %vm2997 = vweird.f32 %v2989
      %vm2998 = vweird.f32 %v2992
      %vm2999 = vmor %vm2997, %vm2998
      %v3000 = vsel %vm2999, %v2992, %v2996
      %v3001 = vand.u32 2147483647, %v2989
      %vm3002 = vcmp.eq.f32.partialorder %v3001, 8.507059e+37
      %v3003 = vand.u32 %v2989, 2147483648
      %v3004 = vor.u32 1.1754944e-38, %v3003
      %v3005 = vsel %vm3002, %v3004, %v3000
      %v3006 = vmul.f32 1.0, %v3005
      %v3007 = vrcp.pop %v2990
      %v3008 = vmul.f32 %v2990, %v3007
      %v3009 = vsub.f32 1.0, %v3008
      %v3010 = vmul.f32 %v3007, %v3009
      %v3011 = vadd.f32 %v3007, %v3010
      %vm3012 = vweird.f32 %v2990
      %vm3013 = vweird.f32 %v3007
      %vm3014 = vmor %vm3012, %vm3013
      %v3015 = vsel %vm3014, %v3007, %v3011
      %v3016 = vand.u32 2147483647, %v2990
      %vm3017 = vcmp.eq.f32.partialorder %v3016, 8.507059e+37
      %v3018 = vand.u32 %v2990, 2147483648
      %v3019 = vor.u32 1.1754944e-38, %v3018
      %v3020 = vsel %vm3017, %v3019, %v3015
      %v3021 = vmul.f32 1.0, %v3020
      %v3022 = vrcp.pop %v2991
      %v3023 = vmul.f32 %v2991, %v3022
      %v3024 = vsub.f32 1.0, %v3023
      %v3025 = vmul.f32 %v3022, %v3024
      %v3026 = vadd.f32 %v3022, %v3025
      %vm3027 = vweird.f32 %v2991
      %vm3028 = vweird.f32 %v3022
      %vm3029 = vmor %vm3027, %vm3028
      %v3030 = vsel %vm3029, %v3022, %v3026
      %v3031 = vand.u32 2147483647, %v2991
      %vm3032 = vcmp.eq.f32.partialorder %v3031, 8.507059e+37
      %v3033 = vand.u32 %v2991, 2147483648
      %v3034 = vor.u32 1.1754944e-38, %v3033
      %v3035 = vsel %vm3032, %v3034, %v3030
      %v3036 = vmul.f32 1.0, %v3035
      %v3037 = vld [vmem:[#allocation2 + $0x4] sm:$0x33]
      %v3038 = vld [vmem:[#allocation2 + $0xc] sm:$0x3]
      %v3039 = vld [vmem:[#allocation2 + $0x4] sm:$0xcc]
      %v3040 = vld [vmem:[#allocation2 + $0xc] sm:$0xc]
      %3041 = vst [vmem:[%s332] sm:$0x33] %v3037
      %3042 = vst [vmem:[%s332 + $0x8] sm:$0x3] %v3038
      %v3045 = vrot.slane %v2975, 4
      %vm3046 = vcmask 1043456
      %v3047 = vsel %vm3046, %v2974, %v3045
      %v3049 = vadd.f32 %v3039, %v3047
      %v3050 = vadd.f32 %v3040, %v2976
      %v3054 = vrot.slane %v3021, 4
      %v3055 = vsel %vm3046, %v3006, %v3054
      %v3056 = vrot.slane %v3055, 6
      %v3057 = vrot.slane %v3036, 6
      %v3060 = vmul.f32 %v3049, %v3056
      %v3061 = vmul.f32 %v3050, %v3057
      %3062 = vst [vmem:[%s332] sm:$0xcc] %v3060
      %3063 = vst [vmem:[%s332 + $0x8] sm:$0xc] %v3061
      %p3064 = scmp.lt.s32.totalorder %s20, 1
      %s3065 = scalar_select %p3064, %s20, 1
      %s3066 = smul.addr %s3065, 3
      %s3067 = smul.addr %s3066, 4
      %s3068 = scalar_lea.vmem %s9, %s3067
      // Predicated region
      $region61: #{affine_coupling_forward.1} parent=55 // pred_check
        %p3069 = pneg %p232
      $region62: #{affine_coupling_forward.1} parent=55 // pred_check_branch
        %3071 = sbr.rel (%p3069) target = $region64
      $region63: #{affine_coupling_forward.1} parent=55 // pred_region
        _
      $region64: #{affine_coupling_forward.1} parent=55 // pred_fallthru
        _
    $region56: #{affine_coupling_forward.1} parent=5 // pred_fallthru
      _
    %p3072 = scmp.le.s32.totalorder 2, %s15
    // Predicated region
    $region65: #{affine_coupling_forward.1} parent=5 // pred_check
      %p3073 = pneg %p3072
    $region66: #{affine_coupling_forward.1} parent=5 // pred_check_branch
      %3075 = sbr.rel (%p3073) target = $region68
    $region67: #{affine_coupling_forward.1} parent=5 // pred_region
      %s3076 = ssub.s32 %s15, 2
      // Predicated region
      $region69: #{affine_coupling_forward.1} parent=67 // pred_check
        %p3077 = pneg %p238
      $region70: #{affine_coupling_forward.1} parent=67 // pred_check_branch
        %3079 = sbr.rel (%p3077) target = $region72
      $region71: #{affine_coupling_forward.1} parent=67 // pred_region
        %p3080 = scmp.lt.s32.totalorder %s21, 1
        %s3081 = scalar_select %p3080, %s21, 1
        %s3082 = smul.addr %s3081, 3
        %s3083 = smul.addr %s3082, 4
        %s3084 = scalar_lea.vmem %s9, %s3083
      $region72: #{affine_coupling_forward.1} parent=67 // pred_fallthru
        _
    $region68: #{affine_coupling_forward.1} parent=5 // pred_fallthru
      _
  $region6: #{affine_coupling_forward.1} parent=0 // loop_footer
    %s19 = sadd.s32 1, %s15
  $region7: #{affine_coupling_forward.1} parent=0 // loop_footer_branch
    %14 = sbr.rel target = $region3
  $region8: #{affine_coupling_forward.1} parent=0 // loop_exit
    _

</llo_original>
